<compile_context>
chip_gen: v5e
topology: v5e:2x2
jax: 0.10.0
libtpu: 0.0.40
codegen_flags: <defaults>
</compile_context>

<pallas_src>
import functools

import jax
import jax.numpy as jnp
import numpy as np
from jax import lax
from jax.experimental import pallas as pl
from jax.experimental.pallas import tpu as pltpu


def _round_up(x, m):
    return ((x + m - 1) // m) * m


# ----------------------------- Pallas kernel --------------------------------
def _sigmoid(x):
    # sigmoid(x) == 0.5 * tanh(0.5 * x) + 0.5  -> a single EUP transcendental.
    return 0.5 * jnp.tanh(0.5 * x) + 0.5


def _lstm_cell(gates, c, H):
    # PyTorch gate order: i, f, g, o (all math kept in f32).
    i = _sigmoid(gates[:, 0 * H:1 * H])
    f = _sigmoid(gates[:, 1 * H:2 * H])
    g = jnp.tanh(gates[:, 2 * H:3 * H])
    o = _sigmoid(gates[:, 3 * H:4 * H])
    c_new = f * c + i * g
    h_new = o * jnp.tanh(c_new)
    return h_new, c_new


def qst_encoder_kernel(x_ref,
                       w_ih0f_ref, w_ih0b_ref, b0f_ref, b0b_ref,
                       w_hh0f_ref, w_hh0b_ref,
                       w_ih1ff_ref, w_ih1fb_ref, w_ih1bf_ref, w_ih1bb_ref,
                       b1f_ref, b1b_ref, w_hh1f_ref, w_hh1b_ref,
                       w_fcf_ref, w_fcb_ref, b_fc_ref, gamma_ref, beta_ref,
                       out_ref,
                       l0f, l0b, gates_f, gates_b,
                       *, T, TB, H, EMB, unroll):
    # TODO(synk): embedding dropout (p=0.2) and inter-layer LSTM dropout (p=0.3)
    # are identity in eval mode; training-mode dropout is not implemented.
    G = 4 * H
    f32 = jnp.float32
    zero = jnp.zeros((TB, H), f32)
    mxu_dt = w_hh0f_ref.dtype                      # bf16 operands, f32 accumulate

    # Hoist recurrent weights out of the loops (stay resident in VMEM).
    w_hh0f = w_hh0f_ref[...]
    w_hh0b = w_hh0b_ref[...]
    w_hh1f = w_hh1f_ref[...]
    w_hh1b = w_hh1b_ref[...]

    xf = x_ref[0]                                  # (T*TB, Ep) bf16 slab

    # ---- layer 0: big time-invariant input projections (one per direction) --
    gates_f[...] = (jnp.dot(xf, w_ih0f_ref[...], preferred_element_type=f32)
                    + b0f_ref[...]).reshape(T, TB, G)
    gates_b[...] = (jnp.dot(xf, w_ih0b_ref[...], preferred_element_type=f32)
                    + b0b_ref[...]).reshape(T, TB, G)

    # ---- layer 0: fused forward/backward recurrence --------------------------
    def body0(s, carry):
        hf, cf, hb, cb = carry
        sb = T - 1 - s
        gf = gates_f[s] + jnp.dot(hf.astype(mxu_dt), w_hh0f,
                                  preferred_element_type=f32)
        gb = gates_b[sb] + jnp.dot(hb.astype(mxu_dt), w_hh0b,
                                   preferred_element_type=f32)
        hf, cf = _lstm_cell(gf, cf, H)
        hb, cb = _lstm_cell(gb, cb, H)
        l0f[s] = hf.astype(l0f.dtype)
        l0b[sb] = hb.astype(l0b.dtype)
        return hf, cf, hb, cb

    lax.fori_loop(0, T, body0, (zero, zero, zero, zero), unroll=unroll)

    # ---- layer 1: input projection from the two (T*TB, H) slabs -------------
    # The (fwd || bwd) concat of layer-0 outputs is folded into split weights.
    l0f_flat = l0f[...].reshape(T * TB, H)
    l0b_flat = l0b[...].reshape(T * TB, H)
    gates_f[...] = (jnp.dot(l0f_flat, w_ih1ff_ref[...], preferred_element_type=f32)
                    + jnp.dot(l0b_flat, w_ih1fb_ref[...], preferred_element_type=f32)
                    + b1f_ref[...]).reshape(T, TB, G)
    gates_b[...] = (jnp.dot(l0f_flat, w_ih1bf_ref[...], preferred_element_type=f32)
                    + jnp.dot(l0b_flat, w_ih1bb_ref[...], preferred_element_type=f32)
                    + b1b_ref[...]).reshape(T, TB, G)

    # ---- layer 1: fused forward/backward recurrence (final h only) ----------
    def body1(s, carry):
        hf, cf, hb, cb = carry
        sb = T - 1 - s
        gf = gates_f[s] + jnp.dot(hf.astype(mxu_dt), w_hh1f,
                                  preferred_element_type=f32)
        gb = gates_b[sb] + jnp.dot(hb.astype(mxu_dt), w_hh1b,
                                   preferred_element_type=f32)
        hf, cf = _lstm_cell(gf, cf, H)
        hb, cb = _lstm_cell(gb, cb, H)
        return hf, cf, hb, cb

    h1f, _, h1b, _ = lax.fori_loop(0, T, body1, (zero, zero, zero, zero),
                                   unroll=unroll)

    # ---- fc -> tanh -> LayerNorm (masked over the EMB valid lanes) ----------
    # hidden[-2:] == [layer-1 fwd final h, layer-1 bwd final h]; the concat is
    # folded into the two fc-weight halves (no in-kernel concat).
    y = jnp.tanh(jnp.dot(h1f.astype(mxu_dt), w_fcf_ref[...], preferred_element_type=f32)
                 + jnp.dot(h1b.astype(mxu_dt), w_fcb_ref[...], preferred_element_type=f32)
                 + b_fc_ref[...])
    EMBp = y.shape[-1]
    mask = (lax.broadcasted_iota(jnp.int32, (1, EMBp), 1) < EMB).astype(f32)
    mean = jnp.sum(y * mask, axis=-1, keepdims=True) * (1.0 / EMB)
    d = (y - mean) * mask
    var = jnp.sum(d * d, axis=-1, keepdims=True) * (1.0 / EMB)
    out_ref[...] = d * lax.rsqrt(var + 1e-5) * gamma_ref[...] + beta_ref[...]


# ------------------------------ wrapper --------------------------------------
def _choose_batch_tile(B, batch_tile):
    if batch_tile is not None:
        TB = _round_up(int(batch_tile), 8)
    else:
        TB = min(128, _round_up(B, 8))
        # v7x has two TensorCores: prefer >= 2 grid steps when the batch allows.
        if TB >= B and B > 16:
            TB = _round_up((B + 1) // 2, 16)
    Bp = _round_up(B, TB)
    if Bp != TB:
        # Tiled along batch: keep the bf16 sublane packing (16) of the x block
        # aligned so no masked sublane accesses are needed.
        TB = _round_up(TB, 16)
        Bp = _round_up(B, TB)
    return TB, Bp


def _vmem_limit_bytes():
    # Generation-aware: leave headroom below physical VMEM (64 MiB/TC on v7x,
    # 128 MiB on v5e/v6e). Falls back to a conservative value if unavailable.
    try:
        cap = int(pltpu.get_tpu_info().vmem_capacity_bytes)
    except Exception:
        cap = 64 * 1024 * 1024
    return max(32 * 1024 * 1024, min(cap - 8 * 1024 * 1024, 100 * 1024 * 1024))


def qst_encoder_forward(question, params, *, hidden_size, batch_tile=None):
    B, T = question.shape
    emb_tbl = params["embedding"]
    E = emb_tbl.shape[1]
    EMB = params["w_fc"].shape[1]
    H = hidden_size
    G = 4 * H

    TB, Bp = _choose_batch_tile(B, batch_tile)
    Ep = _round_up(E, 128)                 # lane-aligned K for the layer-0 matmul
    EMBp = _round_up(EMB, 128)             # lane-dense output width
    num_tiles = Bp // TB

    f32, bf16 = jnp.float32, jnp.bfloat16

    # glue: embedding gather (identity dropout) -> bf16 -> (tiles, T*TB, Ep).
    x = jnp.take(emb_tbl, question, axis=0).astype(bf16)            # (B, T, E)
    x = jnp.transpose(x, (1, 0, 2))                                  # (T, B, E)
    x = jnp.pad(x, ((0, 0), (0, Bp - B), (0, Ep - E)))               # (T, Bp, Ep)
    x = x.reshape(T, num_tiles, TB, Ep).transpose(1, 0, 2, 3)
    x = x.reshape(num_tiles, T * TB, Ep)

    # layer-0 input-projection weights (zero-padded along E), bf16 MXU operands.
    pe = Ep - E
    w_ih0f = jnp.pad(params["w_ih_l0f"], ((0, pe), (0, 0))).astype(bf16)
    w_ih0b = jnp.pad(params["w_ih_l0b"], ((0, pe), (0, 0))).astype(bf16)
    b0f = params["b_l0f"].astype(f32)
    b0b = params["b_l0b"].astype(f32)
    w_hh0f = params["w_hh_l0f"].astype(bf16)
    w_hh0b = params["w_hh_l0b"].astype(bf16)

    # layer-1 input-projection weights, split by layer-0 direction (the concat
    # of [l0_fwd, l0_bwd] is folded into two H-row halves per gate block).
    w_ih1ff = params["w_ih_l1f"][:H].astype(bf16)
    w_ih1fb = params["w_ih_l1f"][H:].astype(bf16)
    w_ih1bf = params["w_ih_l1b"][:H].astype(bf16)
    w_ih1bb = params["w_ih_l1b"][H:].astype(bf16)
    b1f = params["b_l1f"].astype(f32)
    b1b = params["b_l1b"].astype(f32)
    w_hh1f = params["w_hh_l1f"].astype(bf16)
    w_hh1b = params["w_hh_l1b"].astype(bf16)

    # fc weight split per direction; pad the EMB axis to a multiple of 128.
    pemb = EMBp - EMB
    w_fcf = jnp.pad(params["w_fc"][:H], ((0, 0), (0, pemb))).astype(bf16)
    w_fcb = jnp.pad(params["w_fc"][H:], ((0, 0), (0, pemb))).astype(bf16)
    b_fc = jnp.pad(params["b_fc"], ((0, 0), (0, pemb))).astype(f32)
    gamma = jnp.pad(params["gamma"], ((0, 0), (0, pemb))).astype(f32)
    beta = jnp.pad(params["beta"], ((0, 0), (0, pemb))).astype(f32)

    weights = (w_ih0f, w_ih0b, b0f, b0b, w_hh0f, w_hh0b,
               w_ih1ff, w_ih1fb, w_ih1bf, w_ih1bb, b1f, b1b, w_hh1f, w_hh1b,
               w_fcf, w_fcb, b_fc, gamma, beta)

    def full_spec(a):
        return pl.BlockSpec(a.shape, lambda b: (0,) * a.ndim)

    # bf16 layer-0 slab only when the batch tile matches bf16 sublane packing;
    # tiny (sub-16) tiles keep it f32 (the mixed dot still accumulates in f32).
    l0_dtype = bf16 if TB % 16 == 0 else f32
    unroll = True if T <= 16 else 4

    kernel = functools.partial(qst_encoder_kernel,
                               T=T, TB=TB, H=H, EMB=EMB, unroll=unroll)

    out = pl.pallas_call(
        kernel,
        out_shape=jax.ShapeDtypeStruct((Bp, EMBp), jnp.float32),
        grid=(num_tiles,),
        in_specs=[pl.BlockSpec((1, T * TB, Ep), lambda b: (b, 0, 0))]
                 + [full_spec(w) for w in weights],
        out_specs=pl.BlockSpec((TB, EMBp), lambda b: (b, 0)),
        scratch_shapes=[pltpu.VMEM((T, TB, H), l0_dtype),      # layer-0 fwd h
                        pltpu.VMEM((T, TB, H), l0_dtype),      # layer-0 bwd h
                        pltpu.VMEM((T, TB, G), jnp.float32),   # fwd gate slab
                        pltpu.VMEM((T, TB, G), jnp.float32)],  # bwd gate slab
        compiler_params=pltpu.CompilerParams(
            dimension_semantics=("parallel",),
            vmem_limit_bytes=_vmem_limit_bytes()),
    )(x, *weights)
    return out[:B, :EMB]


# ------------------------- pure-JAX reference --------------------------------
def _ref_dir(x, w_ih, w_hh, b, H, reverse):
    B = x.shape[1]

    def step(carry, x_t):
        h, c = carry
        g = x_t @ w_ih + h @ w_hh + b
        i = jax.nn.sigmoid(g[:, :H])
        f = jax.nn.sigmoid(g[:, H:2 * H])
        gg = jnp.tanh(g[:, 2 * H:3 * H])
        o = jax.nn.sigmoid(g[:, 3 * H:])
        c = f * c + i * gg
        h = o * jnp.tanh(c)
        return (h, c), h

    init = (jnp.zeros((B, H), jnp.float32), jnp.zeros((B, H), jnp.float32))
    xs = x[::-1] if reverse else x
    (h_final, _), hs = lax.scan(step, init, xs)
    if reverse:
        hs = hs[::-1]
    return hs, h_final


def qst_encoder_reference(question, params, *, hidden_size):
    H = hidden_size
    x = jnp.transpose(jnp.take(params["embedding"], question, axis=0), (1, 0, 2))
    l0f, _ = _ref_dir(x, params["w_ih_l0f"], params["w_hh_l0f"], params["b_l0f"], H, False)
    l0b, _ = _ref_dir(x, params["w_ih_l0b"], params["w_hh_l0b"], params["b_l0b"], H, True)
    x1 = jnp.concatenate([l0f, l0b], axis=-1)
    _, h1f = _ref_dir(x1, params["w_ih_l1f"], params["w_hh_l1f"], params["b_l1f"], H, False)
    _, h1b = _ref_dir(x1, params["w_ih_l1b"], params["w_hh_l1b"], params["b_l1b"], H, True)
    hidden = jnp.concatenate([h1f, h1b], axis=-1)
    y = jnp.tanh(hidden @ params["w_fc"] + params["b_fc"])
    mean = y.mean(-1, keepdims=True)
    var = ((y - mean) ** 2).mean(-1, keepdims=True)
    return (y - mean) * lax.rsqrt(var + 1e-5) * params["gamma"] + params["beta"]


# ------------------------------- main -----------------------------------------
def make_params(key, vocab_size, word_embed_size, hidden_size, embed_size):
    E, H, EMB = word_embed_size, hidden_size, embed_size
    keys = jax.random.split(key, 32)
    k = iter(keys)

    def w(shape, scale=0.1):
        return jax.random.normal(next(k), shape, jnp.float32) * scale

    params = {
        "embedding": w((vocab_size, E), 0.3).at[0].set(0.0),  # <pad> row zeroed
        # layer 0 (input size E), forward / backward
        "w_ih_l0f": w((E, 4 * H)), "w_hh_l0f": w((H, 4 * H)), "b_l0f": w((1, 4 * H)),
        "w_ih_l0b": w((E, 4 * H)), "w_hh_l0b": w((H, 4 * H)), "b_l0b": w((1, 4 * H)),
        # layer 1 (input size 2H), forward / backward
        "w_ih_l1f": w((2 * H, 4 * H)), "w_hh_l1f": w((H, 4 * H)), "b_l1f": w((1, 4 * H)),
        "w_ih_l1b": w((2 * H, 4 * H)), "w_hh_l1b": w((H, 4 * H)), "b_l1b": w((1, 4 * H)),
        # fc + layernorm
        "w_fc": w((2 * H, EMB)), "b_fc": w((1, EMB)),
        "gamma": jnp.ones((1, EMB), jnp.float32) + w((1, EMB), 0.05),
        "beta": w((1, EMB), 0.05),
    }
    return params


if __name__ == "__main__":
    B, T = 2, 8                 # batch of 2 questions, 8 tokens each
    VOCAB = 50
    WORD_EMBED = 32             # word_embed_size (GloVe dim in the original: 300)
    HIDDEN = 32                 # LSTM hidden_size (original: 256)
    EMBED = 32                  # embed_size of the output feature

    key = jax.random.PRNGKey(0)
    kp, kq = jax.random.split(key)
    params = make_params(kp, VOCAB, WORD_EMBED, HIDDEN, EMBED)
    question = jax.random.randint(kq, (B, T), 0, VOCAB, dtype=jnp.int32)

    out = qst_encoder_forward(question, params, hidden_size=HIDDEN)
    out = jax.block_until_ready(out)

    ref = jax.block_until_ready(
        qst_encoder_reference(question, params, hidden_size=HIDDEN))
    # bf16 MXU operands (f32 accumulation) -> loosened tolerance vs f32 reference.
    np.testing.assert_allclose(np.asarray(out), np.asarray(ref),
                               rtol=3e-2, atol=3e-2)

    print("KERNEL_OK")
</pallas_src>

<mosaic_0001>
module attributes {stable_mosaic.version = 11 : i64} {
  func.func @qst_encoder_kernel(%arg0: i32, %arg1: memref<1x64x128xbf16, #tpu.memory_space<vmem>>, %arg2: memref<128x128xbf16, #tpu.memory_space<vmem>>, %arg3: memref<128x128xbf16, #tpu.memory_space<vmem>>, %arg4: memref<1x128xf32, #tpu.memory_space<vmem>>, %arg5: memref<1x128xf32, #tpu.memory_space<vmem>>, %arg6: memref<32x128xbf16, #tpu.memory_space<vmem>>, %arg7: memref<32x128xbf16, #tpu.memory_space<vmem>>, %arg8: memref<32x128xbf16, #tpu.memory_space<vmem>>, %arg9: memref<32x128xbf16, #tpu.memory_space<vmem>>, %arg10: memref<32x128xbf16, #tpu.memory_space<vmem>>, %arg11: memref<32x128xbf16, #tpu.memory_space<vmem>>, %arg12: memref<1x128xf32, #tpu.memory_space<vmem>>, %arg13: memref<1x128xf32, #tpu.memory_space<vmem>>, %arg14: memref<32x128xbf16, #tpu.memory_space<vmem>>, %arg15: memref<32x128xbf16, #tpu.memory_space<vmem>>, %arg16: memref<32x128xbf16, #tpu.memory_space<vmem>>, %arg17: memref<32x128xbf16, #tpu.memory_space<vmem>>, %arg18: memref<1x128xf32, #tpu.memory_space<vmem>>, %arg19: memref<1x128xf32, #tpu.memory_space<vmem>>, %arg20: memref<1x128xf32, #tpu.memory_space<vmem>>, %arg21: memref<8x128xf32, #tpu.memory_space<vmem>>, %arg22: memref<8x8x32xf32, #tpu.memory_space<vmem>>, %arg23: memref<8x8x32xf32, #tpu.memory_space<vmem>>, %arg24: memref<8x8x128xf32, #tpu.memory_space<vmem>>, %arg25: memref<8x8x128xf32, #tpu.memory_space<vmem>>) attributes {dimension_semantics = [#tpu.dimension_semantics<parallel>], iteration_bounds = array<i64: 1>, scalar_prefetch = 0 : i64, scratch_operands = 4 : i64, tpu.core_type = #tpu.core_type<tc>, window_params = [{transform_indices = @transform_0, window_bounds = array<i64: 1, 64, 128>}, {pipeline_mode = #tpu.pipeline_mode<synchronous>, transform_indices = @transform_1, window_bounds = array<i64: 128, 128>}, {pipeline_mode = #tpu.pipeline_mode<synchronous>, transform_indices = @transform_2, window_bounds = array<i64: 128, 128>}, {pipeline_mode = #tpu.pipeline_mode<synchronous>, transform_indices = @transform_3, window_bounds = array<i64: 1, 128>}, {pipeline_mode = #tpu.pipeline_mode<synchronous>, transform_indices = @transform_4, window_bounds = array<i64: 1, 128>}, {pipeline_mode = #tpu.pipeline_mode<synchronous>, transform_indices = @transform_5, window_bounds = array<i64: 32, 128>}, {pipeline_mode = #tpu.pipeline_mode<synchronous>, transform_indices = @transform_6, window_bounds = array<i64: 32, 128>}, {pipeline_mode = #tpu.pipeline_mode<synchronous>, transform_indices = @transform_7, window_bounds = array<i64: 32, 128>}, {pipeline_mode = #tpu.pipeline_mode<synchronous>, transform_indices = @transform_8, window_bounds = array<i64: 32, 128>}, {pipeline_mode = #tpu.pipeline_mode<synchronous>, transform_indices = @transform_9, window_bounds = array<i64: 32, 128>}, {pipeline_mode = #tpu.pipeline_mode<synchronous>, transform_indices = @transform_10, window_bounds = array<i64: 32, 128>}, {pipeline_mode = #tpu.pipeline_mode<synchronous>, transform_indices = @transform_11, window_bounds = array<i64: 1, 128>}, {pipeline_mode = #tpu.pipeline_mode<synchronous>, transform_indices = @transform_12, window_bounds = array<i64: 1, 128>}, {pipeline_mode = #tpu.pipeline_mode<synchronous>, transform_indices = @transform_13, window_bounds = array<i64: 32, 128>}, {pipeline_mode = #tpu.pipeline_mode<synchronous>, transform_indices = @transform_14, window_bounds = array<i64: 32, 128>}, {pipeline_mode = #tpu.pipeline_mode<synchronous>, transform_indices = @transform_15, window_bounds = array<i64: 32, 128>}, {pipeline_mode = #tpu.pipeline_mode<synchronous>, transform_indices = @transform_16, window_bounds = array<i64: 32, 128>}, {pipeline_mode = #tpu.pipeline_mode<synchronous>, transform_indices = @transform_17, window_bounds = array<i64: 1, 128>}, {pipeline_mode = #tpu.pipeline_mode<synchronous>, transform_indices = @transform_18, window_bounds = array<i64: 1, 128>}, {pipeline_mode = #tpu.pipeline_mode<synchronous>, transform_indices = @transform_19, window_bounds = array<i64: 1, 128>}, {transform_indices = @transform_20, window_bounds = array<i64: 8, 128>}]} {
    %cst = arith.constant 0.000000e+00 : f32
    %0 = vector.broadcast %cst : f32 to vector<8x32xf32>
    %c0 = arith.constant 0 : index
    %c0_0 = arith.constant 0 : index
    %1 = vector.load %arg6[%c0, %c0_0] : memref<32x128xbf16, #tpu.memory_space<vmem>>, vector<32x128xbf16>
    %c0_1 = arith.constant 0 : index
    %c0_2 = arith.constant 0 : index
    %2 = vector.load %arg7[%c0_1, %c0_2] : memref<32x128xbf16, #tpu.memory_space<vmem>>, vector<32x128xbf16>
    %c0_3 = arith.constant 0 : index
    %c0_4 = arith.constant 0 : index
    %3 = vector.load %arg14[%c0_3, %c0_4] : memref<32x128xbf16, #tpu.memory_space<vmem>>, vector<32x128xbf16>
    %c0_5 = arith.constant 0 : index
    %c0_6 = arith.constant 0 : index
    %4 = vector.load %arg15[%c0_5, %c0_6] : memref<32x128xbf16, #tpu.memory_space<vmem>>, vector<32x128xbf16>
    %c0_7 = arith.constant 0 : index
    %c0_8 = arith.constant 0 : index
    %c0_9 = arith.constant 0 : index
    %5 = vector.load %arg1[%c0_7, %c0_8, %c0_9] : memref<1x64x128xbf16, #tpu.memory_space<vmem>>, vector<1x64x128xbf16>
    %6 = vector.shape_cast %5 : vector<1x64x128xbf16> to vector<64x128xbf16>
    %c0_10 = arith.constant 0 : index
    %c0_11 = arith.constant 0 : index
    %7 = vector.load %arg2[%c0_10, %c0_11] : memref<128x128xbf16, #tpu.memory_space<vmem>>, vector<128x128xbf16>
    %cst_12 = arith.constant dense<0.000000e+00> : vector<64x128xf32>
    %8 = tpu.matmul %6, %7, %cst_12 {dimension_numbers = #tpu.dot_dimension_numbers<[1], [0], [0], [1], [0, 0, 1, 1], [], []>} : vector<64x128xbf16>, vector<128x128xbf16>, vector<64x128xf32> -> vector<64x128xf32>
    %c0_13 = arith.constant 0 : index
    %c0_14 = arith.constant 0 : index
    %9 = vector.load %arg4[%c0_13, %c0_14] : memref<1x128xf32, #tpu.memory_space<vmem>>, vector<1x128xf32>
    %10 = vector.broadcast %9 : vector<1x128xf32> to vector<64x128xf32>
    %11 = arith.addf %8, %10 : vector<64x128xf32>
    %12 = vector.shape_cast %11 : vector<64x128xf32> to vector<8x8x128xf32>
    %c0_15 = arith.constant 0 : index
    %c0_16 = arith.constant 0 : index
    %c0_17 = arith.constant 0 : index
    %13 = vector.load %arg24[%c0_15, %c0_16, %c0_17] : memref<8x8x128xf32, #tpu.memory_space<vmem>>, vector<8x8x128xf32>
    tpu.vector_store %arg24[%c0_15, %c0_16, %c0_17], %12 {strides = array<i32>} : memref<8x8x128xf32, #tpu.memory_space<vmem>>, vector<8x8x128xf32>,
    %c0_18 = arith.constant 0 : index
    %c0_19 = arith.constant 0 : index
    %14 = vector.load %arg3[%c0_18, %c0_19] : memref<128x128xbf16, #tpu.memory_space<vmem>>, vector<128x128xbf16>
    %cst_20 = arith.constant dense<0.000000e+00> : vector<64x128xf32>
    %15 = tpu.matmul %6, %14, %cst_20 {dimension_numbers = #tpu.dot_dimension_numbers<[1], [0], [0], [1], [0, 0, 1, 1], [], []>} : vector<64x128xbf16>, vector<128x128xbf16>, vector<64x128xf32> -> vector<64x128xf32>
    %c0_21 = arith.constant 0 : index
    %c0_22 = arith.constant 0 : index
    %16 = vector.load %arg5[%c0_21, %c0_22] : memref<1x128xf32, #tpu.memory_space<vmem>>, vector<1x128xf32>
    %17 = vector.broadcast %16 : vector<1x128xf32> to vector<64x128xf32>
    %18 = arith.addf %15, %17 : vector<64x128xf32>
    %19 = vector.shape_cast %18 : vector<64x128xf32> to vector<8x8x128xf32>
    %c0_23 = arith.constant 0 : index
    %c0_24 = arith.constant 0 : index
    %c0_25 = arith.constant 0 : index
    %20 = vector.load %arg25[%c0_23, %c0_24, %c0_25] : memref<8x8x128xf32, #tpu.memory_space<vmem>>, vector<8x8x128xf32>
    tpu.vector_store %arg25[%c0_23, %c0_24, %c0_25], %19 {strides = array<i32>} : memref<8x8x128xf32, #tpu.memory_space<vmem>>, vector<8x8x128xf32>,
    %c0_i32 = arith.constant 0 : i32
    %c7_i32 = arith.constant 7 : i32
    %21 = arith.subi %c7_i32, %c0_i32 : i32
    %22 = arith.index_cast %c0_i32 : i32 to index
    %c0_26 = arith.constant 0 : index
    %c0_27 = arith.constant 0 : index
    %23 = vector.load %arg24[%22, %c0_26, %c0_27] : memref<8x8x128xf32, #tpu.memory_space<vmem>>, vector<1x8x128xf32>
    %24 = vector.shape_cast %23 : vector<1x8x128xf32> to vector<8x128xf32>
    %25 = arith.truncf %0 : vector<8x32xf32> to vector<8x32xbf16>
    %cst_28 = arith.constant dense<0.000000e+00> : vector<8x128xf32>
    %26 = tpu.matmul %25, %1, %cst_28 {dimension_numbers = #tpu.dot_dimension_numbers<[1], [0], [0], [1], [0, 0, 1, 1], [], []>} : vector<8x32xbf16>, vector<32x128xbf16>, vector<8x128xf32> -> vector<8x128xf32>
    %27 = arith.addf %24, %26 : vector<8x128xf32>
    %28 = arith.index_cast %21 : i32 to index
    %c0_29 = arith.constant 0 : index
    %c0_30 = arith.constant 0 : index
    %29 = vector.load %arg25[%28, %c0_29, %c0_30] : memref<8x8x128xf32, #tpu.memory_space<vmem>>, vector<1x8x128xf32>
    %30 = vector.shape_cast %29 : vector<1x8x128xf32> to vector<8x128xf32>
    %31 = arith.truncf %0 : vector<8x32xf32> to vector<8x32xbf16>
    %cst_31 = arith.constant dense<0.000000e+00> : vector<8x128xf32>
    %32 = tpu.matmul %31, %2, %cst_31 {dimension_numbers = #tpu.dot_dimension_numbers<[1], [0], [0], [1], [0, 0, 1, 1], [], []>} : vector<8x32xbf16>, vector<32x128xbf16>, vector<8x128xf32> -> vector<8x128xf32>
    %33 = arith.addf %30, %32 : vector<8x128xf32>
    %34 = vector.extract_strided_slice %27 {offsets = [0, 0], sizes = [8, 32], strides = [1, 1]} : vector<8x128xf32> to vector<8x32xf32>
    %cst_32 = arith.constant 5.000000e-01 : f32
    %35 = vector.broadcast %cst_32 : f32 to vector<8x32xf32>
    %36 = arith.mulf %35, %34 : vector<8x32xf32>
    %37 = math.tanh %36 : vector<8x32xf32>
    %cst_33 = arith.constant 5.000000e-01 : f32
    %38 = vector.broadcast %cst_33 : f32 to vector<8x32xf32>
    %39 = arith.mulf %38, %37 : vector<8x32xf32>
    %cst_34 = arith.constant 5.000000e-01 : f32
    %40 = vector.broadcast %cst_34 : f32 to vector<8x32xf32>
    %41 = arith.addf %39, %40 : vector<8x32xf32>
    %42 = vector.extract_strided_slice %27 {offsets = [0, 32], sizes = [8, 32], strides = [1, 1]} : vector<8x128xf32> to vector<8x32xf32>
    %cst_35 = arith.constant 5.000000e-01 : f32
    %43 = vector.broadcast %cst_35 : f32 to vector<8x32xf32>
    %44 = arith.mulf %43, %42 : vector<8x32xf32>
    %45 = math.tanh %44 : vector<8x32xf32>
    %cst_36 = arith.constant 5.000000e-01 : f32
    %46 = vector.broadcast %cst_36 : f32 to vector<8x32xf32>
    %47 = arith.mulf %46, %45 : vector<8x32xf32>
    %cst_37 = arith.constant 5.000000e-01 : f32
    %48 = vector.broadcast %cst_37 : f32 to vector<8x32xf32>
    %49 = arith.addf %47, %48 : vector<8x32xf32>
    %50 = vector.extract_strided_slice %27 {offsets = [0, 64], sizes = [8, 32], strides = [1, 1]} : vector<8x128xf32> to vector<8x32xf32>
    %51 = math.tanh %50 : vector<8x32xf32>
    %52 = vector.extract_strided_slice %27 {offsets = [0, 96], sizes = [8, 32], strides = [1, 1]} : vector<8x128xf32> to vector<8x32xf32>
    %cst_38 = arith.constant 5.000000e-01 : f32
    %53 = vector.broadcast %cst_38 : f32 to vector<8x32xf32>
    %54 = arith.mulf %53, %52 : vector<8x32xf32>
    %55 = math.tanh %54 : vector<8x32xf32>
    %cst_39 = arith.constant 5.000000e-01 : f32
    %56 = vector.broadcast %cst_39 : f32 to vector<8x32xf32>
    %57 = arith.mulf %56, %55 : vector<8x32xf32>
    %cst_40 = arith.constant 5.000000e-01 : f32
    %58 = vector.broadcast %cst_40 : f32 to vector<8x32xf32>
    %59 = arith.addf %57, %58 : vector<8x32xf32>
    %60 = arith.mulf %49, %0 : vector<8x32xf32>
    %61 = arith.mulf %41, %51 : vector<8x32xf32>
    %62 = arith.addf %60, %61 : vector<8x32xf32>
    %63 = math.tanh %62 : vector<8x32xf32>
    %64 = arith.mulf %59, %63 : vector<8x32xf32>
    %65 = vector.extract_strided_slice %33 {offsets = [0, 0], sizes = [8, 32], strides = [1, 1]} : vector<8x128xf32> to vector<8x32xf32>
    %cst_41 = arith.constant 5.000000e-01 : f32
    %66 = vector.broadcast %cst_41 : f32 to vector<8x32xf32>
    %67 = arith.mulf %66, %65 : vector<8x32xf32>
    %68 = math.tanh %67 : vector<8x32xf32>
    %cst_42 = arith.constant 5.000000e-01 : f32
    %69 = vector.broadcast %cst_42 : f32 to vector<8x32xf32>
    %70 = arith.mulf %69, %68 : vector<8x32xf32>
    %cst_43 = arith.constant 5.000000e-01 : f32
    %71 = vector.broadcast %cst_43 : f32 to vector<8x32xf32>
    %72 = arith.addf %70, %71 : vector<8x32xf32>
    %73 = vector.extract_strided_slice %33 {offsets = [0, 32], sizes = [8, 32], strides = [1, 1]} : vector<8x128xf32> to vector<8x32xf32>
    %cst_44 = arith.constant 5.000000e-01 : f32
    %74 = vector.broadcast %cst_44 : f32 to vector<8x32xf32>
    %75 = arith.mulf %74, %73 : vector<8x32xf32>
    %76 = math.tanh %75 : vector<8x32xf32>
    %cst_45 = arith.constant 5.000000e-01 : f32
    %77 = vector.broadcast %cst_45 : f32 to vector<8x32xf32>
    %78 = arith.mulf %77, %76 : vector<8x32xf32>
    %cst_46 = arith.constant 5.000000e-01 : f32
    %79 = vector.broadcast %cst_46 : f32 to vector<8x32xf32>
    %80 = arith.addf %78, %79 : vector<8x32xf32>
    %81 = vector.extract_strided_slice %33 {offsets = [0, 64], sizes = [8, 32], strides = [1, 1]} : vector<8x128xf32> to vector<8x32xf32>
    %82 = math.tanh %81 : vector<8x32xf32>
    %83 = vector.extract_strided_slice %33 {offsets = [0, 96], sizes = [8, 32], strides = [1, 1]} : vector<8x128xf32> to vector<8x32xf32>
    %cst_47 = arith.constant 5.000000e-01 : f32
    %84 = vector.broadcast %cst_47 : f32 to vector<8x32xf32>
    %85 = arith.mulf %84, %83 : vector<8x32xf32>
    %86 = math.tanh %85 : vector<8x32xf32>
    %cst_48 = arith.constant 5.000000e-01 : f32
    %87 = vector.broadcast %cst_48 : f32 to vector<8x32xf32>
    %88 = arith.mulf %87, %86 : vector<8x32xf32>
    %cst_49 = arith.constant 5.000000e-01 : f32
    %89 = vector.broadcast %cst_49 : f32 to vector<8x32xf32>
    %90 = arith.addf %88, %89 : vector<8x32xf32>
    %91 = arith.mulf %80, %0 : vector<8x32xf32>
    %92 = arith.mulf %72, %82 : vector<8x32xf32>
    %93 = arith.addf %91, %92 : vector<8x32xf32>
    %94 = math.tanh %93 : vector<8x32xf32>
    %95 = arith.mulf %90, %94 : vector<8x32xf32>
    %96 = arith.index_cast %c0_i32 : i32 to index
    %c0_50 = arith.constant 0 : index
    %c0_51 = arith.constant 0 : index
    %97 = vector.load %arg22[%96, %c0_50, %c0_51] : memref<8x8x32xf32, #tpu.memory_space<vmem>>, vector<1x8x32xf32>
    %98 = vector.shape_cast %97 : vector<1x8x32xf32> to vector<8x32xf32>
    %99 = vector.shape_cast %64 : vector<8x32xf32> to vector<1x8x32xf32>
    tpu.vector_store %arg22[%96, %c0_50, %c0_51], %99 {strides = array<i32>} : memref<8x8x32xf32, #tpu.memory_space<vmem>>, vector<1x8x32xf32>,
    %100 = arith.index_cast %21 : i32 to index
    %c0_52 = arith.constant 0 : index
    %c0_53 = arith.constant 0 : index
    %101 = vector.load %arg23[%100, %c0_52, %c0_53] : memref<8x8x32xf32, #tpu.memory_space<vmem>>, vector<1x8x32xf32>
    %102 = vector.shape_cast %101 : vector<1x8x32xf32> to vector<8x32xf32>
    %103 = vector.shape_cast %95 : vector<8x32xf32> to vector<1x8x32xf32>
    tpu.vector_store %arg23[%100, %c0_52, %c0_53], %103 {strides = array<i32>} : memref<8x8x32xf32, #tpu.memory_space<vmem>>, vector<1x8x32xf32>,
    %c1_i32 = arith.constant 1 : i32
    %c7_i32_54 = arith.constant 7 : i32
    %104 = arith.subi %c7_i32_54, %c1_i32 : i32
    %105 = arith.index_cast %c1_i32 : i32 to index
    %c0_55 = arith.constant 0 : index
    %c0_56 = arith.constant 0 : index
    %106 = vector.load %arg24[%105, %c0_55, %c0_56] : memref<8x8x128xf32, #tpu.memory_space<vmem>>, vector<1x8x128xf32>
    %107 = vector.shape_cast %106 : vector<1x8x128xf32> to vector<8x128xf32>
    %108 = arith.truncf %64 : vector<8x32xf32> to vector<8x32xbf16>
    %cst_57 = arith.constant dense<0.000000e+00> : vector<8x128xf32>
    %109 = tpu.matmul %108, %1, %cst_57 {dimension_numbers = #tpu.dot_dimension_numbers<[1], [0], [0], [1], [0, 0, 1, 1], [], []>} : vector<8x32xbf16>, vector<32x128xbf16>, vector<8x128xf32> -> vector<8x128xf32>
    %110 = arith.addf %107, %109 : vector<8x128xf32>
    %111 = arith.index_cast %104 : i32 to index
    %c0_58 = arith.constant 0 : index
    %c0_59 = arith.constant 0 : index
    %112 = vector.load %arg25[%111, %c0_58, %c0_59] : memref<8x8x128xf32, #tpu.memory_space<vmem>>, vector<1x8x128xf32>
    %113 = vector.shape_cast %112 : vector<1x8x128xf32> to vector<8x128xf32>
    %114 = arith.truncf %95 : vector<8x32xf32> to vector<8x32xbf16>
    %cst_60 = arith.constant dense<0.000000e+00> : vector<8x128xf32>
    %115 = tpu.matmul %114, %2, %cst_60 {dimension_numbers = #tpu.dot_dimension_numbers<[1], [0], [0], [1], [0, 0, 1, 1], [], []>} : vector<8x32xbf16>, vector<32x128xbf16>, vector<8x128xf32> -> vector<8x128xf32>
    %116 = arith.addf %113, %115 : vector<8x128xf32>
    %117 = vector.extract_strided_slice %110 {offsets = [0, 0], sizes = [8, 32], strides = [1, 1]} : vector<8x128xf32> to vector<8x32xf32>
    %cst_61 = arith.constant 5.000000e-01 : f32
    %118 = vector.broadcast %cst_61 : f32 to vector<8x32xf32>
    %119 = arith.mulf %118, %117 : vector<8x32xf32>
    %120 = math.tanh %119 : vector<8x32xf32>
    %cst_62 = arith.constant 5.000000e-01 : f32
    %121 = vector.broadcast %cst_62 : f32 to vector<8x32xf32>
    %122 = arith.mulf %121, %120 : vector<8x32xf32>
    %cst_63 = arith.constant 5.000000e-01 : f32
    %123 = vector.broadcast %cst_63 : f32 to vector<8x32xf32>
    %124 = arith.addf %122, %123 : vector<8x32xf32>
    %125 = vector.extract_strided_slice %110 {offsets = [0, 32], sizes = [8, 32], strides = [1, 1]} : vector<8x128xf32> to vector<8x32xf32>
    %cst_64 = arith.constant 5.000000e-01 : f32
    %126 = vector.broadcast %cst_64 : f32 to vector<8x32xf32>
    %127 = arith.mulf %126, %125 : vector<8x32xf32>
    %128 = math.tanh %127 : vector<8x32xf32>
    %cst_65 = arith.constant 5.000000e-01 : f32
    %129 = vector.broadcast %cst_65 : f32 to vector<8x32xf32>
    %130 = arith.mulf %129, %128 : vector<8x32xf32>
    %cst_66 = arith.constant 5.000000e-01 : f32
    %131 = vector.broadcast %cst_66 : f32 to vector<8x32xf32>
    %132 = arith.addf %130, %131 : vector<8x32xf32>
    %133 = vector.extract_strided_slice %110 {offsets = [0, 64], sizes = [8, 32], strides = [1, 1]} : vector<8x128xf32> to vector<8x32xf32>
    %134 = math.tanh %133 : vector<8x32xf32>
    %135 = vector.extract_strided_slice %110 {offsets = [0, 96], sizes = [8, 32], strides = [1, 1]} : vector<8x128xf32> to vector<8x32xf32>
    %cst_67 = arith.constant 5.000000e-01 : f32
    %136 = vector.broadcast %cst_67 : f32 to vector<8x32xf32>
    %137 = arith.mulf %136, %135 : vector<8x32xf32>
    %138 = math.tanh %137 : vector<8x32xf32>
    %cst_68 = arith.constant 5.000000e-01 : f32
    %139 = vector.broadcast %cst_68 : f32 to vector<8x32xf32>
    %140 = arith.mulf %139, %138 : vector<8x32xf32>
    %cst_69 = arith.constant 5.000000e-01 : f32
    %141 = vector.broadcast %cst_69 : f32 to vector<8x32xf32>
    %142 = arith.addf %140, %141 : vector<8x32xf32>
    %143 = arith.mulf %132, %62 : vector<8x32xf32>
    %144 = arith.mulf %124, %134 : vector<8x32xf32>
    %145 = arith.addf %143, %144 : vector<8x32xf32>
    %146 = math.tanh %145 : vector<8x32xf32>
    %147 = arith.mulf %142, %146 : vector<8x32xf32>
    %148 = vector.extract_strided_slice %116 {offsets = [0, 0], sizes = [8, 32], strides = [1, 1]} : vector<8x128xf32> to vector<8x32xf32>
    %cst_70 = arith.constant 5.000000e-01 : f32
    %149 = vector.broadcast %cst_70 : f32 to vector<8x32xf32>
    %150 = arith.mulf %149, %148 : vector<8x32xf32>
    %151 = math.tanh %150 : vector<8x32xf32>
    %cst_71 = arith.constant 5.000000e-01 : f32
    %152 = vector.broadcast %cst_71 : f32 to vector<8x32xf32>
    %153 = arith.mulf %152, %151 : vector<8x32xf32>
    %cst_72 = arith.constant 5.000000e-01 : f32
    %154 = vector.broadcast %cst_72 : f32 to vector<8x32xf32>
    %155 = arith.addf %153, %154 : vector<8x32xf32>
    %156 = vector.extract_strided_slice %116 {offsets = [0, 32], sizes = [8, 32], strides = [1, 1]} : vector<8x128xf32> to vector<8x32xf32>
    %cst_73 = arith.constant 5.000000e-01 : f32
    %157 = vector.broadcast %cst_73 : f32 to vector<8x32xf32>
    %158 = arith.mulf %157, %156 : vector<8x32xf32>
    %159 = math.tanh %158 : vector<8x32xf32>
    %cst_74 = arith.constant 5.000000e-01 : f32
    %160 = vector.broadcast %cst_74 : f32 to vector<8x32xf32>
    %161 = arith.mulf %160, %159 : vector<8x32xf32>
    %cst_75 = arith.constant 5.000000e-01 : f32
    %162 = vector.broadcast %cst_75 : f32 to vector<8x32xf32>
    %163 = arith.addf %161, %162 : vector<8x32xf32>
    %164 = vector.extract_strided_slice %116 {offsets = [0, 64], sizes = [8, 32], strides = [1, 1]} : vector<8x128xf32> to vector<8x32xf32>
    %165 = math.tanh %164 : vector<8x32xf32>
    %166 = vector.extract_strided_slice %116 {offsets = [0, 96], sizes = [8, 32], strides = [1, 1]} : vector<8x128xf32> to vector<8x32xf32>
    %cst_76 = arith.constant 5.000000e-01 : f32
    %167 = vector.broadcast %cst_76 : f32 to vector<8x32xf32>
    %168 = arith.mulf %167, %166 : vector<8x32xf32>
    %169 = math.tanh %168 : vector<8x32xf32>
    %cst_77 = arith.constant 5.000000e-01 : f32
    %170 = vector.broadcast %cst_77 : f32 to vector<8x32xf32>
    %171 = arith.mulf %170, %169 : vector<8x32xf32>
    %cst_78 = arith.constant 5.000000e-01 : f32
    %172 = vector.broadcast %cst_78 : f32 to vector<8x32xf32>
    %173 = arith.addf %171, %172 : vector<8x32xf32>
    %174 = arith.mulf %163, %93 : vector<8x32xf32>
    %175 = arith.mulf %155, %165 : vector<8x32xf32>
    %176 = arith.addf %174, %175 : vector<8x32xf32>
    %177 = math.tanh %176 : vector<8x32xf32>
    %178 = arith.mulf %173, %177 : vector<8x32xf32>
    %179 = arith.index_cast %c1_i32 : i32 to index
    %c0_79 = arith.constant 0 : index
    %c0_80 = arith.constant 0 : index
    %180 = vector.load %arg22[%179, %c0_79, %c0_80] : memref<8x8x32xf32, #tpu.memory_space<vmem>>, vector<1x8x32xf32>
    %181 = vector.shape_cast %180 : vector<1x8x32xf32> to vector<8x32xf32>
    %182 = vector.shape_cast %147 : vector<8x32xf32> to vector<1x8x32xf32>
    tpu.vector_store %arg22[%179, %c0_79, %c0_80], %182 {strides = array<i32>} : memref<8x8x32xf32, #tpu.memory_space<vmem>>, vector<1x8x32xf32>,
    %183 = arith.index_cast %104 : i32 to index
    %c0_81 = arith.constant 0 : index
    %c0_82 = arith.constant 0 : index
    %184 = vector.load %arg23[%183, %c0_81, %c0_82] : memref<8x8x32xf32, #tpu.memory_space<vmem>>, vector<1x8x32xf32>
    %185 = vector.shape_cast %184 : vector<1x8x32xf32> to vector<8x32xf32>
    %186 = vector.shape_cast %178 : vector<8x32xf32> to vector<1x8x32xf32>
    tpu.vector_store %arg23[%183, %c0_81, %c0_82], %186 {strides = array<i32>} : memref<8x8x32xf32, #tpu.memory_space<vmem>>, vector<1x8x32xf32>,
    %c2_i32 = arith.constant 2 : i32
    %c7_i32_83 = arith.constant 7 : i32
    %187 = arith.subi %c7_i32_83, %c2_i32 : i32
    %188 = arith.index_cast %c2_i32 : i32 to index
    %c0_84 = arith.constant 0 : index
    %c0_85 = arith.constant 0 : index
    %189 = vector.load %arg24[%188, %c0_84, %c0_85] : memref<8x8x128xf32, #tpu.memory_space<vmem>>, vector<1x8x128xf32>
    %190 = vector.shape_cast %189 : vector<1x8x128xf32> to vector<8x128xf32>
    %191 = arith.truncf %147 : vector<8x32xf32> to vector<8x32xbf16>
    %cst_86 = arith.constant dense<0.000000e+00> : vector<8x128xf32>
    %192 = tpu.matmul %191, %1, %cst_86 {dimension_numbers = #tpu.dot_dimension_numbers<[1], [0], [0], [1], [0, 0, 1, 1], [], []>} : vector<8x32xbf16>, vector<32x128xbf16>, vector<8x128xf32> -> vector<8x128xf32>
    %193 = arith.addf %190, %192 : vector<8x128xf32>
    %194 = arith.index_cast %187 : i32 to index
    %c0_87 = arith.constant 0 : index
    %c0_88 = arith.constant 0 : index
    %195 = vector.load %arg25[%194, %c0_87, %c0_88] : memref<8x8x128xf32, #tpu.memory_space<vmem>>, vector<1x8x128xf32>
    %196 = vector.shape_cast %195 : vector<1x8x128xf32> to vector<8x128xf32>
    %197 = arith.truncf %178 : vector<8x32xf32> to vector<8x32xbf16>
    %cst_89 = arith.constant dense<0.000000e+00> : vector<8x128xf32>
    %198 = tpu.matmul %197, %2, %cst_89 {dimension_numbers = #tpu.dot_dimension_numbers<[1], [0], [0], [1], [0, 0, 1, 1], [], []>} : vector<8x32xbf16>, vector<32x128xbf16>, vector<8x128xf32> -> vector<8x128xf32>
    %199 = arith.addf %196, %198 : vector<8x128xf32>
    %200 = vector.extract_strided_slice %193 {offsets = [0, 0], sizes = [8, 32], strides = [1, 1]} : vector<8x128xf32> to vector<8x32xf32>
    %cst_90 = arith.constant 5.000000e-01 : f32
    %201 = vector.broadcast %cst_90 : f32 to vector<8x32xf32>
    %202 = arith.mulf %201, %200 : vector<8x32xf32>
    %203 = math.tanh %202 : vector<8x32xf32>
    %cst_91 = arith.constant 5.000000e-01 : f32
    %204 = vector.broadcast %cst_91 : f32 to vector<8x32xf32>
    %205 = arith.mulf %204, %203 : vector<8x32xf32>
    %cst_92 = arith.constant 5.000000e-01 : f32
    %206 = vector.broadcast %cst_92 : f32 to vector<8x32xf32>
    %207 = arith.addf %205, %206 : vector<8x32xf32>
    %208 = vector.extract_strided_slice %193 {offsets = [0, 32], sizes = [8, 32], strides = [1, 1]} : vector<8x128xf32> to vector<8x32xf32>
    %cst_93 = arith.constant 5.000000e-01 : f32
    %209 = vector.broadcast %cst_93 : f32 to vector<8x32xf32>
    %210 = arith.mulf %209, %208 : vector<8x32xf32>
    %211 = math.tanh %210 : vector<8x32xf32>
    %cst_94 = arith.constant 5.000000e-01 : f32
    %212 = vector.broadcast %cst_94 : f32 to vector<8x32xf32>
    %213 = arith.mulf %212, %211 : vector<8x32xf32>
    %cst_95 = arith.constant 5.000000e-01 : f32
    %214 = vector.broadcast %cst_95 : f32 to vector<8x32xf32>
    %215 = arith.addf %213, %214 : vector<8x32xf32>
    %216 = vector.extract_strided_slice %193 {offsets = [0, 64], sizes = [8, 32], strides = [1, 1]} : vector<8x128xf32> to vector<8x32xf32>
    %217 = math.tanh %216 : vector<8x32xf32>
    %218 = vector.extract_strided_slice %193 {offsets = [0, 96], sizes = [8, 32], strides = [1, 1]} : vector<8x128xf32> to vector<8x32xf32>
    %cst_96 = arith.constant 5.000000e-01 : f32
    %219 = vector.broadcast %cst_96 : f32 to vector<8x32xf32>
    %220 = arith.mulf %219, %218 : vector<8x32xf32>
    %221 = math.tanh %220 : vector<8x32xf32>
    %cst_97 = arith.constant 5.000000e-01 : f32
    %222 = vector.broadcast %cst_97 : f32 to vector<8x32xf32>
    %223 = arith.mulf %222, %221 : vector<8x32xf32>
    %cst_98 = arith.constant 5.000000e-01 : f32
    %224 = vector.broadcast %cst_98 : f32 to vector<8x32xf32>
    %225 = arith.addf %223, %224 : vector<8x32xf32>
    %226 = arith.mulf %215, %145 : vector<8x32xf32>
    %227 = arith.mulf %207, %217 : vector<8x32xf32>
    %228 = arith.addf %226, %227 : vector<8x32xf32>
    %229 = math.tanh %228 : vector<8x32xf32>
    %230 = arith.mulf %225, %229 : vector<8x32xf32>
    %231 = vector.extract_strided_slice %199 {offsets = [0, 0], sizes = [8, 32], strides = [1, 1]} : vector<8x128xf32> to vector<8x32xf32>
    %cst_99 = arith.constant 5.000000e-01 : f32
    %232 = vector.broadcast %cst_99 : f32 to vector<8x32xf32>
    %233 = arith.mulf %232, %231 : vector<8x32xf32>
    %234 = math.tanh %233 : vector<8x32xf32>
    %cst_100 = arith.constant 5.000000e-01 : f32
    %235 = vector.broadcast %cst_100 : f32 to vector<8x32xf32>
    %236 = arith.mulf %235, %234 : vector<8x32xf32>
    %cst_101 = arith.constant 5.000000e-01 : f32
    %237 = vector.broadcast %cst_101 : f32 to vector<8x32xf32>
    %238 = arith.addf %236, %237 : vector<8x32xf32>
    %239 = vector.extract_strided_slice %199 {offsets = [0, 32], sizes = [8, 32], strides = [1, 1]} : vector<8x128xf32> to vector<8x32xf32>
    %cst_102 = arith.constant 5.000000e-01 : f32
    %240 = vector.broadcast %cst_102 : f32 to vector<8x32xf32>
    %241 = arith.mulf %240, %239 : vector<8x32xf32>
    %242 = math.tanh %241 : vector<8x32xf32>
    %cst_103 = arith.constant 5.000000e-01 : f32
    %243 = vector.broadcast %cst_103 : f32 to vector<8x32xf32>
    %244 = arith.mulf %243, %242 : vector<8x32xf32>
    %cst_104 = arith.constant 5.000000e-01 : f32
    %245 = vector.broadcast %cst_104 : f32 to vector<8x32xf32>
    %246 = arith.addf %244, %245 : vector<8x32xf32>
    %247 = vector.extract_strided_slice %199 {offsets = [0, 64], sizes = [8, 32], strides = [1, 1]} : vector<8x128xf32> to vector<8x32xf32>
    %248 = math.tanh %247 : vector<8x32xf32>
    %249 = vector.extract_strided_slice %199 {offsets = [0, 96], sizes = [8, 32], strides = [1, 1]} : vector<8x128xf32> to vector<8x32xf32>
    %cst_105 = arith.constant 5.000000e-01 : f32
    %250 = vector.broadcast %cst_105 : f32 to vector<8x32xf32>
    %251 = arith.mulf %250, %249 : vector<8x32xf32>
    %252 = math.tanh %251 : vector<8x32xf32>
    %cst_106 = arith.constant 5.000000e-01 : f32
    %253 = vector.broadcast %cst_106 : f32 to vector<8x32xf32>
    %254 = arith.mulf %253, %252 : vector<8x32xf32>
    %cst_107 = arith.constant 5.000000e-01 : f32
    %255 = vector.broadcast %cst_107 : f32 to vector<8x32xf32>
    %256 = arith.addf %254, %255 : vector<8x32xf32>
    %257 = arith.mulf %246, %176 : vector<8x32xf32>
    %258 = arith.mulf %238, %248 : vector<8x32xf32>
    %259 = arith.addf %257, %258 : vector<8x32xf32>
    %260 = math.tanh %259 : vector<8x32xf32>
    %261 = arith.mulf %256, %260 : vector<8x32xf32>
    %262 = arith.index_cast %c2_i32 : i32 to index
    %c0_108 = arith.constant 0 : index
    %c0_109 = arith.constant 0 : index
    %263 = vector.load %arg22[%262, %c0_108, %c0_109] : memref<8x8x32xf32, #tpu.memory_space<vmem>>, vector<1x8x32xf32>
    %264 = vector.shape_cast %263 : vector<1x8x32xf32> to vector<8x32xf32>
    %265 = vector.shape_cast %230 : vector<8x32xf32> to vector<1x8x32xf32>
    tpu.vector_store %arg22[%262, %c0_108, %c0_109], %265 {strides = array<i32>} : memref<8x8x32xf32, #tpu.memory_space<vmem>>, vector<1x8x32xf32>,
    %266 = arith.index_cast %187 : i32 to index
    %c0_110 = arith.constant 0 : index
    %c0_111 = arith.constant 0 : index
    %267 = vector.load %arg23[%266, %c0_110, %c0_111] : memref<8x8x32xf32, #tpu.memory_space<vmem>>, vector<1x8x32xf32>
    %268 = vector.shape_cast %267 : vector<1x8x32xf32> to vector<8x32xf32>
    %269 = vector.shape_cast %261 : vector<8x32xf32> to vector<1x8x32xf32>
    tpu.vector_store %arg23[%266, %c0_110, %c0_111], %269 {strides = array<i32>} : memref<8x8x32xf32, #tpu.memory_space<vmem>>, vector<1x8x32xf32>,
    %c3_i32 = arith.constant 3 : i32
    %c7_i32_112 = arith.constant 7 : i32
    %270 = arith.subi %c7_i32_112, %c3_i32 : i32
    %271 = arith.index_cast %c3_i32 : i32 to index
    %c0_113 = arith.constant 0 : index
    %c0_114 = arith.constant 0 : index
    %272 = vector.load %arg24[%271, %c0_113, %c0_114] : memref<8x8x128xf32, #tpu.memory_space<vmem>>, vector<1x8x128xf32>
    %273 = vector.shape_cast %272 : vector<1x8x128xf32> to vector<8x128xf32>
    %274 = arith.truncf %230 : vector<8x32xf32> to vector<8x32xbf16>
    %cst_115 = arith.constant dense<0.000000e+00> : vector<8x128xf32>
    %275 = tpu.matmul %274, %1, %cst_115 {dimension_numbers = #tpu.dot_dimension_numbers<[1], [0], [0], [1], [0, 0, 1, 1], [], []>} : vector<8x32xbf16>, vector<32x128xbf16>, vector<8x128xf32> -> vector<8x128xf32>
    %276 = arith.addf %273, %275 : vector<8x128xf32>
    %277 = arith.index_cast %270 : i32 to index
    %c0_116 = arith.constant 0 : index
    %c0_117 = arith.constant 0 : index
    %278 = vector.load %arg25[%277, %c0_116, %c0_117] : memref<8x8x128xf32, #tpu.memory_space<vmem>>, vector<1x8x128xf32>
    %279 = vector.shape_cast %278 : vector<1x8x128xf32> to vector<8x128xf32>
    %280 = arith.truncf %261 : vector<8x32xf32> to vector<8x32xbf16>
    %cst_118 = arith.constant dense<0.000000e+00> : vector<8x128xf32>
    %281 = tpu.matmul %280, %2, %cst_118 {dimension_numbers = #tpu.dot_dimension_numbers<[1], [0], [0], [1], [0, 0, 1, 1], [], []>} : vector<8x32xbf16>, vector<32x128xbf16>, vector<8x128xf32> -> vector<8x128xf32>
    %282 = arith.addf %279, %281 : vector<8x128xf32>
    %283 = vector.extract_strided_slice %276 {offsets = [0, 0], sizes = [8, 32], strides = [1, 1]} : vector<8x128xf32> to vector<8x32xf32>
    %cst_119 = arith.constant 5.000000e-01 : f32
    %284 = vector.broadcast %cst_119 : f32 to vector<8x32xf32>
    %285 = arith.mulf %284, %283 : vector<8x32xf32>
    %286 = math.tanh %285 : vector<8x32xf32>
    %cst_120 = arith.constant 5.000000e-01 : f32
    %287 = vector.broadcast %cst_120 : f32 to vector<8x32xf32>
    %288 = arith.mulf %287, %286 : vector<8x32xf32>
    %cst_121 = arith.constant 5.000000e-01 : f32
    %289 = vector.broadcast %cst_121 : f32 to vector<8x32xf32>
    %290 = arith.addf %288, %289 : vector<8x32xf32>
    %291 = vector.extract_strided_slice %276 {offsets = [0, 32], sizes = [8, 32], strides = [1, 1]} : vector<8x128xf32> to vector<8x32xf32>
    %cst_122 = arith.constant 5.000000e-01 : f32
    %292 = vector.broadcast %cst_122 : f32 to vector<8x32xf32>
    %293 = arith.mulf %292, %291 : vector<8x32xf32>
    %294 = math.tanh %293 : vector<8x32xf32>
    %cst_123 = arith.constant 5.000000e-01 : f32
    %295 = vector.broadcast %cst_123 : f32 to vector<8x32xf32>
    %296 = arith.mulf %295, %294 : vector<8x32xf32>
    %cst_124 = arith.constant 5.000000e-01 : f32
    %297 = vector.broadcast %cst_124 : f32 to vector<8x32xf32>
    %298 = arith.addf %296, %297 : vector<8x32xf32>
    %299 = vector.extract_strided_slice %276 {offsets = [0, 64], sizes = [8, 32], strides = [1, 1]} : vector<8x128xf32> to vector<8x32xf32>
    %300 = math.tanh %299 : vector<8x32xf32>
    %301 = vector.extract_strided_slice %276 {offsets = [0, 96], sizes = [8, 32], strides = [1, 1]} : vector<8x128xf32> to vector<8x32xf32>
    %cst_125 = arith.constant 5.000000e-01 : f32
    %302 = vector.broadcast %cst_125 : f32 to vector<8x32xf32>
    %303 = arith.mulf %302, %301 : vector<8x32xf32>
    %304 = math.tanh %303 : vector<8x32xf32>
    %cst_126 = arith.constant 5.000000e-01 : f32
    %305 = vector.broadcast %cst_126 : f32 to vector<8x32xf32>
    %306 = arith.mulf %305, %304 : vector<8x32xf32>
    %cst_127 = arith.constant 5.000000e-01 : f32
    %307 = vector.broadcast %cst_127 : f32 to vector<8x32xf32>
    %308 = arith.addf %306, %307 : vector<8x32xf32>
    %309 = arith.mulf %298, %228 : vector<8x32xf32>
    %310 = arith.mulf %290, %300 : vector<8x32xf32>
    %311 = arith.addf %309, %310 : vector<8x32xf32>
    %312 = math.tanh %311 : vector<8x32xf32>
    %313 = arith.mulf %308, %312 : vector<8x32xf32>
    %314 = vector.extract_strided_slice %282 {offsets = [0, 0], sizes = [8, 32], strides = [1, 1]} : vector<8x128xf32> to vector<8x32xf32>
    %cst_128 = arith.constant 5.000000e-01 : f32
    %315 = vector.broadcast %cst_128 : f32 to vector<8x32xf32>
    %316 = arith.mulf %315, %314 : vector<8x32xf32>
    %317 = math.tanh %316 : vector<8x32xf32>
    %cst_129 = arith.constant 5.000000e-01 : f32
    %318 = vector.broadcast %cst_129 : f32 to vector<8x32xf32>
    %319 = arith.mulf %318, %317 : vector<8x32xf32>
    %cst_130 = arith.constant 5.000000e-01 : f32
    %320 = vector.broadcast %cst_130 : f32 to vector<8x32xf32>
    %321 = arith.addf %319, %320 : vector<8x32xf32>
    %322 = vector.extract_strided_slice %282 {offsets = [0, 32], sizes = [8, 32], strides = [1, 1]} : vector<8x128xf32> to vector<8x32xf32>
    %cst_131 = arith.constant 5.000000e-01 : f32
    %323 = vector.broadcast %cst_131 : f32 to vector<8x32xf32>
    %324 = arith.mulf %323, %322 : vector<8x32xf32>
    %325 = math.tanh %324 : vector<8x32xf32>
    %cst_132 = arith.constant 5.000000e-01 : f32
    %326 = vector.broadcast %cst_132 : f32 to vector<8x32xf32>
    %327 = arith.mulf %326, %325 : vector<8x32xf32>
    %cst_133 = arith.constant 5.000000e-01 : f32
    %328 = vector.broadcast %cst_133 : f32 to vector<8x32xf32>
    %329 = arith.addf %327, %328 : vector<8x32xf32>
    %330 = vector.extract_strided_slice %282 {offsets = [0, 64], sizes = [8, 32], strides = [1, 1]} : vector<8x128xf32> to vector<8x32xf32>
    %331 = math.tanh %330 : vector<8x32xf32>
    %332 = vector.extract_strided_slice %282 {offsets = [0, 96], sizes = [8, 32], strides = [1, 1]} : vector<8x128xf32> to vector<8x32xf32>
    %cst_134 = arith.constant 5.000000e-01 : f32
    %333 = vector.broadcast %cst_134 : f32 to vector<8x32xf32>
    %334 = arith.mulf %333, %332 : vector<8x32xf32>
    %335 = math.tanh %334 : vector<8x32xf32>
    %cst_135 = arith.constant 5.000000e-01 : f32
    %336 = vector.broadcast %cst_135 : f32 to vector<8x32xf32>
    %337 = arith.mulf %336, %335 : vector<8x32xf32>
    %cst_136 = arith.constant 5.000000e-01 : f32
    %338 = vector.broadcast %cst_136 : f32 to vector<8x32xf32>
    %339 = arith.addf %337, %338 : vector<8x32xf32>
    %340 = arith.mulf %329, %259 : vector<8x32xf32>
    %341 = arith.mulf %321, %331 : vector<8x32xf32>
    %342 = arith.addf %340, %341 : vector<8x32xf32>
    %343 = math.tanh %342 : vector<8x32xf32>
    %344 = arith.mulf %339, %343 : vector<8x32xf32>
    %345 = arith.index_cast %c3_i32 : i32 to index
    %c0_137 = arith.constant 0 : index
    %c0_138 = arith.constant 0 : index
    %346 = vector.load %arg22[%345, %c0_137, %c0_138] : memref<8x8x32xf32, #tpu.memory_space<vmem>>, vector<1x8x32xf32>
    %347 = vector.shape_cast %346 : vector<1x8x32xf32> to vector<8x32xf32>
    %348 = vector.shape_cast %313 : vector<8x32xf32> to vector<1x8x32xf32>
    tpu.vector_store %arg22[%345, %c0_137, %c0_138], %348 {strides = array<i32>} : memref<8x8x32xf32, #tpu.memory_space<vmem>>, vector<1x8x32xf32>,
    %349 = arith.index_cast %270 : i32 to index
    %c0_139 = arith.constant 0 : index
    %c0_140 = arith.constant 0 : index
    %350 = vector.load %arg23[%349, %c0_139, %c0_140] : memref<8x8x32xf32, #tpu.memory_space<vmem>>, vector<1x8x32xf32>
    %351 = vector.shape_cast %350 : vector<1x8x32xf32> to vector<8x32xf32>
    %352 = vector.shape_cast %344 : vector<8x32xf32> to vector<1x8x32xf32>
    tpu.vector_store %arg23[%349, %c0_139, %c0_140], %352 {strides = array<i32>} : memref<8x8x32xf32, #tpu.memory_space<vmem>>, vector<1x8x32xf32>,
    %c4_i32 = arith.constant 4 : i32
    %c7_i32_141 = arith.constant 7 : i32
    %353 = arith.subi %c7_i32_141, %c4_i32 : i32
    %354 = arith.index_cast %c4_i32 : i32 to index
    %c0_142 = arith.constant 0 : index
    %c0_143 = arith.constant 0 : index
    %355 = vector.load %arg24[%354, %c0_142, %c0_143] : memref<8x8x128xf32, #tpu.memory_space<vmem>>, vector<1x8x128xf32>
    %356 = vector.shape_cast %355 : vector<1x8x128xf32> to vector<8x128xf32>
    %357 = arith.truncf %313 : vector<8x32xf32> to vector<8x32xbf16>
    %cst_144 = arith.constant dense<0.000000e+00> : vector<8x128xf32>
    %358 = tpu.matmul %357, %1, %cst_144 {dimension_numbers = #tpu.dot_dimension_numbers<[1], [0], [0], [1], [0, 0, 1, 1], [], []>} : vector<8x32xbf16>, vector<32x128xbf16>, vector<8x128xf32> -> vector<8x128xf32>
    %359 = arith.addf %356, %358 : vector<8x128xf32>
    %360 = arith.index_cast %353 : i32 to index
    %c0_145 = arith.constant 0 : index
    %c0_146 = arith.constant 0 : index
    %361 = vector.load %arg25[%360, %c0_145, %c0_146] : memref<8x8x128xf32, #tpu.memory_space<vmem>>, vector<1x8x128xf32>
    %362 = vector.shape_cast %361 : vector<1x8x128xf32> to vector<8x128xf32>
    %363 = arith.truncf %344 : vector<8x32xf32> to vector<8x32xbf16>
    %cst_147 = arith.constant dense<0.000000e+00> : vector<8x128xf32>
    %364 = tpu.matmul %363, %2, %cst_147 {dimension_numbers = #tpu.dot_dimension_numbers<[1], [0], [0], [1], [0, 0, 1, 1], [], []>} : vector<8x32xbf16>, vector<32x128xbf16>, vector<8x128xf32> -> vector<8x128xf32>
    %365 = arith.addf %362, %364 : vector<8x128xf32>
    %366 = vector.extract_strided_slice %359 {offsets = [0, 0], sizes = [8, 32], strides = [1, 1]} : vector<8x128xf32> to vector<8x32xf32>
    %cst_148 = arith.constant 5.000000e-01 : f32
    %367 = vector.broadcast %cst_148 : f32 to vector<8x32xf32>
    %368 = arith.mulf %367, %366 : vector<8x32xf32>
    %369 = math.tanh %368 : vector<8x32xf32>
    %cst_149 = arith.constant 5.000000e-01 : f32
    %370 = vector.broadcast %cst_149 : f32 to vector<8x32xf32>
    %371 = arith.mulf %370, %369 : vector<8x32xf32>
    %cst_150 = arith.constant 5.000000e-01 : f32
    %372 = vector.broadcast %cst_150 : f32 to vector<8x32xf32>
    %373 = arith.addf %371, %372 : vector<8x32xf32>
    %374 = vector.extract_strided_slice %359 {offsets = [0, 32], sizes = [8, 32], strides = [1, 1]} : vector<8x128xf32> to vector<8x32xf32>
    %cst_151 = arith.constant 5.000000e-01 : f32
    %375 = vector.broadcast %cst_151 : f32 to vector<8x32xf32>
    %376 = arith.mulf %375, %374 : vector<8x32xf32>
    %377 = math.tanh %376 : vector<8x32xf32>
    %cst_152 = arith.constant 5.000000e-01 : f32
    %378 = vector.broadcast %cst_152 : f32 to vector<8x32xf32>
    %379 = arith.mulf %378, %377 : vector<8x32xf32>
    %cst_153 = arith.constant 5.000000e-01 : f32
    %380 = vector.broadcast %cst_153 : f32 to vector<8x32xf32>
    %381 = arith.addf %379, %380 : vector<8x32xf32>
    %382 = vector.extract_strided_slice %359 {offsets = [0, 64], sizes = [8, 32], strides = [1, 1]} : vector<8x128xf32> to vector<8x32xf32>
    %383 = math.tanh %382 : vector<8x32xf32>
    %384 = vector.extract_strided_slice %359 {offsets = [0, 96], sizes = [8, 32], strides = [1, 1]} : vector<8x128xf32> to vector<8x32xf32>
    %cst_154 = arith.constant 5.000000e-01 : f32
    %385 = vector.broadcast %cst_154 : f32 to vector<8x32xf32>
    %386 = arith.mulf %385, %384 : vector<8x32xf32>
    %387 = math.tanh %386 : vector<8x32xf32>
    %cst_155 = arith.constant 5.000000e-01 : f32
    %388 = vector.broadcast %cst_155 : f32 to vector<8x32xf32>
    %389 = arith.mulf %388, %387 : vector<8x32xf32>
    %cst_156 = arith.constant 5.000000e-01 : f32
    %390 = vector.broadcast %cst_156 : f32 to vector<8x32xf32>
    %391 = arith.addf %389, %390 : vector<8x32xf32>
    %392 = arith.mulf %381, %311 : vector<8x32xf32>
    %393 = arith.mulf %373, %383 : vector<8x32xf32>
    %394 = arith.addf %392, %393 : vector<8x32xf32>
    %395 = math.tanh %394 : vector<8x32xf32>
    %396 = arith.mulf %391, %395 : vector<8x32xf32>
    %397 = vector.extract_strided_slice %365 {offsets = [0, 0], sizes = [8, 32], strides = [1, 1]} : vector<8x128xf32> to vector<8x32xf32>
    %cst_157 = arith.constant 5.000000e-01 : f32
    %398 = vector.broadcast %cst_157 : f32 to vector<8x32xf32>
    %399 = arith.mulf %398, %397 : vector<8x32xf32>
    %400 = math.tanh %399 : vector<8x32xf32>
    %cst_158 = arith.constant 5.000000e-01 : f32
    %401 = vector.broadcast %cst_158 : f32 to vector<8x32xf32>
    %402 = arith.mulf %401, %400 : vector<8x32xf32>
    %cst_159 = arith.constant 5.000000e-01 : f32
    %403 = vector.broadcast %cst_159 : f32 to vector<8x32xf32>
    %404 = arith.addf %402, %403 : vector<8x32xf32>
    %405 = vector.extract_strided_slice %365 {offsets = [0, 32], sizes = [8, 32], strides = [1, 1]} : vector<8x128xf32> to vector<8x32xf32>
    %cst_160 = arith.constant 5.000000e-01 : f32
    %406 = vector.broadcast %cst_160 : f32 to vector<8x32xf32>
    %407 = arith.mulf %406, %405 : vector<8x32xf32>
    %408 = math.tanh %407 : vector<8x32xf32>
    %cst_161 = arith.constant 5.000000e-01 : f32
    %409 = vector.broadcast %cst_161 : f32 to vector<8x32xf32>
    %410 = arith.mulf %409, %408 : vector<8x32xf32>
    %cst_162 = arith.constant 5.000000e-01 : f32
    %411 = vector.broadcast %cst_162 : f32 to vector<8x32xf32>
    %412 = arith.addf %410, %411 : vector<8x32xf32>
    %413 = vector.extract_strided_slice %365 {offsets = [0, 64], sizes = [8, 32], strides = [1, 1]} : vector<8x128xf32> to vector<8x32xf32>
    %414 = math.tanh %413 : vector<8x32xf32>
    %415 = vector.extract_strided_slice %365 {offsets = [0, 96], sizes = [8, 32], strides = [1, 1]} : vector<8x128xf32> to vector<8x32xf32>
    %cst_163 = arith.constant 5.000000e-01 : f32
    %416 = vector.broadcast %cst_163 : f32 to vector<8x32xf32>
    %417 = arith.mulf %416, %415 : vector<8x32xf32>
    %418 = math.tanh %417 : vector<8x32xf32>
    %cst_164 = arith.constant 5.000000e-01 : f32
    %419 = vector.broadcast %cst_164 : f32 to vector<8x32xf32>
    %420 = arith.mulf %419, %418 : vector<8x32xf32>
    %cst_165 = arith.constant 5.000000e-01 : f32
    %421 = vector.broadcast %cst_165 : f32 to vector<8x32xf32>
    %422 = arith.addf %420, %421 : vector<8x32xf32>
    %423 = arith.mulf %412, %342 : vector<8x32xf32>
    %424 = arith.mulf %404, %414 : vector<8x32xf32>
    %425 = arith.addf %423, %424 : vector<8x32xf32>
    %426 = math.tanh %425 : vector<8x32xf32>
    %427 = arith.mulf %422, %426 : vector<8x32xf32>
    %428 = arith.index_cast %c4_i32 : i32 to index
    %c0_166 = arith.constant 0 : index
    %c0_167 = arith.constant 0 : index
    %429 = vector.load %arg22[%428, %c0_166, %c0_167] : memref<8x8x32xf32, #tpu.memory_space<vmem>>, vector<1x8x32xf32>
    %430 = vector.shape_cast %429 : vector<1x8x32xf32> to vector<8x32xf32>
    %431 = vector.shape_cast %396 : vector<8x32xf32> to vector<1x8x32xf32>
    tpu.vector_store %arg22[%428, %c0_166, %c0_167], %431 {strides = array<i32>} : memref<8x8x32xf32, #tpu.memory_space<vmem>>, vector<1x8x32xf32>,
    %432 = arith.index_cast %353 : i32 to index
    %c0_168 = arith.constant 0 : index
    %c0_169 = arith.constant 0 : index
    %433 = vector.load %arg23[%432, %c0_168, %c0_169] : memref<8x8x32xf32, #tpu.memory_space<vmem>>, vector<1x8x32xf32>
    %434 = vector.shape_cast %433 : vector<1x8x32xf32> to vector<8x32xf32>
    %435 = vector.shape_cast %427 : vector<8x32xf32> to vector<1x8x32xf32>
    tpu.vector_store %arg23[%432, %c0_168, %c0_169], %435 {strides = array<i32>} : memref<8x8x32xf32, #tpu.memory_space<vmem>>, vector<1x8x32xf32>,
    %c5_i32 = arith.constant 5 : i32
    %c7_i32_170 = arith.constant 7 : i32
    %436 = arith.subi %c7_i32_170, %c5_i32 : i32
    %437 = arith.index_cast %c5_i32 : i32 to index
    %c0_171 = arith.constant 0 : index
    %c0_172 = arith.constant 0 : index
    %438 = vector.load %arg24[%437, %c0_171, %c0_172] : memref<8x8x128xf32, #tpu.memory_space<vmem>>, vector<1x8x128xf32>
    %439 = vector.shape_cast %438 : vector<1x8x128xf32> to vector<8x128xf32>
    %440 = arith.truncf %396 : vector<8x32xf32> to vector<8x32xbf16>
    %cst_173 = arith.constant dense<0.000000e+00> : vector<8x128xf32>
    %441 = tpu.matmul %440, %1, %cst_173 {dimension_numbers = #tpu.dot_dimension_numbers<[1], [0], [0], [1], [0, 0, 1, 1], [], []>} : vector<8x32xbf16>, vector<32x128xbf16>, vector<8x128xf32> -> vector<8x128xf32>
    %442 = arith.addf %439, %441 : vector<8x128xf32>
    %443 = arith.index_cast %436 : i32 to index
    %c0_174 = arith.constant 0 : index
    %c0_175 = arith.constant 0 : index
    %444 = vector.load %arg25[%443, %c0_174, %c0_175] : memref<8x8x128xf32, #tpu.memory_space<vmem>>, vector<1x8x128xf32>
    %445 = vector.shape_cast %444 : vector<1x8x128xf32> to vector<8x128xf32>
    %446 = arith.truncf %427 : vector<8x32xf32> to vector<8x32xbf16>
    %cst_176 = arith.constant dense<0.000000e+00> : vector<8x128xf32>
    %447 = tpu.matmul %446, %2, %cst_176 {dimension_numbers = #tpu.dot_dimension_numbers<[1], [0], [0], [1], [0, 0, 1, 1], [], []>} : vector<8x32xbf16>, vector<32x128xbf16>, vector<8x128xf32> -> vector<8x128xf32>
    %448 = arith.addf %445, %447 : vector<8x128xf32>
    %449 = vector.extract_strided_slice %442 {offsets = [0, 0], sizes = [8, 32], strides = [1, 1]} : vector<8x128xf32> to vector<8x32xf32>
    %cst_177 = arith.constant 5.000000e-01 : f32
    %450 = vector.broadcast %cst_177 : f32 to vector<8x32xf32>
    %451 = arith.mulf %450, %449 : vector<8x32xf32>
    %452 = math.tanh %451 : vector<8x32xf32>
    %cst_178 = arith.constant 5.000000e-01 : f32
    %453 = vector.broadcast %cst_178 : f32 to vector<8x32xf32>
    %454 = arith.mulf %453, %452 : vector<8x32xf32>
    %cst_179 = arith.constant 5.000000e-01 : f32
    %455 = vector.broadcast %cst_179 : f32 to vector<8x32xf32>
    %456 = arith.addf %454, %455 : vector<8x32xf32>
    %457 = vector.extract_strided_slice %442 {offsets = [0, 32], sizes = [8, 32], strides = [1, 1]} : vector<8x128xf32> to vector<8x32xf32>
    %cst_180 = arith.constant 5.000000e-01 : f32
    %458 = vector.broadcast %cst_180 : f32 to vector<8x32xf32>
    %459 = arith.mulf %458, %457 : vector<8x32xf32>
    %460 = math.tanh %459 : vector<8x32xf32>
    %cst_181 = arith.constant 5.000000e-01 : f32
    %461 = vector.broadcast %cst_181 : f32 to vector<8x32xf32>
    %462 = arith.mulf %461, %460 : vector<8x32xf32>
    %cst_182 = arith.constant 5.000000e-01 : f32
    %463 = vector.broadcast %cst_182 : f32 to vector<8x32xf32>
    %464 = arith.addf %462, %463 : vector<8x32xf32>
    %465 = vector.extract_strided_slice %442 {offsets = [0, 64], sizes = [8, 32], strides = [1, 1]} : vector<8x128xf32> to vector<8x32xf32>
    %466 = math.tanh %465 : vector<8x32xf32>
    %467 = vector.extract_strided_slice %442 {offsets = [0, 96], sizes = [8, 32], strides = [1, 1]} : vector<8x128xf32> to vector<8x32xf32>
    %cst_183 = arith.constant 5.000000e-01 : f32
    %468 = vector.broadcast %cst_183 : f32 to vector<8x32xf32>
    %469 = arith.mulf %468, %467 : vector<8x32xf32>
    %470 = math.tanh %469 : vector<8x32xf32>
    %cst_184 = arith.constant 5.000000e-01 : f32
    %471 = vector.broadcast %cst_184 : f32 to vector<8x32xf32>
    %472 = arith.mulf %471, %470 : vector<8x32xf32>
    %cst_185 = arith.constant 5.000000e-01 : f32
    %473 = vector.broadcast %cst_185 : f32 to vector<8x32xf32>
    %474 = arith.addf %472, %473 : vector<8x32xf32>
    %475 = arith.mulf %464, %394 : vector<8x32xf32>
    %476 = arith.mulf %456, %466 : vector<8x32xf32>
    %477 = arith.addf %475, %476 : vector<8x32xf32>
    %478 = math.tanh %477 : vector<8x32xf32>
    %479 = arith.mulf %474, %478 : vector<8x32xf32>
    %480 = vector.extract_strided_slice %448 {offsets = [0, 0], sizes = [8, 32], strides = [1, 1]} : vector<8x128xf32> to vector<8x32xf32>
    %cst_186 = arith.constant 5.000000e-01 : f32
    %481 = vector.broadcast %cst_186 : f32 to vector<8x32xf32>
    %482 = arith.mulf %481, %480 : vector<8x32xf32>
    %483 = math.tanh %482 : vector<8x32xf32>
    %cst_187 = arith.constant 5.000000e-01 : f32
    %484 = vector.broadcast %cst_187 : f32 to vector<8x32xf32>
    %485 = arith.mulf %484, %483 : vector<8x32xf32>
    %cst_188 = arith.constant 5.000000e-01 : f32
    %486 = vector.broadcast %cst_188 : f32 to vector<8x32xf32>
    %487 = arith.addf %485, %486 : vector<8x32xf32>
    %488 = vector.extract_strided_slice %448 {offsets = [0, 32], sizes = [8, 32], strides = [1, 1]} : vector<8x128xf32> to vector<8x32xf32>
    %cst_189 = arith.constant 5.000000e-01 : f32
    %489 = vector.broadcast %cst_189 : f32 to vector<8x32xf32>
    %490 = arith.mulf %489, %488 : vector<8x32xf32>
    %491 = math.tanh %490 : vector<8x32xf32>
    %cst_190 = arith.constant 5.000000e-01 : f32
    %492 = vector.broadcast %cst_190 : f32 to vector<8x32xf32>
    %493 = arith.mulf %492, %491 : vector<8x32xf32>
    %cst_191 = arith.constant 5.000000e-01 : f32
    %494 = vector.broadcast %cst_191 : f32 to vector<8x32xf32>
    %495 = arith.addf %493, %494 : vector<8x32xf32>
    %496 = vector.extract_strided_slice %448 {offsets = [0, 64], sizes = [8, 32], strides = [1, 1]} : vector<8x128xf32> to vector<8x32xf32>
    %497 = math.tanh %496 : vector<8x32xf32>
    %498 = vector.extract_strided_slice %448 {offsets = [0, 96], sizes = [8, 32], strides = [1, 1]} : vector<8x128xf32> to vector<8x32xf32>
    %cst_192 = arith.constant 5.000000e-01 : f32
    %499 = vector.broadcast %cst_192 : f32 to vector<8x32xf32>
    %500 = arith.mulf %499, %498 : vector<8x32xf32>
    %501 = math.tanh %500 : vector<8x32xf32>
    %cst_193 = arith.constant 5.000000e-01 : f32
    %502 = vector.broadcast %cst_193 : f32 to vector<8x32xf32>
    %503 = arith.mulf %502, %501 : vector<8x32xf32>
    %cst_194 = arith.constant 5.000000e-01 : f32
    %504 = vector.broadcast %cst_194 : f32 to vector<8x32xf32>
    %505 = arith.addf %503, %504 : vector<8x32xf32>
    %506 = arith.mulf %495, %425 : vector<8x32xf32>
    %507 = arith.mulf %487, %497 : vector<8x32xf32>
    %508 = arith.addf %506, %507 : vector<8x32xf32>
    %509 = math.tanh %508 : vector<8x32xf32>
    %510 = arith.mulf %505, %509 : vector<8x32xf32>
    %511 = arith.index_cast %c5_i32 : i32 to index
    %c0_195 = arith.constant 0 : index
    %c0_196 = arith.constant 0 : index
    %512 = vector.load %arg22[%511, %c0_195, %c0_196] : memref<8x8x32xf32, #tpu.memory_space<vmem>>, vector<1x8x32xf32>
    %513 = vector.shape_cast %512 : vector<1x8x32xf32> to vector<8x32xf32>
    %514 = vector.shape_cast %479 : vector<8x32xf32> to vector<1x8x32xf32>
    tpu.vector_store %arg22[%511, %c0_195, %c0_196], %514 {strides = array<i32>} : memref<8x8x32xf32, #tpu.memory_space<vmem>>, vector<1x8x32xf32>,
    %515 = arith.index_cast %436 : i32 to index
    %c0_197 = arith.constant 0 : index
    %c0_198 = arith.constant 0 : index
    %516 = vector.load %arg23[%515, %c0_197, %c0_198] : memref<8x8x32xf32, #tpu.memory_space<vmem>>, vector<1x8x32xf32>
    %517 = vector.shape_cast %516 : vector<1x8x32xf32> to vector<8x32xf32>
    %518 = vector.shape_cast %510 : vector<8x32xf32> to vector<1x8x32xf32>
    tpu.vector_store %arg23[%515, %c0_197, %c0_198], %518 {strides = array<i32>} : memref<8x8x32xf32, #tpu.memory_space<vmem>>, vector<1x8x32xf32>,
    %c6_i32 = arith.constant 6 : i32
    %c7_i32_199 = arith.constant 7 : i32
    %519 = arith.subi %c7_i32_199, %c6_i32 : i32
    %520 = arith.index_cast %c6_i32 : i32 to index
    %c0_200 = arith.constant 0 : index
    %c0_201 = arith.constant 0 : index
    %521 = vector.load %arg24[%520, %c0_200, %c0_201] : memref<8x8x128xf32, #tpu.memory_space<vmem>>, vector<1x8x128xf32>
    %522 = vector.shape_cast %521 : vector<1x8x128xf32> to vector<8x128xf32>
    %523 = arith.truncf %479 : vector<8x32xf32> to vector<8x32xbf16>
    %cst_202 = arith.constant dense<0.000000e+00> : vector<8x128xf32>
    %524 = tpu.matmul %523, %1, %cst_202 {dimension_numbers = #tpu.dot_dimension_numbers<[1], [0], [0], [1], [0, 0, 1, 1], [], []>} : vector<8x32xbf16>, vector<32x128xbf16>, vector<8x128xf32> -> vector<8x128xf32>
    %525 = arith.addf %522, %524 : vector<8x128xf32>
    %526 = arith.index_cast %519 : i32 to index
    %c0_203 = arith.constant 0 : index
    %c0_204 = arith.constant 0 : index
    %527 = vector.load %arg25[%526, %c0_203, %c0_204] : memref<8x8x128xf32, #tpu.memory_space<vmem>>, vector<1x8x128xf32>
    %528 = vector.shape_cast %527 : vector<1x8x128xf32> to vector<8x128xf32>
    %529 = arith.truncf %510 : vector<8x32xf32> to vector<8x32xbf16>
    %cst_205 = arith.constant dense<0.000000e+00> : vector<8x128xf32>
    %530 = tpu.matmul %529, %2, %cst_205 {dimension_numbers = #tpu.dot_dimension_numbers<[1], [0], [0], [1], [0, 0, 1, 1], [], []>} : vector<8x32xbf16>, vector<32x128xbf16>, vector<8x128xf32> -> vector<8x128xf32>
    %531 = arith.addf %528, %530 : vector<8x128xf32>
    %532 = vector.extract_strided_slice %525 {offsets = [0, 0], sizes = [8, 32], strides = [1, 1]} : vector<8x128xf32> to vector<8x32xf32>
    %cst_206 = arith.constant 5.000000e-01 : f32
    %533 = vector.broadcast %cst_206 : f32 to vector<8x32xf32>
    %534 = arith.mulf %533, %532 : vector<8x32xf32>
    %535 = math.tanh %534 : vector<8x32xf32>
    %cst_207 = arith.constant 5.000000e-01 : f32
    %536 = vector.broadcast %cst_207 : f32 to vector<8x32xf32>
    %537 = arith.mulf %536, %535 : vector<8x32xf32>
    %cst_208 = arith.constant 5.000000e-01 : f32
    %538 = vector.broadcast %cst_208 : f32 to vector<8x32xf32>
    %539 = arith.addf %537, %538 : vector<8x32xf32>
    %540 = vector.extract_strided_slice %525 {offsets = [0, 32], sizes = [8, 32], strides = [1, 1]} : vector<8x128xf32> to vector<8x32xf32>
    %cst_209 = arith.constant 5.000000e-01 : f32
    %541 = vector.broadcast %cst_209 : f32 to vector<8x32xf32>
    %542 = arith.mulf %541, %540 : vector<8x32xf32>
    %543 = math.tanh %542 : vector<8x32xf32>
    %cst_210 = arith.constant 5.000000e-01 : f32
    %544 = vector.broadcast %cst_210 : f32 to vector<8x32xf32>
    %545 = arith.mulf %544, %543 : vector<8x32xf32>
    %cst_211 = arith.constant 5.000000e-01 : f32
    %546 = vector.broadcast %cst_211 : f32 to vector<8x32xf32>
    %547 = arith.addf %545, %546 : vector<8x32xf32>
    %548 = vector.extract_strided_slice %525 {offsets = [0, 64], sizes = [8, 32], strides = [1, 1]} : vector<8x128xf32> to vector<8x32xf32>
    %549 = math.tanh %548 : vector<8x32xf32>
    %550 = vector.extract_strided_slice %525 {offsets = [0, 96], sizes = [8, 32], strides = [1, 1]} : vector<8x128xf32> to vector<8x32xf32>
    %cst_212 = arith.constant 5.000000e-01 : f32
    %551 = vector.broadcast %cst_212 : f32 to vector<8x32xf32>
    %552 = arith.mulf %551, %550 : vector<8x32xf32>
    %553 = math.tanh %552 : vector<8x32xf32>
    %cst_213 = arith.constant 5.000000e-01 : f32
    %554 = vector.broadcast %cst_213 : f32 to vector<8x32xf32>
    %555 = arith.mulf %554, %553 : vector<8x32xf32>
    %cst_214 = arith.constant 5.000000e-01 : f32
    %556 = vector.broadcast %cst_214 : f32 to vector<8x32xf32>
    %557 = arith.addf %555, %556 : vector<8x32xf32>
    %558 = arith.mulf %547, %477 : vector<8x32xf32>
    %559 = arith.mulf %539, %549 : vector<8x32xf32>
    %560 = arith.addf %558, %559 : vector<8x32xf32>
    %561 = math.tanh %560 : vector<8x32xf32>
    %562 = arith.mulf %557, %561 : vector<8x32xf32>
    %563 = vector.extract_strided_slice %531 {offsets = [0, 0], sizes = [8, 32], strides = [1, 1]} : vector<8x128xf32> to vector<8x32xf32>
    %cst_215 = arith.constant 5.000000e-01 : f32
    %564 = vector.broadcast %cst_215 : f32 to vector<8x32xf32>
    %565 = arith.mulf %564, %563 : vector<8x32xf32>
    %566 = math.tanh %565 : vector<8x32xf32>
    %cst_216 = arith.constant 5.000000e-01 : f32
    %567 = vector.broadcast %cst_216 : f32 to vector<8x32xf32>
    %568 = arith.mulf %567, %566 : vector<8x32xf32>
    %cst_217 = arith.constant 5.000000e-01 : f32
    %569 = vector.broadcast %cst_217 : f32 to vector<8x32xf32>
    %570 = arith.addf %568, %569 : vector<8x32xf32>
    %571 = vector.extract_strided_slice %531 {offsets = [0, 32], sizes = [8, 32], strides = [1, 1]} : vector<8x128xf32> to vector<8x32xf32>
    %cst_218 = arith.constant 5.000000e-01 : f32
    %572 = vector.broadcast %cst_218 : f32 to vector<8x32xf32>
    %573 = arith.mulf %572, %571 : vector<8x32xf32>
    %574 = math.tanh %573 : vector<8x32xf32>
    %cst_219 = arith.constant 5.000000e-01 : f32
    %575 = vector.broadcast %cst_219 : f32 to vector<8x32xf32>
    %576 = arith.mulf %575, %574 : vector<8x32xf32>
    %cst_220 = arith.constant 5.000000e-01 : f32
    %577 = vector.broadcast %cst_220 : f32 to vector<8x32xf32>
    %578 = arith.addf %576, %577 : vector<8x32xf32>
    %579 = vector.extract_strided_slice %531 {offsets = [0, 64], sizes = [8, 32], strides = [1, 1]} : vector<8x128xf32> to vector<8x32xf32>
    %580 = math.tanh %579 : vector<8x32xf32>
    %581 = vector.extract_strided_slice %531 {offsets = [0, 96], sizes = [8, 32], strides = [1, 1]} : vector<8x128xf32> to vector<8x32xf32>
    %cst_221 = arith.constant 5.000000e-01 : f32
    %582 = vector.broadcast %cst_221 : f32 to vector<8x32xf32>
    %583 = arith.mulf %582, %581 : vector<8x32xf32>
    %584 = math.tanh %583 : vector<8x32xf32>
    %cst_222 = arith.constant 5.000000e-01 : f32
    %585 = vector.broadcast %cst_222 : f32 to vector<8x32xf32>
    %586 = arith.mulf %585, %584 : vector<8x32xf32>
    %cst_223 = arith.constant 5.000000e-01 : f32
    %587 = vector.broadcast %cst_223 : f32 to vector<8x32xf32>
    %588 = arith.addf %586, %587 : vector<8x32xf32>
    %589 = arith.mulf %578, %508 : vector<8x32xf32>
    %590 = arith.mulf %570, %580 : vector<8x32xf32>
    %591 = arith.addf %589, %590 : vector<8x32xf32>
    %592 = math.tanh %591 : vector<8x32xf32>
    %593 = arith.mulf %588, %592 : vector<8x32xf32>
    %594 = arith.index_cast %c6_i32 : i32 to index
    %c0_224 = arith.constant 0 : index
    %c0_225 = arith.constant 0 : index
    %595 = vector.load %arg22[%594, %c0_224, %c0_225] : memref<8x8x32xf32, #tpu.memory_space<vmem>>, vector<1x8x32xf32>
    %596 = vector.shape_cast %595 : vector<1x8x32xf32> to vector<8x32xf32>
    %597 = vector.shape_cast %562 : vector<8x32xf32> to vector<1x8x32xf32>
    tpu.vector_store %arg22[%594, %c0_224, %c0_225], %597 {strides = array<i32>} : memref<8x8x32xf32, #tpu.memory_space<vmem>>, vector<1x8x32xf32>,
    %598 = arith.index_cast %519 : i32 to index
    %c0_226 = arith.constant 0 : index
    %c0_227 = arith.constant 0 : index
    %599 = vector.load %arg23[%598, %c0_226, %c0_227] : memref<8x8x32xf32, #tpu.memory_space<vmem>>, vector<1x8x32xf32>
    %600 = vector.shape_cast %599 : vector<1x8x32xf32> to vector<8x32xf32>
    %601 = vector.shape_cast %593 : vector<8x32xf32> to vector<1x8x32xf32>
    tpu.vector_store %arg23[%598, %c0_226, %c0_227], %601 {strides = array<i32>} : memref<8x8x32xf32, #tpu.memory_space<vmem>>, vector<1x8x32xf32>,
    %c7_i32_228 = arith.constant 7 : i32
    %c7_i32_229 = arith.constant 7 : i32
    %602 = arith.subi %c7_i32_229, %c7_i32_228 : i32
    %603 = arith.index_cast %c7_i32_228 : i32 to index
    %c0_230 = arith.constant 0 : index
    %c0_231 = arith.constant 0 : index
    %604 = vector.load %arg24[%603, %c0_230, %c0_231] : memref<8x8x128xf32, #tpu.memory_space<vmem>>, vector<1x8x128xf32>
    %605 = vector.shape_cast %604 : vector<1x8x128xf32> to vector<8x128xf32>
    %606 = arith.truncf %562 : vector<8x32xf32> to vector<8x32xbf16>
    %cst_232 = arith.constant dense<0.000000e+00> : vector<8x128xf32>
    %607 = tpu.matmul %606, %1, %cst_232 {dimension_numbers = #tpu.dot_dimension_numbers<[1], [0], [0], [1], [0, 0, 1, 1], [], []>} : vector<8x32xbf16>, vector<32x128xbf16>, vector<8x128xf32> -> vector<8x128xf32>
    %608 = arith.addf %605, %607 : vector<8x128xf32>
    %609 = arith.index_cast %602 : i32 to index
    %c0_233 = arith.constant 0 : index
    %c0_234 = arith.constant 0 : index
    %610 = vector.load %arg25[%609, %c0_233, %c0_234] : memref<8x8x128xf32, #tpu.memory_space<vmem>>, vector<1x8x128xf32>
    %611 = vector.shape_cast %610 : vector<1x8x128xf32> to vector<8x128xf32>
    %612 = arith.truncf %593 : vector<8x32xf32> to vector<8x32xbf16>
    %cst_235 = arith.constant dense<0.000000e+00> : vector<8x128xf32>
    %613 = tpu.matmul %612, %2, %cst_235 {dimension_numbers = #tpu.dot_dimension_numbers<[1], [0], [0], [1], [0, 0, 1, 1], [], []>} : vector<8x32xbf16>, vector<32x128xbf16>, vector<8x128xf32> -> vector<8x128xf32>
    %614 = arith.addf %611, %613 : vector<8x128xf32>
    %615 = vector.extract_strided_slice %608 {offsets = [0, 0], sizes = [8, 32], strides = [1, 1]} : vector<8x128xf32> to vector<8x32xf32>
    %cst_236 = arith.constant 5.000000e-01 : f32
    %616 = vector.broadcast %cst_236 : f32 to vector<8x32xf32>
    %617 = arith.mulf %616, %615 : vector<8x32xf32>
    %618 = math.tanh %617 : vector<8x32xf32>
    %cst_237 = arith.constant 5.000000e-01 : f32
    %619 = vector.broadcast %cst_237 : f32 to vector<8x32xf32>
    %620 = arith.mulf %619, %618 : vector<8x32xf32>
    %cst_238 = arith.constant 5.000000e-01 : f32
    %621 = vector.broadcast %cst_238 : f32 to vector<8x32xf32>
    %622 = arith.addf %620, %621 : vector<8x32xf32>
    %623 = vector.extract_strided_slice %608 {offsets = [0, 32], sizes = [8, 32], strides = [1, 1]} : vector<8x128xf32> to vector<8x32xf32>
    %cst_239 = arith.constant 5.000000e-01 : f32
    %624 = vector.broadcast %cst_239 : f32 to vector<8x32xf32>
    %625 = arith.mulf %624, %623 : vector<8x32xf32>
    %626 = math.tanh %625 : vector<8x32xf32>
    %cst_240 = arith.constant 5.000000e-01 : f32
    %627 = vector.broadcast %cst_240 : f32 to vector<8x32xf32>
    %628 = arith.mulf %627, %626 : vector<8x32xf32>
    %cst_241 = arith.constant 5.000000e-01 : f32
    %629 = vector.broadcast %cst_241 : f32 to vector<8x32xf32>
    %630 = arith.addf %628, %629 : vector<8x32xf32>
    %631 = vector.extract_strided_slice %608 {offsets = [0, 64], sizes = [8, 32], strides = [1, 1]} : vector<8x128xf32> to vector<8x32xf32>
    %632 = math.tanh %631 : vector<8x32xf32>
    %633 = vector.extract_strided_slice %608 {offsets = [0, 96], sizes = [8, 32], strides = [1, 1]} : vector<8x128xf32> to vector<8x32xf32>
    %cst_242 = arith.constant 5.000000e-01 : f32
    %634 = vector.broadcast %cst_242 : f32 to vector<8x32xf32>
    %635 = arith.mulf %634, %633 : vector<8x32xf32>
    %636 = math.tanh %635 : vector<8x32xf32>
    %cst_243 = arith.constant 5.000000e-01 : f32
    %637 = vector.broadcast %cst_243 : f32 to vector<8x32xf32>
    %638 = arith.mulf %637, %636 : vector<8x32xf32>
    %cst_244 = arith.constant 5.000000e-01 : f32
    %639 = vector.broadcast %cst_244 : f32 to vector<8x32xf32>
    %640 = arith.addf %638, %639 : vector<8x32xf32>
    %641 = arith.mulf %630, %560 : vector<8x32xf32>
    %642 = arith.mulf %622, %632 : vector<8x32xf32>
    %643 = arith.addf %641, %642 : vector<8x32xf32>
    %644 = math.tanh %643 : vector<8x32xf32>
    %645 = arith.mulf %640, %644 : vector<8x32xf32>
    %646 = vector.extract_strided_slice %614 {offsets = [0, 0], sizes = [8, 32], strides = [1, 1]} : vector<8x128xf32> to vector<8x32xf32>
    %cst_245 = arith.constant 5.000000e-01 : f32
    %647 = vector.broadcast %cst_245 : f32 to vector<8x32xf32>
    %648 = arith.mulf %647, %646 : vector<8x32xf32>
    %649 = math.tanh %648 : vector<8x32xf32>
    %cst_246 = arith.constant 5.000000e-01 : f32
    %650 = vector.broadcast %cst_246 : f32 to vector<8x32xf32>
    %651 = arith.mulf %650, %649 : vector<8x32xf32>
    %cst_247 = arith.constant 5.000000e-01 : f32
    %652 = vector.broadcast %cst_247 : f32 to vector<8x32xf32>
    %653 = arith.addf %651, %652 : vector<8x32xf32>
    %654 = vector.extract_strided_slice %614 {offsets = [0, 32], sizes = [8, 32], strides = [1, 1]} : vector<8x128xf32> to vector<8x32xf32>
    %cst_248 = arith.constant 5.000000e-01 : f32
    %655 = vector.broadcast %cst_248 : f32 to vector<8x32xf32>
    %656 = arith.mulf %655, %654 : vector<8x32xf32>
    %657 = math.tanh %656 : vector<8x32xf32>
    %cst_249 = arith.constant 5.000000e-01 : f32
    %658 = vector.broadcast %cst_249 : f32 to vector<8x32xf32>
    %659 = arith.mulf %658, %657 : vector<8x32xf32>
    %cst_250 = arith.constant 5.000000e-01 : f32
    %660 = vector.broadcast %cst_250 : f32 to vector<8x32xf32>
    %661 = arith.addf %659, %660 : vector<8x32xf32>
    %662 = vector.extract_strided_slice %614 {offsets = [0, 64], sizes = [8, 32], strides = [1, 1]} : vector<8x128xf32> to vector<8x32xf32>
    %663 = math.tanh %662 : vector<8x32xf32>
    %664 = vector.extract_strided_slice %614 {offsets = [0, 96], sizes = [8, 32], strides = [1, 1]} : vector<8x128xf32> to vector<8x32xf32>
    %cst_251 = arith.constant 5.000000e-01 : f32
    %665 = vector.broadcast %cst_251 : f32 to vector<8x32xf32>
    %666 = arith.mulf %665, %664 : vector<8x32xf32>
    %667 = math.tanh %666 : vector<8x32xf32>
    %cst_252 = arith.constant 5.000000e-01 : f32
    %668 = vector.broadcast %cst_252 : f32 to vector<8x32xf32>
    %669 = arith.mulf %668, %667 : vector<8x32xf32>
    %cst_253 = arith.constant 5.000000e-01 : f32
    %670 = vector.broadcast %cst_253 : f32 to vector<8x32xf32>
    %671 = arith.addf %669, %670 : vector<8x32xf32>
    %672 = arith.mulf %661, %591 : vector<8x32xf32>
    %673 = arith.mulf %653, %663 : vector<8x32xf32>
    %674 = arith.addf %672, %673 : vector<8x32xf32>
    %675 = math.tanh %674 : vector<8x32xf32>
    %676 = arith.mulf %671, %675 : vector<8x32xf32>
    %677 = arith.index_cast %c7_i32_228 : i32 to index
    %c0_254 = arith.constant 0 : index
    %c0_255 = arith.constant 0 : index
    %678 = vector.load %arg22[%677, %c0_254, %c0_255] : memref<8x8x32xf32, #tpu.memory_space<vmem>>, vector<1x8x32xf32>
    %679 = vector.shape_cast %678 : vector<1x8x32xf32> to vector<8x32xf32>
    %680 = vector.shape_cast %645 : vector<8x32xf32> to vector<1x8x32xf32>
    tpu.vector_store %arg22[%677, %c0_254, %c0_255], %680 {strides = array<i32>} : memref<8x8x32xf32, #tpu.memory_space<vmem>>, vector<1x8x32xf32>,
    %681 = arith.index_cast %602 : i32 to index
    %c0_256 = arith.constant 0 : index
    %c0_257 = arith.constant 0 : index
    %682 = vector.load %arg23[%681, %c0_256, %c0_257] : memref<8x8x32xf32, #tpu.memory_space<vmem>>, vector<1x8x32xf32>
    %683 = vector.shape_cast %682 : vector<1x8x32xf32> to vector<8x32xf32>
    %684 = vector.shape_cast %676 : vector<8x32xf32> to vector<1x8x32xf32>
    tpu.vector_store %arg23[%681, %c0_256, %c0_257], %684 {strides = array<i32>} : memref<8x8x32xf32, #tpu.memory_space<vmem>>, vector<1x8x32xf32>,
    %c8_i32 = arith.constant 8 : i32
    %c0_258 = arith.constant 0 : index
    %c0_259 = arith.constant 0 : index
    %c0_260 = arith.constant 0 : index
    %685 = vector.load %arg22[%c0_258, %c0_259, %c0_260] : memref<8x8x32xf32, #tpu.memory_space<vmem>>, vector<8x8x32xf32>
    %686 = vector.shape_cast %685 : vector<8x8x32xf32> to vector<64x32xf32>
    %c0_261 = arith.constant 0 : index
    %c0_262 = arith.constant 0 : index
    %c0_263 = arith.constant 0 : index
    %687 = vector.load %arg23[%c0_261, %c0_262, %c0_263] : memref<8x8x32xf32, #tpu.memory_space<vmem>>, vector<8x8x32xf32>
    %688 = vector.shape_cast %687 : vector<8x8x32xf32> to vector<64x32xf32>
    %c0_264 = arith.constant 0 : index
    %c0_265 = arith.constant 0 : index
    %689 = vector.load %arg8[%c0_264, %c0_265] : memref<32x128xbf16, #tpu.memory_space<vmem>>, vector<32x128xbf16>
    %cst_266 = arith.constant dense<0.000000e+00> : vector<64x128xf32>
    %690 = tpu.matmul %686, %689, %cst_266 {dimension_numbers = #tpu.dot_dimension_numbers<[1], [0], [0], [1], [0, 0, 1, 1], [], []>} : vector<64x32xf32>, vector<32x128xbf16>, vector<64x128xf32> -> vector<64x128xf32>
    %c0_267 = arith.constant 0 : index
    %c0_268 = arith.constant 0 : index
    %691 = vector.load %arg9[%c0_267, %c0_268] : memref<32x128xbf16, #tpu.memory_space<vmem>>, vector<32x128xbf16>
    %cst_269 = arith.constant dense<0.000000e+00> : vector<64x128xf32>
    %692 = tpu.matmul %688, %691, %cst_269 {dimension_numbers = #tpu.dot_dimension_numbers<[1], [0], [0], [1], [0, 0, 1, 1], [], []>} : vector<64x32xf32>, vector<32x128xbf16>, vector<64x128xf32> -> vector<64x128xf32>
    %693 = arith.addf %690, %692 : vector<64x128xf32>
    %c0_270 = arith.constant 0 : index
    %c0_271 = arith.constant 0 : index
    %694 = vector.load %arg12[%c0_270, %c0_271] : memref<1x128xf32, #tpu.memory_space<vmem>>, vector<1x128xf32>
    %695 = vector.broadcast %694 : vector<1x128xf32> to vector<64x128xf32>
    %696 = arith.addf %693, %695 : vector<64x128xf32>
    %697 = vector.shape_cast %696 : vector<64x128xf32> to vector<8x8x128xf32>
    %c0_272 = arith.constant 0 : index
    %c0_273 = arith.constant 0 : index
    %c0_274 = arith.constant 0 : index
    %698 = vector.load %arg24[%c0_272, %c0_273, %c0_274] : memref<8x8x128xf32, #tpu.memory_space<vmem>>, vector<8x8x128xf32>
    tpu.vector_store %arg24[%c0_272, %c0_273, %c0_274], %697 {strides = array<i32>} : memref<8x8x128xf32, #tpu.memory_space<vmem>>, vector<8x8x128xf32>,
    %c0_275 = arith.constant 0 : index
    %c0_276 = arith.constant 0 : index
    %699 = vector.load %arg10[%c0_275, %c0_276] : memref<32x128xbf16, #tpu.memory_space<vmem>>, vector<32x128xbf16>
    %cst_277 = arith.constant dense<0.000000e+00> : vector<64x128xf32>
    %700 = tpu.matmul %686, %699, %cst_277 {dimension_numbers = #tpu.dot_dimension_numbers<[1], [0], [0], [1], [0, 0, 1, 1], [], []>} : vector<64x32xf32>, vector<32x128xbf16>, vector<64x128xf32> -> vector<64x128xf32>
    %c0_278 = arith.constant 0 : index
    %c0_279 = arith.constant 0 : index
    %701 = vector.load %arg11[%c0_278, %c0_279] : memref<32x128xbf16, #tpu.memory_space<vmem>>, vector<32x128xbf16>
    %cst_280 = arith.constant dense<0.000000e+00> : vector<64x128xf32>
    %702 = tpu.matmul %688, %701, %cst_280 {dimension_numbers = #tpu.dot_dimension_numbers<[1], [0], [0], [1], [0, 0, 1, 1], [], []>} : vector<64x32xf32>, vector<32x128xbf16>, vector<64x128xf32> -> vector<64x128xf32>
    %703 = arith.addf %700, %702 : vector<64x128xf32>
    %c0_281 = arith.constant 0 : index
    %c0_282 = arith.constant 0 : index
    %704 = vector.load %arg13[%c0_281, %c0_282] : memref<1x128xf32, #tpu.memory_space<vmem>>, vector<1x128xf32>
    %705 = vector.broadcast %704 : vector<1x128xf32> to vector<64x128xf32>
    %706 = arith.addf %703, %705 : vector<64x128xf32>
    %707 = vector.shape_cast %706 : vector<64x128xf32> to vector<8x8x128xf32>
    %c0_283 = arith.constant 0 : index
    %c0_284 = arith.constant 0 : index
    %c0_285 = arith.constant 0 : index
    %708 = vector.load %arg25[%c0_283, %c0_284, %c0_285] : memref<8x8x128xf32, #tpu.memory_space<vmem>>, vector<8x8x128xf32>
    tpu.vector_store %arg25[%c0_283, %c0_284, %c0_285], %707 {strides = array<i32>} : memref<8x8x128xf32, #tpu.memory_space<vmem>>, vector<8x8x128xf32>,
    %c0_i32_286 = arith.constant 0 : i32
    %c7_i32_287 = arith.constant 7 : i32
    %709 = arith.subi %c7_i32_287, %c0_i32_286 : i32
    %710 = arith.index_cast %c0_i32_286 : i32 to index
    %c0_288 = arith.constant 0 : index
    %c0_289 = arith.constant 0 : index
    %711 = vector.load %arg24[%710, %c0_288, %c0_289] : memref<8x8x128xf32, #tpu.memory_space<vmem>>, vector<1x8x128xf32>
    %712 = vector.shape_cast %711 : vector<1x8x128xf32> to vector<8x128xf32>
    %713 = arith.truncf %0 : vector<8x32xf32> to vector<8x32xbf16>
    %cst_290 = arith.constant dense<0.000000e+00> : vector<8x128xf32>
    %714 = tpu.matmul %713, %3, %cst_290 {dimension_numbers = #tpu.dot_dimension_numbers<[1], [0], [0], [1], [0, 0, 1, 1], [], []>} : vector<8x32xbf16>, vector<32x128xbf16>, vector<8x128xf32> -> vector<8x128xf32>
    %715 = arith.addf %712, %714 : vector<8x128xf32>
    %716 = arith.index_cast %709 : i32 to index
    %c0_291 = arith.constant 0 : index
    %c0_292 = arith.constant 0 : index
    %717 = vector.load %arg25[%716, %c0_291, %c0_292] : memref<8x8x128xf32, #tpu.memory_space<vmem>>, vector<1x8x128xf32>
    %718 = vector.shape_cast %717 : vector<1x8x128xf32> to vector<8x128xf32>
    %719 = arith.truncf %0 : vector<8x32xf32> to vector<8x32xbf16>
    %cst_293 = arith.constant dense<0.000000e+00> : vector<8x128xf32>
    %720 = tpu.matmul %719, %4, %cst_293 {dimension_numbers = #tpu.dot_dimension_numbers<[1], [0], [0], [1], [0, 0, 1, 1], [], []>} : vector<8x32xbf16>, vector<32x128xbf16>, vector<8x128xf32> -> vector<8x128xf32>
    %721 = arith.addf %718, %720 : vector<8x128xf32>
    %722 = vector.extract_strided_slice %715 {offsets = [0, 0], sizes = [8, 32], strides = [1, 1]} : vector<8x128xf32> to vector<8x32xf32>
    %cst_294 = arith.constant 5.000000e-01 : f32
    %723 = vector.broadcast %cst_294 : f32 to vector<8x32xf32>
    %724 = arith.mulf %723, %722 : vector<8x32xf32>
    %725 = math.tanh %724 : vector<8x32xf32>
    %cst_295 = arith.constant 5.000000e-01 : f32
    %726 = vector.broadcast %cst_295 : f32 to vector<8x32xf32>
    %727 = arith.mulf %726, %725 : vector<8x32xf32>
    %cst_296 = arith.constant 5.000000e-01 : f32
    %728 = vector.broadcast %cst_296 : f32 to vector<8x32xf32>
    %729 = arith.addf %727, %728 : vector<8x32xf32>
    %730 = vector.extract_strided_slice %715 {offsets = [0, 32], sizes = [8, 32], strides = [1, 1]} : vector<8x128xf32> to vector<8x32xf32>
    %cst_297 = arith.constant 5.000000e-01 : f32
    %731 = vector.broadcast %cst_297 : f32 to vector<8x32xf32>
    %732 = arith.mulf %731, %730 : vector<8x32xf32>
    %733 = math.tanh %732 : vector<8x32xf32>
    %cst_298 = arith.constant 5.000000e-01 : f32
    %734 = vector.broadcast %cst_298 : f32 to vector<8x32xf32>
    %735 = arith.mulf %734, %733 : vector<8x32xf32>
    %cst_299 = arith.constant 5.000000e-01 : f32
    %736 = vector.broadcast %cst_299 : f32 to vector<8x32xf32>
    %737 = arith.addf %735, %736 : vector<8x32xf32>
    %738 = vector.extract_strided_slice %715 {offsets = [0, 64], sizes = [8, 32], strides = [1, 1]} : vector<8x128xf32> to vector<8x32xf32>
    %739 = math.tanh %738 : vector<8x32xf32>
    %740 = vector.extract_strided_slice %715 {offsets = [0, 96], sizes = [8, 32], strides = [1, 1]} : vector<8x128xf32> to vector<8x32xf32>
    %cst_300 = arith.constant 5.000000e-01 : f32
    %741 = vector.broadcast %cst_300 : f32 to vector<8x32xf32>
    %742 = arith.mulf %741, %740 : vector<8x32xf32>
    %743 = math.tanh %742 : vector<8x32xf32>
    %cst_301 = arith.constant 5.000000e-01 : f32
    %744 = vector.broadcast %cst_301 : f32 to vector<8x32xf32>
    %745 = arith.mulf %744, %743 : vector<8x32xf32>
    %cst_302 = arith.constant 5.000000e-01 : f32
    %746 = vector.broadcast %cst_302 : f32 to vector<8x32xf32>
    %747 = arith.addf %745, %746 : vector<8x32xf32>
    %748 = arith.mulf %737, %0 : vector<8x32xf32>
    %749 = arith.mulf %729, %739 : vector<8x32xf32>
    %750 = arith.addf %748, %749 : vector<8x32xf32>
    %751 = math.tanh %750 : vector<8x32xf32>
    %752 = arith.mulf %747, %751 : vector<8x32xf32>
    %753 = vector.extract_strided_slice %721 {offsets = [0, 0], sizes = [8, 32], strides = [1, 1]} : vector<8x128xf32> to vector<8x32xf32>
    %cst_303 = arith.constant 5.000000e-01 : f32
    %754 = vector.broadcast %cst_303 : f32 to vector<8x32xf32>
    %755 = arith.mulf %754, %753 : vector<8x32xf32>
    %756 = math.tanh %755 : vector<8x32xf32>
    %cst_304 = arith.constant 5.000000e-01 : f32
    %757 = vector.broadcast %cst_304 : f32 to vector<8x32xf32>
    %758 = arith.mulf %757, %756 : vector<8x32xf32>
    %cst_305 = arith.constant 5.000000e-01 : f32
    %759 = vector.broadcast %cst_305 : f32 to vector<8x32xf32>
    %760 = arith.addf %758, %759 : vector<8x32xf32>
    %761 = vector.extract_strided_slice %721 {offsets = [0, 32], sizes = [8, 32], strides = [1, 1]} : vector<8x128xf32> to vector<8x32xf32>
    %cst_306 = arith.constant 5.000000e-01 : f32
    %762 = vector.broadcast %cst_306 : f32 to vector<8x32xf32>
    %763 = arith.mulf %762, %761 : vector<8x32xf32>
    %764 = math.tanh %763 : vector<8x32xf32>
    %cst_307 = arith.constant 5.000000e-01 : f32
    %765 = vector.broadcast %cst_307 : f32 to vector<8x32xf32>
    %766 = arith.mulf %765, %764 : vector<8x32xf32>
    %cst_308 = arith.constant 5.000000e-01 : f32
    %767 = vector.broadcast %cst_308 : f32 to vector<8x32xf32>
    %768 = arith.addf %766, %767 : vector<8x32xf32>
    %769 = vector.extract_strided_slice %721 {offsets = [0, 64], sizes = [8, 32], strides = [1, 1]} : vector<8x128xf32> to vector<8x32xf32>
    %770 = math.tanh %769 : vector<8x32xf32>
    %771 = vector.extract_strided_slice %721 {offsets = [0, 96], sizes = [8, 32], strides = [1, 1]} : vector<8x128xf32> to vector<8x32xf32>
    %cst_309 = arith.constant 5.000000e-01 : f32
    %772 = vector.broadcast %cst_309 : f32 to vector<8x32xf32>
    %773 = arith.mulf %772, %771 : vector<8x32xf32>
    %774 = math.tanh %773 : vector<8x32xf32>
    %cst_310 = arith.constant 5.000000e-01 : f32
    %775 = vector.broadcast %cst_310 : f32 to vector<8x32xf32>
    %776 = arith.mulf %775, %774 : vector<8x32xf32>
    %cst_311 = arith.constant 5.000000e-01 : f32
    %777 = vector.broadcast %cst_311 : f32 to vector<8x32xf32>
    %778 = arith.addf %776, %777 : vector<8x32xf32>
    %779 = arith.mulf %768, %0 : vector<8x32xf32>
    %780 = arith.mulf %760, %770 : vector<8x32xf32>
    %781 = arith.addf %779, %780 : vector<8x32xf32>
    %782 = math.tanh %781 : vector<8x32xf32>
    %783 = arith.mulf %778, %782 : vector<8x32xf32>
    %c1_i32_312 = arith.constant 1 : i32
    %c7_i32_313 = arith.constant 7 : i32
    %784 = arith.subi %c7_i32_313, %c1_i32_312 : i32
    %785 = arith.index_cast %c1_i32_312 : i32 to index
    %c0_314 = arith.constant 0 : index
    %c0_315 = arith.constant 0 : index
    %786 = vector.load %arg24[%785, %c0_314, %c0_315] : memref<8x8x128xf32, #tpu.memory_space<vmem>>, vector<1x8x128xf32>
    %787 = vector.shape_cast %786 : vector<1x8x128xf32> to vector<8x128xf32>
    %788 = arith.truncf %752 : vector<8x32xf32> to vector<8x32xbf16>
    %cst_316 = arith.constant dense<0.000000e+00> : vector<8x128xf32>
    %789 = tpu.matmul %788, %3, %cst_316 {dimension_numbers = #tpu.dot_dimension_numbers<[1], [0], [0], [1], [0, 0, 1, 1], [], []>} : vector<8x32xbf16>, vector<32x128xbf16>, vector<8x128xf32> -> vector<8x128xf32>
    %790 = arith.addf %787, %789 : vector<8x128xf32>
    %791 = arith.index_cast %784 : i32 to index
    %c0_317 = arith.constant 0 : index
    %c0_318 = arith.constant 0 : index
    %792 = vector.load %arg25[%791, %c0_317, %c0_318] : memref<8x8x128xf32, #tpu.memory_space<vmem>>, vector<1x8x128xf32>
    %793 = vector.shape_cast %792 : vector<1x8x128xf32> to vector<8x128xf32>
    %794 = arith.truncf %783 : vector<8x32xf32> to vector<8x32xbf16>
    %cst_319 = arith.constant dense<0.000000e+00> : vector<8x128xf32>
    %795 = tpu.matmul %794, %4, %cst_319 {dimension_numbers = #tpu.dot_dimension_numbers<[1], [0], [0], [1], [0, 0, 1, 1], [], []>} : vector<8x32xbf16>, vector<32x128xbf16>, vector<8x128xf32> -> vector<8x128xf32>
    %796 = arith.addf %793, %795 : vector<8x128xf32>
    %797 = vector.extract_strided_slice %790 {offsets = [0, 0], sizes = [8, 32], strides = [1, 1]} : vector<8x128xf32> to vector<8x32xf32>
    %cst_320 = arith.constant 5.000000e-01 : f32
    %798 = vector.broadcast %cst_320 : f32 to vector<8x32xf32>
    %799 = arith.mulf %798, %797 : vector<8x32xf32>
    %800 = math.tanh %799 : vector<8x32xf32>
    %cst_321 = arith.constant 5.000000e-01 : f32
    %801 = vector.broadcast %cst_321 : f32 to vector<8x32xf32>
    %802 = arith.mulf %801, %800 : vector<8x32xf32>
    %cst_322 = arith.constant 5.000000e-01 : f32
    %803 = vector.broadcast %cst_322 : f32 to vector<8x32xf32>
    %804 = arith.addf %802, %803 : vector<8x32xf32>
    %805 = vector.extract_strided_slice %790 {offsets = [0, 32], sizes = [8, 32], strides = [1, 1]} : vector<8x128xf32> to vector<8x32xf32>
    %cst_323 = arith.constant 5.000000e-01 : f32
    %806 = vector.broadcast %cst_323 : f32 to vector<8x32xf32>
    %807 = arith.mulf %806, %805 : vector<8x32xf32>
    %808 = math.tanh %807 : vector<8x32xf32>
    %cst_324 = arith.constant 5.000000e-01 : f32
    %809 = vector.broadcast %cst_324 : f32 to vector<8x32xf32>
    %810 = arith.mulf %809, %808 : vector<8x32xf32>
    %cst_325 = arith.constant 5.000000e-01 : f32
    %811 = vector.broadcast %cst_325 : f32 to vector<8x32xf32>
    %812 = arith.addf %810, %811 : vector<8x32xf32>
    %813 = vector.extract_strided_slice %790 {offsets = [0, 64], sizes = [8, 32], strides = [1, 1]} : vector<8x128xf32> to vector<8x32xf32>
    %814 = math.tanh %813 : vector<8x32xf32>
    %815 = vector.extract_strided_slice %790 {offsets = [0, 96], sizes = [8, 32], strides = [1, 1]} : vector<8x128xf32> to vector<8x32xf32>
    %cst_326 = arith.constant 5.000000e-01 : f32
    %816 = vector.broadcast %cst_326 : f32 to vector<8x32xf32>
    %817 = arith.mulf %816, %815 : vector<8x32xf32>
    %818 = math.tanh %817 : vector<8x32xf32>
    %cst_327 = arith.constant 5.000000e-01 : f32
    %819 = vector.broadcast %cst_327 : f32 to vector<8x32xf32>
    %820 = arith.mulf %819, %818 : vector<8x32xf32>
    %cst_328 = arith.constant 5.000000e-01 : f32
    %821 = vector.broadcast %cst_328 : f32 to vector<8x32xf32>
    %822 = arith.addf %820, %821 : vector<8x32xf32>
    %823 = arith.mulf %812, %750 : vector<8x32xf32>
    %824 = arith.mulf %804, %814 : vector<8x32xf32>
    %825 = arith.addf %823, %824 : vector<8x32xf32>
    %826 = math.tanh %825 : vector<8x32xf32>
    %827 = arith.mulf %822, %826 : vector<8x32xf32>
    %828 = vector.extract_strided_slice %796 {offsets = [0, 0], sizes = [8, 32], strides = [1, 1]} : vector<8x128xf32> to vector<8x32xf32>
    %cst_329 = arith.constant 5.000000e-01 : f32
    %829 = vector.broadcast %cst_329 : f32 to vector<8x32xf32>
    %830 = arith.mulf %829, %828 : vector<8x32xf32>
    %831 = math.tanh %830 : vector<8x32xf32>
    %cst_330 = arith.constant 5.000000e-01 : f32
    %832 = vector.broadcast %cst_330 : f32 to vector<8x32xf32>
    %833 = arith.mulf %832, %831 : vector<8x32xf32>
    %cst_331 = arith.constant 5.000000e-01 : f32
    %834 = vector.broadcast %cst_331 : f32 to vector<8x32xf32>
    %835 = arith.addf %833, %834 : vector<8x32xf32>
    %836 = vector.extract_strided_slice %796 {offsets = [0, 32], sizes = [8, 32], strides = [1, 1]} : vector<8x128xf32> to vector<8x32xf32>
    %cst_332 = arith.constant 5.000000e-01 : f32
    %837 = vector.broadcast %cst_332 : f32 to vector<8x32xf32>
    %838 = arith.mulf %837, %836 : vector<8x32xf32>
    %839 = math.tanh %838 : vector<8x32xf32>
    %cst_333 = arith.constant 5.000000e-01 : f32
    %840 = vector.broadcast %cst_333 : f32 to vector<8x32xf32>
    %841 = arith.mulf %840, %839 : vector<8x32xf32>
    %cst_334 = arith.constant 5.000000e-01 : f32
    %842 = vector.broadcast %cst_334 : f32 to vector<8x32xf32>
    %843 = arith.addf %841, %842 : vector<8x32xf32>
    %844 = vector.extract_strided_slice %796 {offsets = [0, 64], sizes = [8, 32], strides = [1, 1]} : vector<8x128xf32> to vector<8x32xf32>
    %845 = math.tanh %844 : vector<8x32xf32>
    %846 = vector.extract_strided_slice %796 {offsets = [0, 96], sizes = [8, 32], strides = [1, 1]} : vector<8x128xf32> to vector<8x32xf32>
    %cst_335 = arith.constant 5.000000e-01 : f32
    %847 = vector.broadcast %cst_335 : f32 to vector<8x32xf32>
    %848 = arith.mulf %847, %846 : vector<8x32xf32>
    %849 = math.tanh %848 : vector<8x32xf32>
    %cst_336 = arith.constant 5.000000e-01 : f32
    %850 = vector.broadcast %cst_336 : f32 to vector<8x32xf32>
    %851 = arith.mulf %850, %849 : vector<8x32xf32>
    %cst_337 = arith.constant 5.000000e-01 : f32
    %852 = vector.broadcast %cst_337 : f32 to vector<8x32xf32>
    %853 = arith.addf %851, %852 : vector<8x32xf32>
    %854 = arith.mulf %843, %781 : vector<8x32xf32>
    %855 = arith.mulf %835, %845 : vector<8x32xf32>
    %856 = arith.addf %854, %855 : vector<8x32xf32>
    %857 = math.tanh %856 : vector<8x32xf32>
    %858 = arith.mulf %853, %857 : vector<8x32xf32>
    %c2_i32_338 = arith.constant 2 : i32
    %c7_i32_339 = arith.constant 7 : i32
    %859 = arith.subi %c7_i32_339, %c2_i32_338 : i32
    %860 = arith.index_cast %c2_i32_338 : i32 to index
    %c0_340 = arith.constant 0 : index
    %c0_341 = arith.constant 0 : index
    %861 = vector.load %arg24[%860, %c0_340, %c0_341] : memref<8x8x128xf32, #tpu.memory_space<vmem>>, vector<1x8x128xf32>
    %862 = vector.shape_cast %861 : vector<1x8x128xf32> to vector<8x128xf32>
    %863 = arith.truncf %827 : vector<8x32xf32> to vector<8x32xbf16>
    %cst_342 = arith.constant dense<0.000000e+00> : vector<8x128xf32>
    %864 = tpu.matmul %863, %3, %cst_342 {dimension_numbers = #tpu.dot_dimension_numbers<[1], [0], [0], [1], [0, 0, 1, 1], [], []>} : vector<8x32xbf16>, vector<32x128xbf16>, vector<8x128xf32> -> vector<8x128xf32>
    %865 = arith.addf %862, %864 : vector<8x128xf32>
    %866 = arith.index_cast %859 : i32 to index
    %c0_343 = arith.constant 0 : index
    %c0_344 = arith.constant 0 : index
    %867 = vector.load %arg25[%866, %c0_343, %c0_344] : memref<8x8x128xf32, #tpu.memory_space<vmem>>, vector<1x8x128xf32>
    %868 = vector.shape_cast %867 : vector<1x8x128xf32> to vector<8x128xf32>
    %869 = arith.truncf %858 : vector<8x32xf32> to vector<8x32xbf16>
    %cst_345 = arith.constant dense<0.000000e+00> : vector<8x128xf32>
    %870 = tpu.matmul %869, %4, %cst_345 {dimension_numbers = #tpu.dot_dimension_numbers<[1], [0], [0], [1], [0, 0, 1, 1], [], []>} : vector<8x32xbf16>, vector<32x128xbf16>, vector<8x128xf32> -> vector<8x128xf32>
    %871 = arith.addf %868, %870 : vector<8x128xf32>
    %872 = vector.extract_strided_slice %865 {offsets = [0, 0], sizes = [8, 32], strides = [1, 1]} : vector<8x128xf32> to vector<8x32xf32>
    %cst_346 = arith.constant 5.000000e-01 : f32
    %873 = vector.broadcast %cst_346 : f32 to vector<8x32xf32>
    %874 = arith.mulf %873, %872 : vector<8x32xf32>
    %875 = math.tanh %874 : vector<8x32xf32>
    %cst_347 = arith.constant 5.000000e-01 : f32
    %876 = vector.broadcast %cst_347 : f32 to vector<8x32xf32>
    %877 = arith.mulf %876, %875 : vector<8x32xf32>
    %cst_348 = arith.constant 5.000000e-01 : f32
    %878 = vector.broadcast %cst_348 : f32 to vector<8x32xf32>
    %879 = arith.addf %877, %878 : vector<8x32xf32>
    %880 = vector.extract_strided_slice %865 {offsets = [0, 32], sizes = [8, 32], strides = [1, 1]} : vector<8x128xf32> to vector<8x32xf32>
    %cst_349 = arith.constant 5.000000e-01 : f32
    %881 = vector.broadcast %cst_349 : f32 to vector<8x32xf32>
    %882 = arith.mulf %881, %880 : vector<8x32xf32>
    %883 = math.tanh %882 : vector<8x32xf32>
    %cst_350 = arith.constant 5.000000e-01 : f32
    %884 = vector.broadcast %cst_350 : f32 to vector<8x32xf32>
    %885 = arith.mulf %884, %883 : vector<8x32xf32>
    %cst_351 = arith.constant 5.000000e-01 : f32
    %886 = vector.broadcast %cst_351 : f32 to vector<8x32xf32>
    %887 = arith.addf %885, %886 : vector<8x32xf32>
    %888 = vector.extract_strided_slice %865 {offsets = [0, 64], sizes = [8, 32], strides = [1, 1]} : vector<8x128xf32> to vector<8x32xf32>
    %889 = math.tanh %888 : vector<8x32xf32>
    %890 = vector.extract_strided_slice %865 {offsets = [0, 96], sizes = [8, 32], strides = [1, 1]} : vector<8x128xf32> to vector<8x32xf32>
    %cst_352 = arith.constant 5.000000e-01 : f32
    %891 = vector.broadcast %cst_352 : f32 to vector<8x32xf32>
    %892 = arith.mulf %891, %890 : vector<8x32xf32>
    %893 = math.tanh %892 : vector<8x32xf32>
    %cst_353 = arith.constant 5.000000e-01 : f32
    %894 = vector.broadcast %cst_353 : f32 to vector<8x32xf32>
    %895 = arith.mulf %894, %893 : vector<8x32xf32>
    %cst_354 = arith.constant 5.000000e-01 : f32
    %896 = vector.broadcast %cst_354 : f32 to vector<8x32xf32>
    %897 = arith.addf %895, %896 : vector<8x32xf32>
    %898 = arith.mulf %887, %825 : vector<8x32xf32>
    %899 = arith.mulf %879, %889 : vector<8x32xf32>
    %900 = arith.addf %898, %899 : vector<8x32xf32>
    %901 = math.tanh %900 : vector<8x32xf32>
    %902 = arith.mulf %897, %901 : vector<8x32xf32>
    %903 = vector.extract_strided_slice %871 {offsets = [0, 0], sizes = [8, 32], strides = [1, 1]} : vector<8x128xf32> to vector<8x32xf32>
    %cst_355 = arith.constant 5.000000e-01 : f32
    %904 = vector.broadcast %cst_355 : f32 to vector<8x32xf32>
    %905 = arith.mulf %904, %903 : vector<8x32xf32>
    %906 = math.tanh %905 : vector<8x32xf32>
    %cst_356 = arith.constant 5.000000e-01 : f32
    %907 = vector.broadcast %cst_356 : f32 to vector<8x32xf32>
    %908 = arith.mulf %907, %906 : vector<8x32xf32>
    %cst_357 = arith.constant 5.000000e-01 : f32
    %909 = vector.broadcast %cst_357 : f32 to vector<8x32xf32>
    %910 = arith.addf %908, %909 : vector<8x32xf32>
    %911 = vector.extract_strided_slice %871 {offsets = [0, 32], sizes = [8, 32], strides = [1, 1]} : vector<8x128xf32> to vector<8x32xf32>
    %cst_358 = arith.constant 5.000000e-01 : f32
    %912 = vector.broadcast %cst_358 : f32 to vector<8x32xf32>
    %913 = arith.mulf %912, %911 : vector<8x32xf32>
    %914 = math.tanh %913 : vector<8x32xf32>
    %cst_359 = arith.constant 5.000000e-01 : f32
    %915 = vector.broadcast %cst_359 : f32 to vector<8x32xf32>
    %916 = arith.mulf %915, %914 : vector<8x32xf32>
    %cst_360 = arith.constant 5.000000e-01 : f32
    %917 = vector.broadcast %cst_360 : f32 to vector<8x32xf32>
    %918 = arith.addf %916, %917 : vector<8x32xf32>
    %919 = vector.extract_strided_slice %871 {offsets = [0, 64], sizes = [8, 32], strides = [1, 1]} : vector<8x128xf32> to vector<8x32xf32>
    %920 = math.tanh %919 : vector<8x32xf32>
    %921 = vector.extract_strided_slice %871 {offsets = [0, 96], sizes = [8, 32], strides = [1, 1]} : vector<8x128xf32> to vector<8x32xf32>
    %cst_361 = arith.constant 5.000000e-01 : f32
    %922 = vector.broadcast %cst_361 : f32 to vector<8x32xf32>
    %923 = arith.mulf %922, %921 : vector<8x32xf32>
    %924 = math.tanh %923 : vector<8x32xf32>
    %cst_362 = arith.constant 5.000000e-01 : f32
    %925 = vector.broadcast %cst_362 : f32 to vector<8x32xf32>
    %926 = arith.mulf %925, %924 : vector<8x32xf32>
    %cst_363 = arith.constant 5.000000e-01 : f32
    %927 = vector.broadcast %cst_363 : f32 to vector<8x32xf32>
    %928 = arith.addf %926, %927 : vector<8x32xf32>
    %929 = arith.mulf %918, %856 : vector<8x32xf32>
    %930 = arith.mulf %910, %920 : vector<8x32xf32>
    %931 = arith.addf %929, %930 : vector<8x32xf32>
    %932 = math.tanh %931 : vector<8x32xf32>
    %933 = arith.mulf %928, %932 : vector<8x32xf32>
    %c3_i32_364 = arith.constant 3 : i32
    %c7_i32_365 = arith.constant 7 : i32
    %934 = arith.subi %c7_i32_365, %c3_i32_364 : i32
    %935 = arith.index_cast %c3_i32_364 : i32 to index
    %c0_366 = arith.constant 0 : index
    %c0_367 = arith.constant 0 : index
    %936 = vector.load %arg24[%935, %c0_366, %c0_367] : memref<8x8x128xf32, #tpu.memory_space<vmem>>, vector<1x8x128xf32>
    %937 = vector.shape_cast %936 : vector<1x8x128xf32> to vector<8x128xf32>
    %938 = arith.truncf %902 : vector<8x32xf32> to vector<8x32xbf16>
    %cst_368 = arith.constant dense<0.000000e+00> : vector<8x128xf32>
    %939 = tpu.matmul %938, %3, %cst_368 {dimension_numbers = #tpu.dot_dimension_numbers<[1], [0], [0], [1], [0, 0, 1, 1], [], []>} : vector<8x32xbf16>, vector<32x128xbf16>, vector<8x128xf32> -> vector<8x128xf32>
    %940 = arith.addf %937, %939 : vector<8x128xf32>
    %941 = arith.index_cast %934 : i32 to index
    %c0_369 = arith.constant 0 : index
    %c0_370 = arith.constant 0 : index
    %942 = vector.load %arg25[%941, %c0_369, %c0_370] : memref<8x8x128xf32, #tpu.memory_space<vmem>>, vector<1x8x128xf32>
    %943 = vector.shape_cast %942 : vector<1x8x128xf32> to vector<8x128xf32>
    %944 = arith.truncf %933 : vector<8x32xf32> to vector<8x32xbf16>
    %cst_371 = arith.constant dense<0.000000e+00> : vector<8x128xf32>
    %945 = tpu.matmul %944, %4, %cst_371 {dimension_numbers = #tpu.dot_dimension_numbers<[1], [0], [0], [1], [0, 0, 1, 1], [], []>} : vector<8x32xbf16>, vector<32x128xbf16>, vector<8x128xf32> -> vector<8x128xf32>
    %946 = arith.addf %943, %945 : vector<8x128xf32>
    %947 = vector.extract_strided_slice %940 {offsets = [0, 0], sizes = [8, 32], strides = [1, 1]} : vector<8x128xf32> to vector<8x32xf32>
    %cst_372 = arith.constant 5.000000e-01 : f32
    %948 = vector.broadcast %cst_372 : f32 to vector<8x32xf32>
    %949 = arith.mulf %948, %947 : vector<8x32xf32>
    %950 = math.tanh %949 : vector<8x32xf32>
    %cst_373 = arith.constant 5.000000e-01 : f32
    %951 = vector.broadcast %cst_373 : f32 to vector<8x32xf32>
    %952 = arith.mulf %951, %950 : vector<8x32xf32>
    %cst_374 = arith.constant 5.000000e-01 : f32
    %953 = vector.broadcast %cst_374 : f32 to vector<8x32xf32>
    %954 = arith.addf %952, %953 : vector<8x32xf32>
    %955 = vector.extract_strided_slice %940 {offsets = [0, 32], sizes = [8, 32], strides = [1, 1]} : vector<8x128xf32> to vector<8x32xf32>
    %cst_375 = arith.constant 5.000000e-01 : f32
    %956 = vector.broadcast %cst_375 : f32 to vector<8x32xf32>
    %957 = arith.mulf %956, %955 : vector<8x32xf32>
    %958 = math.tanh %957 : vector<8x32xf32>
    %cst_376 = arith.constant 5.000000e-01 : f32
    %959 = vector.broadcast %cst_376 : f32 to vector<8x32xf32>
    %960 = arith.mulf %959, %958 : vector<8x32xf32>
    %cst_377 = arith.constant 5.000000e-01 : f32
    %961 = vector.broadcast %cst_377 : f32 to vector<8x32xf32>
    %962 = arith.addf %960, %961 : vector<8x32xf32>
    %963 = vector.extract_strided_slice %940 {offsets = [0, 64], sizes = [8, 32], strides = [1, 1]} : vector<8x128xf32> to vector<8x32xf32>
    %964 = math.tanh %963 : vector<8x32xf32>
    %965 = vector.extract_strided_slice %940 {offsets = [0, 96], sizes = [8, 32], strides = [1, 1]} : vector<8x128xf32> to vector<8x32xf32>
    %cst_378 = arith.constant 5.000000e-01 : f32
    %966 = vector.broadcast %cst_378 : f32 to vector<8x32xf32>
    %967 = arith.mulf %966, %965 : vector<8x32xf32>
    %968 = math.tanh %967 : vector<8x32xf32>
    %cst_379 = arith.constant 5.000000e-01 : f32
    %969 = vector.broadcast %cst_379 : f32 to vector<8x32xf32>
    %970 = arith.mulf %969, %968 : vector<8x32xf32>
    %cst_380 = arith.constant 5.000000e-01 : f32
    %971 = vector.broadcast %cst_380 : f32 to vector<8x32xf32>
    %972 = arith.addf %970, %971 : vector<8x32xf32>
    %973 = arith.mulf %962, %900 : vector<8x32xf32>
    %974 = arith.mulf %954, %964 : vector<8x32xf32>
    %975 = arith.addf %973, %974 : vector<8x32xf32>
    %976 = math.tanh %975 : vector<8x32xf32>
    %977 = arith.mulf %972, %976 : vector<8x32xf32>
    %978 = vector.extract_strided_slice %946 {offsets = [0, 0], sizes = [8, 32], strides = [1, 1]} : vector<8x128xf32> to vector<8x32xf32>
    %cst_381 = arith.constant 5.000000e-01 : f32
    %979 = vector.broadcast %cst_381 : f32 to vector<8x32xf32>
    %980 = arith.mulf %979, %978 : vector<8x32xf32>
    %981 = math.tanh %980 : vector<8x32xf32>
    %cst_382 = arith.constant 5.000000e-01 : f32
    %982 = vector.broadcast %cst_382 : f32 to vector<8x32xf32>
    %983 = arith.mulf %982, %981 : vector<8x32xf32>
    %cst_383 = arith.constant 5.000000e-01 : f32
    %984 = vector.broadcast %cst_383 : f32 to vector<8x32xf32>
    %985 = arith.addf %983, %984 : vector<8x32xf32>
    %986 = vector.extract_strided_slice %946 {offsets = [0, 32], sizes = [8, 32], strides = [1, 1]} : vector<8x128xf32> to vector<8x32xf32>
    %cst_384 = arith.constant 5.000000e-01 : f32
    %987 = vector.broadcast %cst_384 : f32 to vector<8x32xf32>
    %988 = arith.mulf %987, %986 : vector<8x32xf32>
    %989 = math.tanh %988 : vector<8x32xf32>
    %cst_385 = arith.constant 5.000000e-01 : f32
    %990 = vector.broadcast %cst_385 : f32 to vector<8x32xf32>
    %991 = arith.mulf %990, %989 : vector<8x32xf32>
    %cst_386 = arith.constant 5.000000e-01 : f32
    %992 = vector.broadcast %cst_386 : f32 to vector<8x32xf32>
    %993 = arith.addf %991, %992 : vector<8x32xf32>
    %994 = vector.extract_strided_slice %946 {offsets = [0, 64], sizes = [8, 32], strides = [1, 1]} : vector<8x128xf32> to vector<8x32xf32>
    %995 = math.tanh %994 : vector<8x32xf32>
    %996 = vector.extract_strided_slice %946 {offsets = [0, 96], sizes = [8, 32], strides = [1, 1]} : vector<8x128xf32> to vector<8x32xf32>
    %cst_387 = arith.constant 5.000000e-01 : f32
    %997 = vector.broadcast %cst_387 : f32 to vector<8x32xf32>
    %998 = arith.mulf %997, %996 : vector<8x32xf32>
    %999 = math.tanh %998 : vector<8x32xf32>
    %cst_388 = arith.constant 5.000000e-01 : f32
    %1000 = vector.broadcast %cst_388 : f32 to vector<8x32xf32>
    %1001 = arith.mulf %1000, %999 : vector<8x32xf32>
    %cst_389 = arith.constant 5.000000e-01 : f32
    %1002 = vector.broadcast %cst_389 : f32 to vector<8x32xf32>
    %1003 = arith.addf %1001, %1002 : vector<8x32xf32>
    %1004 = arith.mulf %993, %931 : vector<8x32xf32>
    %1005 = arith.mulf %985, %995 : vector<8x32xf32>
    %1006 = arith.addf %1004, %1005 : vector<8x32xf32>
    %1007 = math.tanh %1006 : vector<8x32xf32>
    %1008 = arith.mulf %1003, %1007 : vector<8x32xf32>
    %c4_i32_390 = arith.constant 4 : i32
    %c7_i32_391 = arith.constant 7 : i32
    %1009 = arith.subi %c7_i32_391, %c4_i32_390 : i32
    %1010 = arith.index_cast %c4_i32_390 : i32 to index
    %c0_392 = arith.constant 0 : index
    %c0_393 = arith.constant 0 : index
    %1011 = vector.load %arg24[%1010, %c0_392, %c0_393] : memref<8x8x128xf32, #tpu.memory_space<vmem>>, vector<1x8x128xf32>
    %1012 = vector.shape_cast %1011 : vector<1x8x128xf32> to vector<8x128xf32>
    %1013 = arith.truncf %977 : vector<8x32xf32> to vector<8x32xbf16>
    %cst_394 = arith.constant dense<0.000000e+00> : vector<8x128xf32>
    %1014 = tpu.matmul %1013, %3, %cst_394 {dimension_numbers = #tpu.dot_dimension_numbers<[1], [0], [0], [1], [0, 0, 1, 1], [], []>} : vector<8x32xbf16>, vector<32x128xbf16>, vector<8x128xf32> -> vector<8x128xf32>
    %1015 = arith.addf %1012, %1014 : vector<8x128xf32>
    %1016 = arith.index_cast %1009 : i32 to index
    %c0_395 = arith.constant 0 : index
    %c0_396 = arith.constant 0 : index
    %1017 = vector.load %arg25[%1016, %c0_395, %c0_396] : memref<8x8x128xf32, #tpu.memory_space<vmem>>, vector<1x8x128xf32>
    %1018 = vector.shape_cast %1017 : vector<1x8x128xf32> to vector<8x128xf32>
    %1019 = arith.truncf %1008 : vector<8x32xf32> to vector<8x32xbf16>
    %cst_397 = arith.constant dense<0.000000e+00> : vector<8x128xf32>
    %1020 = tpu.matmul %1019, %4, %cst_397 {dimension_numbers = #tpu.dot_dimension_numbers<[1], [0], [0], [1], [0, 0, 1, 1], [], []>} : vector<8x32xbf16>, vector<32x128xbf16>, vector<8x128xf32> -> vector<8x128xf32>
    %1021 = arith.addf %1018, %1020 : vector<8x128xf32>
    %1022 = vector.extract_strided_slice %1015 {offsets = [0, 0], sizes = [8, 32], strides = [1, 1]} : vector<8x128xf32> to vector<8x32xf32>
    %cst_398 = arith.constant 5.000000e-01 : f32
    %1023 = vector.broadcast %cst_398 : f32 to vector<8x32xf32>
    %1024 = arith.mulf %1023, %1022 : vector<8x32xf32>
    %1025 = math.tanh %1024 : vector<8x32xf32>
    %cst_399 = arith.constant 5.000000e-01 : f32
    %1026 = vector.broadcast %cst_399 : f32 to vector<8x32xf32>
    %1027 = arith.mulf %1026, %1025 : vector<8x32xf32>
    %cst_400 = arith.constant 5.000000e-01 : f32
    %1028 = vector.broadcast %cst_400 : f32 to vector<8x32xf32>
    %1029 = arith.addf %1027, %1028 : vector<8x32xf32>
    %1030 = vector.extract_strided_slice %1015 {offsets = [0, 32], sizes = [8, 32], strides = [1, 1]} : vector<8x128xf32> to vector<8x32xf32>
    %cst_401 = arith.constant 5.000000e-01 : f32
    %1031 = vector.broadcast %cst_401 : f32 to vector<8x32xf32>
    %1032 = arith.mulf %1031, %1030 : vector<8x32xf32>
    %1033 = math.tanh %1032 : vector<8x32xf32>
    %cst_402 = arith.constant 5.000000e-01 : f32
    %1034 = vector.broadcast %cst_402 : f32 to vector<8x32xf32>
    %1035 = arith.mulf %1034, %1033 : vector<8x32xf32>
    %cst_403 = arith.constant 5.000000e-01 : f32
    %1036 = vector.broadcast %cst_403 : f32 to vector<8x32xf32>
    %1037 = arith.addf %1035, %1036 : vector<8x32xf32>
    %1038 = vector.extract_strided_slice %1015 {offsets = [0, 64], sizes = [8, 32], strides = [1, 1]} : vector<8x128xf32> to vector<8x32xf32>
    %1039 = math.tanh %1038 : vector<8x32xf32>
    %1040 = vector.extract_strided_slice %1015 {offsets = [0, 96], sizes = [8, 32], strides = [1, 1]} : vector<8x128xf32> to vector<8x32xf32>
    %cst_404 = arith.constant 5.000000e-01 : f32
    %1041 = vector.broadcast %cst_404 : f32 to vector<8x32xf32>
    %1042 = arith.mulf %1041, %1040 : vector<8x32xf32>
    %1043 = math.tanh %1042 : vector<8x32xf32>
    %cst_405 = arith.constant 5.000000e-01 : f32
    %1044 = vector.broadcast %cst_405 : f32 to vector<8x32xf32>
    %1045 = arith.mulf %1044, %1043 : vector<8x32xf32>
    %cst_406 = arith.constant 5.000000e-01 : f32
    %1046 = vector.broadcast %cst_406 : f32 to vector<8x32xf32>
    %1047 = arith.addf %1045, %1046 : vector<8x32xf32>
    %1048 = arith.mulf %1037, %975 : vector<8x32xf32>
    %1049 = arith.mulf %1029, %1039 : vector<8x32xf32>
    %1050 = arith.addf %1048, %1049 : vector<8x32xf32>
    %1051 = math.tanh %1050 : vector<8x32xf32>
    %1052 = arith.mulf %1047, %1051 : vector<8x32xf32>
    %1053 = vector.extract_strided_slice %1021 {offsets = [0, 0], sizes = [8, 32], strides = [1, 1]} : vector<8x128xf32> to vector<8x32xf32>
    %cst_407 = arith.constant 5.000000e-01 : f32
    %1054 = vector.broadcast %cst_407 : f32 to vector<8x32xf32>
    %1055 = arith.mulf %1054, %1053 : vector<8x32xf32>
    %1056 = math.tanh %1055 : vector<8x32xf32>
    %cst_408 = arith.constant 5.000000e-01 : f32
    %1057 = vector.broadcast %cst_408 : f32 to vector<8x32xf32>
    %1058 = arith.mulf %1057, %1056 : vector<8x32xf32>
    %cst_409 = arith.constant 5.000000e-01 : f32
    %1059 = vector.broadcast %cst_409 : f32 to vector<8x32xf32>
    %1060 = arith.addf %1058, %1059 : vector<8x32xf32>
    %1061 = vector.extract_strided_slice %1021 {offsets = [0, 32], sizes = [8, 32], strides = [1, 1]} : vector<8x128xf32> to vector<8x32xf32>
    %cst_410 = arith.constant 5.000000e-01 : f32
    %1062 = vector.broadcast %cst_410 : f32 to vector<8x32xf32>
    %1063 = arith.mulf %1062, %1061 : vector<8x32xf32>
    %1064 = math.tanh %1063 : vector<8x32xf32>
    %cst_411 = arith.constant 5.000000e-01 : f32
    %1065 = vector.broadcast %cst_411 : f32 to vector<8x32xf32>
    %1066 = arith.mulf %1065, %1064 : vector<8x32xf32>
    %cst_412 = arith.constant 5.000000e-01 : f32
    %1067 = vector.broadcast %cst_412 : f32 to vector<8x32xf32>
    %1068 = arith.addf %1066, %1067 : vector<8x32xf32>
    %1069 = vector.extract_strided_slice %1021 {offsets = [0, 64], sizes = [8, 32], strides = [1, 1]} : vector<8x128xf32> to vector<8x32xf32>
    %1070 = math.tanh %1069 : vector<8x32xf32>
    %1071 = vector.extract_strided_slice %1021 {offsets = [0, 96], sizes = [8, 32], strides = [1, 1]} : vector<8x128xf32> to vector<8x32xf32>
    %cst_413 = arith.constant 5.000000e-01 : f32
    %1072 = vector.broadcast %cst_413 : f32 to vector<8x32xf32>
    %1073 = arith.mulf %1072, %1071 : vector<8x32xf32>
    %1074 = math.tanh %1073 : vector<8x32xf32>
    %cst_414 = arith.constant 5.000000e-01 : f32
    %1075 = vector.broadcast %cst_414 : f32 to vector<8x32xf32>
    %1076 = arith.mulf %1075, %1074 : vector<8x32xf32>
    %cst_415 = arith.constant 5.000000e-01 : f32
    %1077 = vector.broadcast %cst_415 : f32 to vector<8x32xf32>
    %1078 = arith.addf %1076, %1077 : vector<8x32xf32>
    %1079 = arith.mulf %1068, %1006 : vector<8x32xf32>
    %1080 = arith.mulf %1060, %1070 : vector<8x32xf32>
    %1081 = arith.addf %1079, %1080 : vector<8x32xf32>
    %1082 = math.tanh %1081 : vector<8x32xf32>
    %1083 = arith.mulf %1078, %1082 : vector<8x32xf32>
    %c5_i32_416 = arith.constant 5 : i32
    %c7_i32_417 = arith.constant 7 : i32
    %1084 = arith.subi %c7_i32_417, %c5_i32_416 : i32
    %1085 = arith.index_cast %c5_i32_416 : i32 to index
    %c0_418 = arith.constant 0 : index
    %c0_419 = arith.constant 0 : index
    %1086 = vector.load %arg24[%1085, %c0_418, %c0_419] : memref<8x8x128xf32, #tpu.memory_space<vmem>>, vector<1x8x128xf32>
    %1087 = vector.shape_cast %1086 : vector<1x8x128xf32> to vector<8x128xf32>
    %1088 = arith.truncf %1052 : vector<8x32xf32> to vector<8x32xbf16>
    %cst_420 = arith.constant dense<0.000000e+00> : vector<8x128xf32>
    %1089 = tpu.matmul %1088, %3, %cst_420 {dimension_numbers = #tpu.dot_dimension_numbers<[1], [0], [0], [1], [0, 0, 1, 1], [], []>} : vector<8x32xbf16>, vector<32x128xbf16>, vector<8x128xf32> -> vector<8x128xf32>
    %1090 = arith.addf %1087, %1089 : vector<8x128xf32>
    %1091 = arith.index_cast %1084 : i32 to index
    %c0_421 = arith.constant 0 : index
    %c0_422 = arith.constant 0 : index
    %1092 = vector.load %arg25[%1091, %c0_421, %c0_422] : memref<8x8x128xf32, #tpu.memory_space<vmem>>, vector<1x8x128xf32>
    %1093 = vector.shape_cast %1092 : vector<1x8x128xf32> to vector<8x128xf32>
    %1094 = arith.truncf %1083 : vector<8x32xf32> to vector<8x32xbf16>
    %cst_423 = arith.constant dense<0.000000e+00> : vector<8x128xf32>
    %1095 = tpu.matmul %1094, %4, %cst_423 {dimension_numbers = #tpu.dot_dimension_numbers<[1], [0], [0], [1], [0, 0, 1, 1], [], []>} : vector<8x32xbf16>, vector<32x128xbf16>, vector<8x128xf32> -> vector<8x128xf32>
    %1096 = arith.addf %1093, %1095 : vector<8x128xf32>
    %1097 = vector.extract_strided_slice %1090 {offsets = [0, 0], sizes = [8, 32], strides = [1, 1]} : vector<8x128xf32> to vector<8x32xf32>
    %cst_424 = arith.constant 5.000000e-01 : f32
    %1098 = vector.broadcast %cst_424 : f32 to vector<8x32xf32>
    %1099 = arith.mulf %1098, %1097 : vector<8x32xf32>
    %1100 = math.tanh %1099 : vector<8x32xf32>
    %cst_425 = arith.constant 5.000000e-01 : f32
    %1101 = vector.broadcast %cst_425 : f32 to vector<8x32xf32>
    %1102 = arith.mulf %1101, %1100 : vector<8x32xf32>
    %cst_426 = arith.constant 5.000000e-01 : f32
    %1103 = vector.broadcast %cst_426 : f32 to vector<8x32xf32>
    %1104 = arith.addf %1102, %1103 : vector<8x32xf32>
    %1105 = vector.extract_strided_slice %1090 {offsets = [0, 32], sizes = [8, 32], strides = [1, 1]} : vector<8x128xf32> to vector<8x32xf32>
    %cst_427 = arith.constant 5.000000e-01 : f32
    %1106 = vector.broadcast %cst_427 : f32 to vector<8x32xf32>
    %1107 = arith.mulf %1106, %1105 : vector<8x32xf32>
    %1108 = math.tanh %1107 : vector<8x32xf32>
    %cst_428 = arith.constant 5.000000e-01 : f32
    %1109 = vector.broadcast %cst_428 : f32 to vector<8x32xf32>
    %1110 = arith.mulf %1109, %1108 : vector<8x32xf32>
    %cst_429 = arith.constant 5.000000e-01 : f32
    %1111 = vector.broadcast %cst_429 : f32 to vector<8x32xf32>
    %1112 = arith.addf %1110, %1111 : vector<8x32xf32>
    %1113 = vector.extract_strided_slice %1090 {offsets = [0, 64], sizes = [8, 32], strides = [1, 1]} : vector<8x128xf32> to vector<8x32xf32>
    %1114 = math.tanh %1113 : vector<8x32xf32>
    %1115 = vector.extract_strided_slice %1090 {offsets = [0, 96], sizes = [8, 32], strides = [1, 1]} : vector<8x128xf32> to vector<8x32xf32>
    %cst_430 = arith.constant 5.000000e-01 : f32
    %1116 = vector.broadcast %cst_430 : f32 to vector<8x32xf32>
    %1117 = arith.mulf %1116, %1115 : vector<8x32xf32>
    %1118 = math.tanh %1117 : vector<8x32xf32>
    %cst_431 = arith.constant 5.000000e-01 : f32
    %1119 = vector.broadcast %cst_431 : f32 to vector<8x32xf32>
    %1120 = arith.mulf %1119, %1118 : vector<8x32xf32>
    %cst_432 = arith.constant 5.000000e-01 : f32
    %1121 = vector.broadcast %cst_432 : f32 to vector<8x32xf32>
    %1122 = arith.addf %1120, %1121 : vector<8x32xf32>
    %1123 = arith.mulf %1112, %1050 : vector<8x32xf32>
    %1124 = arith.mulf %1104, %1114 : vector<8x32xf32>
    %1125 = arith.addf %1123, %1124 : vector<8x32xf32>
    %1126 = math.tanh %1125 : vector<8x32xf32>
    %1127 = arith.mulf %1122, %1126 : vector<8x32xf32>
    %1128 = vector.extract_strided_slice %1096 {offsets = [0, 0], sizes = [8, 32], strides = [1, 1]} : vector<8x128xf32> to vector<8x32xf32>
    %cst_433 = arith.constant 5.000000e-01 : f32
    %1129 = vector.broadcast %cst_433 : f32 to vector<8x32xf32>
    %1130 = arith.mulf %1129, %1128 : vector<8x32xf32>
    %1131 = math.tanh %1130 : vector<8x32xf32>
    %cst_434 = arith.constant 5.000000e-01 : f32
    %1132 = vector.broadcast %cst_434 : f32 to vector<8x32xf32>
    %1133 = arith.mulf %1132, %1131 : vector<8x32xf32>
    %cst_435 = arith.constant 5.000000e-01 : f32
    %1134 = vector.broadcast %cst_435 : f32 to vector<8x32xf32>
    %1135 = arith.addf %1133, %1134 : vector<8x32xf32>
    %1136 = vector.extract_strided_slice %1096 {offsets = [0, 32], sizes = [8, 32], strides = [1, 1]} : vector<8x128xf32> to vector<8x32xf32>
    %cst_436 = arith.constant 5.000000e-01 : f32
    %1137 = vector.broadcast %cst_436 : f32 to vector<8x32xf32>
    %1138 = arith.mulf %1137, %1136 : vector<8x32xf32>
    %1139 = math.tanh %1138 : vector<8x32xf32>
    %cst_437 = arith.constant 5.000000e-01 : f32
    %1140 = vector.broadcast %cst_437 : f32 to vector<8x32xf32>
    %1141 = arith.mulf %1140, %1139 : vector<8x32xf32>
    %cst_438 = arith.constant 5.000000e-01 : f32
    %1142 = vector.broadcast %cst_438 : f32 to vector<8x32xf32>
    %1143 = arith.addf %1141, %1142 : vector<8x32xf32>
    %1144 = vector.extract_strided_slice %1096 {offsets = [0, 64], sizes = [8, 32], strides = [1, 1]} : vector<8x128xf32> to vector<8x32xf32>
    %1145 = math.tanh %1144 : vector<8x32xf32>
    %1146 = vector.extract_strided_slice %1096 {offsets = [0, 96], sizes = [8, 32], strides = [1, 1]} : vector<8x128xf32> to vector<8x32xf32>
    %cst_439 = arith.constant 5.000000e-01 : f32
    %1147 = vector.broadcast %cst_439 : f32 to vector<8x32xf32>
    %1148 = arith.mulf %1147, %1146 : vector<8x32xf32>
    %1149 = math.tanh %1148 : vector<8x32xf32>
    %cst_440 = arith.constant 5.000000e-01 : f32
    %1150 = vector.broadcast %cst_440 : f32 to vector<8x32xf32>
    %1151 = arith.mulf %1150, %1149 : vector<8x32xf32>
    %cst_441 = arith.constant 5.000000e-01 : f32
    %1152 = vector.broadcast %cst_441 : f32 to vector<8x32xf32>
    %1153 = arith.addf %1151, %1152 : vector<8x32xf32>
    %1154 = arith.mulf %1143, %1081 : vector<8x32xf32>
    %1155 = arith.mulf %1135, %1145 : vector<8x32xf32>
    %1156 = arith.addf %1154, %1155 : vector<8x32xf32>
    %1157 = math.tanh %1156 : vector<8x32xf32>
    %1158 = arith.mulf %1153, %1157 : vector<8x32xf32>
    %c6_i32_442 = arith.constant 6 : i32
    %c7_i32_443 = arith.constant 7 : i32
    %1159 = arith.subi %c7_i32_443, %c6_i32_442 : i32
    %1160 = arith.index_cast %c6_i32_442 : i32 to index
    %c0_444 = arith.constant 0 : index
    %c0_445 = arith.constant 0 : index
    %1161 = vector.load %arg24[%1160, %c0_444, %c0_445] : memref<8x8x128xf32, #tpu.memory_space<vmem>>, vector<1x8x128xf32>
    %1162 = vector.shape_cast %1161 : vector<1x8x128xf32> to vector<8x128xf32>
    %1163 = arith.truncf %1127 : vector<8x32xf32> to vector<8x32xbf16>
    %cst_446 = arith.constant dense<0.000000e+00> : vector<8x128xf32>
    %1164 = tpu.matmul %1163, %3, %cst_446 {dimension_numbers = #tpu.dot_dimension_numbers<[1], [0], [0], [1], [0, 0, 1, 1], [], []>} : vector<8x32xbf16>, vector<32x128xbf16>, vector<8x128xf32> -> vector<8x128xf32>
    %1165 = arith.addf %1162, %1164 : vector<8x128xf32>
    %1166 = arith.index_cast %1159 : i32 to index
    %c0_447 = arith.constant 0 : index
    %c0_448 = arith.constant 0 : index
    %1167 = vector.load %arg25[%1166, %c0_447, %c0_448] : memref<8x8x128xf32, #tpu.memory_space<vmem>>, vector<1x8x128xf32>
    %1168 = vector.shape_cast %1167 : vector<1x8x128xf32> to vector<8x128xf32>
    %1169 = arith.truncf %1158 : vector<8x32xf32> to vector<8x32xbf16>
    %cst_449 = arith.constant dense<0.000000e+00> : vector<8x128xf32>
    %1170 = tpu.matmul %1169, %4, %cst_449 {dimension_numbers = #tpu.dot_dimension_numbers<[1], [0], [0], [1], [0, 0, 1, 1], [], []>} : vector<8x32xbf16>, vector<32x128xbf16>, vector<8x128xf32> -> vector<8x128xf32>
    %1171 = arith.addf %1168, %1170 : vector<8x128xf32>
    %1172 = vector.extract_strided_slice %1165 {offsets = [0, 0], sizes = [8, 32], strides = [1, 1]} : vector<8x128xf32> to vector<8x32xf32>
    %cst_450 = arith.constant 5.000000e-01 : f32
    %1173 = vector.broadcast %cst_450 : f32 to vector<8x32xf32>
    %1174 = arith.mulf %1173, %1172 : vector<8x32xf32>
    %1175 = math.tanh %1174 : vector<8x32xf32>
    %cst_451 = arith.constant 5.000000e-01 : f32
    %1176 = vector.broadcast %cst_451 : f32 to vector<8x32xf32>
    %1177 = arith.mulf %1176, %1175 : vector<8x32xf32>
    %cst_452 = arith.constant 5.000000e-01 : f32
    %1178 = vector.broadcast %cst_452 : f32 to vector<8x32xf32>
    %1179 = arith.addf %1177, %1178 : vector<8x32xf32>
    %1180 = vector.extract_strided_slice %1165 {offsets = [0, 32], sizes = [8, 32], strides = [1, 1]} : vector<8x128xf32> to vector<8x32xf32>
    %cst_453 = arith.constant 5.000000e-01 : f32
    %1181 = vector.broadcast %cst_453 : f32 to vector<8x32xf32>
    %1182 = arith.mulf %1181, %1180 : vector<8x32xf32>
    %1183 = math.tanh %1182 : vector<8x32xf32>
    %cst_454 = arith.constant 5.000000e-01 : f32
    %1184 = vector.broadcast %cst_454 : f32 to vector<8x32xf32>
    %1185 = arith.mulf %1184, %1183 : vector<8x32xf32>
    %cst_455 = arith.constant 5.000000e-01 : f32
    %1186 = vector.broadcast %cst_455 : f32 to vector<8x32xf32>
    %1187 = arith.addf %1185, %1186 : vector<8x32xf32>
    %1188 = vector.extract_strided_slice %1165 {offsets = [0, 64], sizes = [8, 32], strides = [1, 1]} : vector<8x128xf32> to vector<8x32xf32>
    %1189 = math.tanh %1188 : vector<8x32xf32>
    %1190 = vector.extract_strided_slice %1165 {offsets = [0, 96], sizes = [8, 32], strides = [1, 1]} : vector<8x128xf32> to vector<8x32xf32>
    %cst_456 = arith.constant 5.000000e-01 : f32
    %1191 = vector.broadcast %cst_456 : f32 to vector<8x32xf32>
    %1192 = arith.mulf %1191, %1190 : vector<8x32xf32>
    %1193 = math.tanh %1192 : vector<8x32xf32>
    %cst_457 = arith.constant 5.000000e-01 : f32
    %1194 = vector.broadcast %cst_457 : f32 to vector<8x32xf32>
    %1195 = arith.mulf %1194, %1193 : vector<8x32xf32>
    %cst_458 = arith.constant 5.000000e-01 : f32
    %1196 = vector.broadcast %cst_458 : f32 to vector<8x32xf32>
    %1197 = arith.addf %1195, %1196 : vector<8x32xf32>
    %1198 = arith.mulf %1187, %1125 : vector<8x32xf32>
    %1199 = arith.mulf %1179, %1189 : vector<8x32xf32>
    %1200 = arith.addf %1198, %1199 : vector<8x32xf32>
    %1201 = math.tanh %1200 : vector<8x32xf32>
    %1202 = arith.mulf %1197, %1201 : vector<8x32xf32>
    %1203 = vector.extract_strided_slice %1171 {offsets = [0, 0], sizes = [8, 32], strides = [1, 1]} : vector<8x128xf32> to vector<8x32xf32>
    %cst_459 = arith.constant 5.000000e-01 : f32
    %1204 = vector.broadcast %cst_459 : f32 to vector<8x32xf32>
    %1205 = arith.mulf %1204, %1203 : vector<8x32xf32>
    %1206 = math.tanh %1205 : vector<8x32xf32>
    %cst_460 = arith.constant 5.000000e-01 : f32
    %1207 = vector.broadcast %cst_460 : f32 to vector<8x32xf32>
    %1208 = arith.mulf %1207, %1206 : vector<8x32xf32>
    %cst_461 = arith.constant 5.000000e-01 : f32
    %1209 = vector.broadcast %cst_461 : f32 to vector<8x32xf32>
    %1210 = arith.addf %1208, %1209 : vector<8x32xf32>
    %1211 = vector.extract_strided_slice %1171 {offsets = [0, 32], sizes = [8, 32], strides = [1, 1]} : vector<8x128xf32> to vector<8x32xf32>
    %cst_462 = arith.constant 5.000000e-01 : f32
    %1212 = vector.broadcast %cst_462 : f32 to vector<8x32xf32>
    %1213 = arith.mulf %1212, %1211 : vector<8x32xf32>
    %1214 = math.tanh %1213 : vector<8x32xf32>
    %cst_463 = arith.constant 5.000000e-01 : f32
    %1215 = vector.broadcast %cst_463 : f32 to vector<8x32xf32>
    %1216 = arith.mulf %1215, %1214 : vector<8x32xf32>
    %cst_464 = arith.constant 5.000000e-01 : f32
    %1217 = vector.broadcast %cst_464 : f32 to vector<8x32xf32>
    %1218 = arith.addf %1216, %1217 : vector<8x32xf32>
    %1219 = vector.extract_strided_slice %1171 {offsets = [0, 64], sizes = [8, 32], strides = [1, 1]} : vector<8x128xf32> to vector<8x32xf32>
    %1220 = math.tanh %1219 : vector<8x32xf32>
    %1221 = vector.extract_strided_slice %1171 {offsets = [0, 96], sizes = [8, 32], strides = [1, 1]} : vector<8x128xf32> to vector<8x32xf32>
    %cst_465 = arith.constant 5.000000e-01 : f32
    %1222 = vector.broadcast %cst_465 : f32 to vector<8x32xf32>
    %1223 = arith.mulf %1222, %1221 : vector<8x32xf32>
    %1224 = math.tanh %1223 : vector<8x32xf32>
    %cst_466 = arith.constant 5.000000e-01 : f32
    %1225 = vector.broadcast %cst_466 : f32 to vector<8x32xf32>
    %1226 = arith.mulf %1225, %1224 : vector<8x32xf32>
    %cst_467 = arith.constant 5.000000e-01 : f32
    %1227 = vector.broadcast %cst_467 : f32 to vector<8x32xf32>
    %1228 = arith.addf %1226, %1227 : vector<8x32xf32>
    %1229 = arith.mulf %1218, %1156 : vector<8x32xf32>
    %1230 = arith.mulf %1210, %1220 : vector<8x32xf32>
    %1231 = arith.addf %1229, %1230 : vector<8x32xf32>
    %1232 = math.tanh %1231 : vector<8x32xf32>
    %1233 = arith.mulf %1228, %1232 : vector<8x32xf32>
    %c7_i32_468 = arith.constant 7 : i32
    %c7_i32_469 = arith.constant 7 : i32
    %1234 = arith.subi %c7_i32_469, %c7_i32_468 : i32
    %1235 = arith.index_cast %c7_i32_468 : i32 to index
    %c0_470 = arith.constant 0 : index
    %c0_471 = arith.constant 0 : index
    %1236 = vector.load %arg24[%1235, %c0_470, %c0_471] : memref<8x8x128xf32, #tpu.memory_space<vmem>>, vector<1x8x128xf32>
    %1237 = vector.shape_cast %1236 : vector<1x8x128xf32> to vector<8x128xf32>
    %1238 = arith.truncf %1202 : vector<8x32xf32> to vector<8x32xbf16>
    %cst_472 = arith.constant dense<0.000000e+00> : vector<8x128xf32>
    %1239 = tpu.matmul %1238, %3, %cst_472 {dimension_numbers = #tpu.dot_dimension_numbers<[1], [0], [0], [1], [0, 0, 1, 1], [], []>} : vector<8x32xbf16>, vector<32x128xbf16>, vector<8x128xf32> -> vector<8x128xf32>
    %1240 = arith.addf %1237, %1239 : vector<8x128xf32>
    %1241 = arith.index_cast %1234 : i32 to index
    %c0_473 = arith.constant 0 : index
    %c0_474 = arith.constant 0 : index
    %1242 = vector.load %arg25[%1241, %c0_473, %c0_474] : memref<8x8x128xf32, #tpu.memory_space<vmem>>, vector<1x8x128xf32>
    %1243 = vector.shape_cast %1242 : vector<1x8x128xf32> to vector<8x128xf32>
    %1244 = arith.truncf %1233 : vector<8x32xf32> to vector<8x32xbf16>
    %cst_475 = arith.constant dense<0.000000e+00> : vector<8x128xf32>
    %1245 = tpu.matmul %1244, %4, %cst_475 {dimension_numbers = #tpu.dot_dimension_numbers<[1], [0], [0], [1], [0, 0, 1, 1], [], []>} : vector<8x32xbf16>, vector<32x128xbf16>, vector<8x128xf32> -> vector<8x128xf32>
    %1246 = arith.addf %1243, %1245 : vector<8x128xf32>
    %1247 = vector.extract_strided_slice %1240 {offsets = [0, 0], sizes = [8, 32], strides = [1, 1]} : vector<8x128xf32> to vector<8x32xf32>
    %cst_476 = arith.constant 5.000000e-01 : f32
    %1248 = vector.broadcast %cst_476 : f32 to vector<8x32xf32>
    %1249 = arith.mulf %1248, %1247 : vector<8x32xf32>
    %1250 = math.tanh %1249 : vector<8x32xf32>
    %cst_477 = arith.constant 5.000000e-01 : f32
    %1251 = vector.broadcast %cst_477 : f32 to vector<8x32xf32>
    %1252 = arith.mulf %1251, %1250 : vector<8x32xf32>
    %cst_478 = arith.constant 5.000000e-01 : f32
    %1253 = vector.broadcast %cst_478 : f32 to vector<8x32xf32>
    %1254 = arith.addf %1252, %1253 : vector<8x32xf32>
    %1255 = vector.extract_strided_slice %1240 {offsets = [0, 32], sizes = [8, 32], strides = [1, 1]} : vector<8x128xf32> to vector<8x32xf32>
    %cst_479 = arith.constant 5.000000e-01 : f32
    %1256 = vector.broadcast %cst_479 : f32 to vector<8x32xf32>
    %1257 = arith.mulf %1256, %1255 : vector<8x32xf32>
    %1258 = math.tanh %1257 : vector<8x32xf32>
    %cst_480 = arith.constant 5.000000e-01 : f32
    %1259 = vector.broadcast %cst_480 : f32 to vector<8x32xf32>
    %1260 = arith.mulf %1259, %1258 : vector<8x32xf32>
    %cst_481 = arith.constant 5.000000e-01 : f32
    %1261 = vector.broadcast %cst_481 : f32 to vector<8x32xf32>
    %1262 = arith.addf %1260, %1261 : vector<8x32xf32>
    %1263 = vector.extract_strided_slice %1240 {offsets = [0, 64], sizes = [8, 32], strides = [1, 1]} : vector<8x128xf32> to vector<8x32xf32>
    %1264 = math.tanh %1263 : vector<8x32xf32>
    %1265 = vector.extract_strided_slice %1240 {offsets = [0, 96], sizes = [8, 32], strides = [1, 1]} : vector<8x128xf32> to vector<8x32xf32>
    %cst_482 = arith.constant 5.000000e-01 : f32
    %1266 = vector.broadcast %cst_482 : f32 to vector<8x32xf32>
    %1267 = arith.mulf %1266, %1265 : vector<8x32xf32>
    %1268 = math.tanh %1267 : vector<8x32xf32>
    %cst_483 = arith.constant 5.000000e-01 : f32
    %1269 = vector.broadcast %cst_483 : f32 to vector<8x32xf32>
    %1270 = arith.mulf %1269, %1268 : vector<8x32xf32>
    %cst_484 = arith.constant 5.000000e-01 : f32
    %1271 = vector.broadcast %cst_484 : f32 to vector<8x32xf32>
    %1272 = arith.addf %1270, %1271 : vector<8x32xf32>
    %1273 = arith.mulf %1262, %1200 : vector<8x32xf32>
    %1274 = arith.mulf %1254, %1264 : vector<8x32xf32>
    %1275 = arith.addf %1273, %1274 : vector<8x32xf32>
    %1276 = math.tanh %1275 : vector<8x32xf32>
    %1277 = arith.mulf %1272, %1276 : vector<8x32xf32>
    %1278 = vector.extract_strided_slice %1246 {offsets = [0, 0], sizes = [8, 32], strides = [1, 1]} : vector<8x128xf32> to vector<8x32xf32>
    %cst_485 = arith.constant 5.000000e-01 : f32
    %1279 = vector.broadcast %cst_485 : f32 to vector<8x32xf32>
    %1280 = arith.mulf %1279, %1278 : vector<8x32xf32>
    %1281 = math.tanh %1280 : vector<8x32xf32>
    %cst_486 = arith.constant 5.000000e-01 : f32
    %1282 = vector.broadcast %cst_486 : f32 to vector<8x32xf32>
    %1283 = arith.mulf %1282, %1281 : vector<8x32xf32>
    %cst_487 = arith.constant 5.000000e-01 : f32
    %1284 = vector.broadcast %cst_487 : f32 to vector<8x32xf32>
    %1285 = arith.addf %1283, %1284 : vector<8x32xf32>
    %1286 = vector.extract_strided_slice %1246 {offsets = [0, 32], sizes = [8, 32], strides = [1, 1]} : vector<8x128xf32> to vector<8x32xf32>
    %cst_488 = arith.constant 5.000000e-01 : f32
    %1287 = vector.broadcast %cst_488 : f32 to vector<8x32xf32>
    %1288 = arith.mulf %1287, %1286 : vector<8x32xf32>
    %1289 = math.tanh %1288 : vector<8x32xf32>
    %cst_489 = arith.constant 5.000000e-01 : f32
    %1290 = vector.broadcast %cst_489 : f32 to vector<8x32xf32>
    %1291 = arith.mulf %1290, %1289 : vector<8x32xf32>
    %cst_490 = arith.constant 5.000000e-01 : f32
    %1292 = vector.broadcast %cst_490 : f32 to vector<8x32xf32>
    %1293 = arith.addf %1291, %1292 : vector<8x32xf32>
    %1294 = vector.extract_strided_slice %1246 {offsets = [0, 64], sizes = [8, 32], strides = [1, 1]} : vector<8x128xf32> to vector<8x32xf32>
    %1295 = math.tanh %1294 : vector<8x32xf32>
    %1296 = vector.extract_strided_slice %1246 {offsets = [0, 96], sizes = [8, 32], strides = [1, 1]} : vector<8x128xf32> to vector<8x32xf32>
    %cst_491 = arith.constant 5.000000e-01 : f32
    %1297 = vector.broadcast %cst_491 : f32 to vector<8x32xf32>
    %1298 = arith.mulf %1297, %1296 : vector<8x32xf32>
    %1299 = math.tanh %1298 : vector<8x32xf32>
    %cst_492 = arith.constant 5.000000e-01 : f32
    %1300 = vector.broadcast %cst_492 : f32 to vector<8x32xf32>
    %1301 = arith.mulf %1300, %1299 : vector<8x32xf32>
    %cst_493 = arith.constant 5.000000e-01 : f32
    %1302 = vector.broadcast %cst_493 : f32 to vector<8x32xf32>
    %1303 = arith.addf %1301, %1302 : vector<8x32xf32>
    %1304 = arith.mulf %1293, %1231 : vector<8x32xf32>
    %1305 = arith.mulf %1285, %1295 : vector<8x32xf32>
    %1306 = arith.addf %1304, %1305 : vector<8x32xf32>
    %1307 = math.tanh %1306 : vector<8x32xf32>
    %1308 = arith.mulf %1303, %1307 : vector<8x32xf32>
    %c8_i32_494 = arith.constant 8 : i32
    %1309 = arith.truncf %1277 : vector<8x32xf32> to vector<8x32xbf16>
    %c0_495 = arith.constant 0 : index
    %c0_496 = arith.constant 0 : index
    %1310 = vector.load %arg16[%c0_495, %c0_496] : memref<32x128xbf16, #tpu.memory_space<vmem>>, vector<32x128xbf16>
    %cst_497 = arith.constant dense<0.000000e+00> : vector<8x128xf32>
    %1311 = tpu.matmul %1309, %1310, %cst_497 {dimension_numbers = #tpu.dot_dimension_numbers<[1], [0], [0], [1], [0, 0, 1, 1], [], []>} : vector<8x32xbf16>, vector<32x128xbf16>, vector<8x128xf32> -> vector<8x128xf32>
    %1312 = arith.truncf %1308 : vector<8x32xf32> to vector<8x32xbf16>
    %c0_498 = arith.constant 0 : index
    %c0_499 = arith.constant 0 : index
    %1313 = vector.load %arg17[%c0_498, %c0_499] : memref<32x128xbf16, #tpu.memory_space<vmem>>, vector<32x128xbf16>
    %cst_500 = arith.constant dense<0.000000e+00> : vector<8x128xf32>
    %1314 = tpu.matmul %1312, %1313, %cst_500 {dimension_numbers = #tpu.dot_dimension_numbers<[1], [0], [0], [1], [0, 0, 1, 1], [], []>} : vector<8x32xbf16>, vector<32x128xbf16>, vector<8x128xf32> -> vector<8x128xf32>
    %1315 = arith.addf %1311, %1314 : vector<8x128xf32>
    %c0_501 = arith.constant 0 : index
    %c0_502 = arith.constant 0 : index
    %1316 = vector.load %arg18[%c0_501, %c0_502] : memref<1x128xf32, #tpu.memory_space<vmem>>, vector<1x128xf32>
    %1317 = vector.broadcast %1316 : vector<1x128xf32> to vector<8x128xf32>
    %1318 = arith.addf %1315, %1317 : vector<8x128xf32>
    %1319 = math.tanh %1318 : vector<8x128xf32>
    %1320 = tpu.iota {dimensions = array<i32: 1>} : vector<1x128xi32>
    %c32_i32 = arith.constant 32 : i32
    %1321 = vector.broadcast %c32_i32 : i32 to vector<1x128xi32>
    %1322 = arith.cmpi slt, %1320, %1321 : vector<1x128xi32>
    %1323 = arith.extui %1322 : vector<1x128xi1> to vector<1x128xi32>
    %1324 = arith.sitofp %1323 : vector<1x128xi32> to vector<1x128xf32>
    %1325 = vector.broadcast %1324 : vector<1x128xf32> to vector<8x128xf32>
    %1326 = arith.mulf %1319, %1325 : vector<8x128xf32>
    %cst_503 = arith.constant dense<0.000000e+00> : vector<8xf32>
    %1327 = vector.multi_reduction <add>, %1326, %cst_503 [1] : vector<8x128xf32> to vector<8xf32>
    %1328 = vector.shape_cast %1327 : vector<8xf32> to vector<8x1xf32>
    %cst_504 = arith.constant 3.125000e-02 : f32
    %1329 = vector.broadcast %cst_504 : f32 to vector<8x1xf32>
    %1330 = arith.mulf %1328, %1329 : vector<8x1xf32>
    %1331 = vector.broadcast %1330 : vector<8x1xf32> to vector<8x128xf32>
    %1332 = arith.subf %1319, %1331 : vector<8x128xf32>
    %1333 = vector.broadcast %1324 : vector<1x128xf32> to vector<8x128xf32>
    %1334 = arith.mulf %1332, %1333 : vector<8x128xf32>
    %1335 = arith.mulf %1334, %1334 : vector<8x128xf32>
    %cst_505 = arith.constant dense<0.000000e+00> : vector<8xf32>
    %1336 = vector.multi_reduction <add>, %1335, %cst_505 [1] : vector<8x128xf32> to vector<8xf32>
    %1337 = vector.shape_cast %1336 : vector<8xf32> to vector<8x1xf32>
    %cst_506 = arith.constant 3.125000e-02 : f32
    %1338 = vector.broadcast %cst_506 : f32 to vector<8x1xf32>
    %1339 = arith.mulf %1337, %1338 : vector<8x1xf32>
    %cst_507 = arith.constant 9.99999974E-6 : f32
    %1340 = vector.broadcast %cst_507 : f32 to vector<8x1xf32>
    %1341 = arith.addf %1339, %1340 : vector<8x1xf32>
    %1342 = math.rsqrt %1341 : vector<8x1xf32>
    %1343 = vector.broadcast %1342 : vector<8x1xf32> to vector<8x128xf32>
    %1344 = arith.mulf %1334, %1343 : vector<8x128xf32>
    %c0_508 = arith.constant 0 : index
    %c0_509 = arith.constant 0 : index
    %1345 = vector.load %arg19[%c0_508, %c0_509] : memref<1x128xf32, #tpu.memory_space<vmem>>, vector<1x128xf32>
    %1346 = vector.broadcast %1345 : vector<1x128xf32> to vector<8x128xf32>
    %1347 = arith.mulf %1344, %1346 : vector<8x128xf32>
    %c0_510 = arith.constant 0 : index
    %c0_511 = arith.constant 0 : index
    %1348 = vector.load %arg20[%c0_510, %c0_511] : memref<1x128xf32, #tpu.memory_space<vmem>>, vector<1x128xf32>
    %1349 = vector.broadcast %1348 : vector<1x128xf32> to vector<8x128xf32>
    %1350 = arith.addf %1347, %1349 : vector<8x128xf32>
    %c0_512 = arith.constant 0 : index
    %c0_513 = arith.constant 0 : index
    %1351 = vector.load %arg21[%c0_512, %c0_513] : memref<8x128xf32, #tpu.memory_space<vmem>>, vector<8x128xf32>
    tpu.vector_store %arg21[%c0_512, %c0_513], %1350 {strides = array<i32>} : memref<8x128xf32, #tpu.memory_space<vmem>>, vector<8x128xf32>,
    return
  }
  func.func @transform_0(%arg0: i32) -> (i32, i32, i32) {
    %c0_i32 = arith.constant 0 : i32
    %c0_i32_0 = arith.constant 0 : i32
    %c0_i32_1 = arith.constant 0 : i32
    return %arg0, %c0_i32, %c0_i32_0 : i32, i32, i32
  }
  func.func @transform_1(%arg0: i32) -> (i32, i32) {
    %c0_i32 = arith.constant 0 : i32
    %c0_i32_0 = arith.constant 0 : i32
    %c0_i32_1 = arith.constant 0 : i32
    return %c0_i32, %c0_i32_0 : i32, i32
  }
  func.func @transform_2(%arg0: i32) -> (i32, i32) {
    %c0_i32 = arith.constant 0 : i32
    %c0_i32_0 = arith.constant 0 : i32
    %c0_i32_1 = arith.constant 0 : i32
    return %c0_i32, %c0_i32_0 : i32, i32
  }
  func.func @transform_3(%arg0: i32) -> (i32, i32) {
    %c0_i32 = arith.constant 0 : i32
    %c0_i32_0 = arith.constant 0 : i32
    %c0_i32_1 = arith.constant 0 : i32
    return %c0_i32, %c0_i32_0 : i32, i32
  }
  func.func @transform_4(%arg0: i32) -> (i32, i32) {
    %c0_i32 = arith.constant 0 : i32
    %c0_i32_0 = arith.constant 0 : i32
    %c0_i32_1 = arith.constant 0 : i32
    return %c0_i32, %c0_i32_0 : i32, i32
  }
  func.func @transform_5(%arg0: i32) -> (i32, i32) {
    %c0_i32 = arith.constant 0 : i32
    %c0_i32_0 = arith.constant 0 : i32
    %c0_i32_1 = arith.constant 0 : i32
    return %c0_i32, %c0_i32_0 : i32, i32
  }
  func.func @transform_6(%arg0: i32) -> (i32, i32) {
    %c0_i32 = arith.constant 0 : i32
    %c0_i32_0 = arith.constant 0 : i32
    %c0_i32_1 = arith.constant 0 : i32
    return %c0_i32, %c0_i32_0 : i32, i32
  }
  func.func @transform_7(%arg0: i32) -> (i32, i32) {
    %c0_i32 = arith.constant 0 : i32
    %c0_i32_0 = arith.constant 0 : i32
    %c0_i32_1 = arith.constant 0 : i32
    return %c0_i32, %c0_i32_0 : i32, i32
  }
  func.func @transform_8(%arg0: i32) -> (i32, i32) {
    %c0_i32 = arith.constant 0 : i32
    %c0_i32_0 = arith.constant 0 : i32
    %c0_i32_1 = arith.constant 0 : i32
    return %c0_i32, %c0_i32_0 : i32, i32
  }
  func.func @transform_9(%arg0: i32) -> (i32, i32) {
    %c0_i32 = arith.constant 0 : i32
    %c0_i32_0 = arith.constant 0 : i32
    %c0_i32_1 = arith.constant 0 : i32
    return %c0_i32, %c0_i32_0 : i32, i32
  }
  func.func @transform_10(%arg0: i32) -> (i32, i32) {
    %c0_i32 = arith.constant 0 : i32
    %c0_i32_0 = arith.constant 0 : i32
    %c0_i32_1 = arith.constant 0 : i32
    return %c0_i32, %c0_i32_0 : i32, i32
  }
  func.func @transform_11(%arg0: i32) -> (i32, i32) {
    %c0_i32 = arith.constant 0 : i32
    %c0_i32_0 = arith.constant 0 : i32
    %c0_i32_1 = arith.constant 0 : i32
    return %c0_i32, %c0_i32_0 : i32, i32
  }
  func.func @transform_12(%arg0: i32) -> (i32, i32) {
    %c0_i32 = arith.constant 0 : i32
    %c0_i32_0 = arith.constant 0 : i32
    %c0_i32_1 = arith.constant 0 : i32
    return %c0_i32, %c0_i32_0 : i32, i32
  }
  func.func @transform_13(%arg0: i32) -> (i32, i32) {
    %c0_i32 = arith.constant 0 : i32
    %c0_i32_0 = arith.constant 0 : i32
    %c0_i32_1 = arith.constant 0 : i32
    return %c0_i32, %c0_i32_0 : i32, i32
  }
  func.func @transform_14(%arg0: i32) -> (i32, i32) {
    %c0_i32 = arith.constant 0 : i32
    %c0_i32_0 = arith.constant 0 : i32
    %c0_i32_1 = arith.constant 0 : i32
    return %c0_i32, %c0_i32_0 : i32, i32
  }
  func.func @transform_15(%arg0: i32) -> (i32, i32) {
    %c0_i32 = arith.constant 0 : i32
    %c0_i32_0 = arith.constant 0 : i32
    %c0_i32_1 = arith.constant 0 : i32
    return %c0_i32, %c0_i32_0 : i32, i32
  }
  func.func @transform_16(%arg0: i32) -> (i32, i32) {
    %c0_i32 = arith.constant 0 : i32
    %c0_i32_0 = arith.constant 0 : i32
    %c0_i32_1 = arith.constant 0 : i32
    return %c0_i32, %c0_i32_0 : i32, i32
  }
  func.func @transform_17(%arg0: i32) -> (i32, i32) {
    %c0_i32 = arith.constant 0 : i32
    %c0_i32_0 = arith.constant 0 : i32
    %c0_i32_1 = arith.constant 0 : i32
    return %c0_i32, %c0_i32_0 : i32, i32
  }
  func.func @transform_18(%arg0: i32) -> (i32, i32) {
    %c0_i32 = arith.constant 0 : i32
    %c0_i32_0 = arith.constant 0 : i32
    %c0_i32_1 = arith.constant 0 : i32
    return %c0_i32, %c0_i32_0 : i32, i32
  }
  func.func @transform_19(%arg0: i32) -> (i32, i32) {
    %c0_i32 = arith.constant 0 : i32
    %c0_i32_0 = arith.constant 0 : i32
    %c0_i32_1 = arith.constant 0 : i32
    return %c0_i32, %c0_i32_0 : i32, i32
  }
  func.func @transform_20(%arg0: i32) -> (i32, i32) {
    %c0_i32 = arith.constant 0 : i32
    %c0_i32_0 = arith.constant 0 : i32
    return %arg0, %c0_i32 : i32, i32
  }
}

</mosaic_0001>

<llo_original>
// kernel: tpu_custom_call.1
$region0: #{tpu_custom_call.1}
  #allocation0 [shape = 'u32[]', space=smem, size = 0x4, offset = 0x4, fixed_abs, tag = 'smem constant byte address 0x4 - core index']
  #allocation1 [shape = 'u32[72,128]{1,0:T(1,128)}', space=vmem, size = 0x9000, scoped, tag = 'internal scratch']
  #allocation2 [shape = 'f32[8,8,32]{2,1,0:T(8,128)}', space=vmem, size = 0x8000, scoped, tag = 'scratch operand']
  #allocation3 [shape = 'f32[8,8,32]{2,1,0:T(8,128)}', space=vmem, size = 0x8000, scoped, tag = 'scratch operand']
  #allocation4 [shape = 'f32[8,8,128]{2,1,0:T(8,128)}', space=vmem, size = 0x8000, scoped, tag = 'scratch operand']
  #allocation5 [shape = 'f32[8,8,128]{2,1,0:T(8,128)}', space=vmem, size = 0x8000, scoped, tag = 'scratch operand']
  %s0 = inlined_call_operand.hbm [shape: bf16[1,64,128], index: 0, kind: input, shape index: {}]
  %s1 = inlined_call_operand.hbm [shape: bf16[128,128], index: 1, kind: input, shape index: {}]
  %s2 = inlined_call_operand.hbm [shape: bf16[128,128], index: 2, kind: input, shape index: {}]
  %s3 = inlined_call_operand.vmem [shape: f32[1,128], index: 3, kind: input, shape index: {}]
  %s4 = inlined_call_operand.vmem [shape: f32[1,128], index: 4, kind: input, shape index: {}]
  %s5 = inlined_call_operand.hbm [shape: bf16[32,128], index: 5, kind: input, shape index: {}]
  %s6 = inlined_call_operand.hbm [shape: bf16[32,128], index: 6, kind: input, shape index: {}]
  %s7 = inlined_call_operand.hbm [shape: bf16[32,128], index: 7, kind: input, shape index: {}]
  %s8 = inlined_call_operand.hbm [shape: bf16[32,128], index: 8, kind: input, shape index: {}]
  %s9 = inlined_call_operand.hbm [shape: bf16[32,128], index: 9, kind: input, shape index: {}]
  %s10 = inlined_call_operand.hbm [shape: bf16[32,128], index: 10, kind: input, shape index: {}]
  %s11 = inlined_call_operand.vmem [shape: f32[1,128], index: 11, kind: input, shape index: {}]
  %s12 = inlined_call_operand.vmem [shape: f32[1,128], index: 12, kind: input, shape index: {}]
  %s13 = inlined_call_operand.hbm [shape: bf16[32,128], index: 13, kind: input, shape index: {}]
  %s14 = inlined_call_operand.hbm [shape: bf16[32,128], index: 14, kind: input, shape index: {}]
  %s15 = inlined_call_operand.hbm [shape: bf16[32,128], index: 15, kind: input, shape index: {}]
  %s16 = inlined_call_operand.hbm [shape: bf16[32,128], index: 16, kind: input, shape index: {}]
  %s17 = inlined_call_operand.vmem [shape: f32[1,128], index: 17, kind: input, shape index: {}]
  %s18 = inlined_call_operand.vmem [shape: f32[1,128], index: 18, kind: input, shape index: {}]
  %s19 = inlined_call_operand.vmem [shape: f32[1,128], index: 19, kind: input, shape index: {}]
  %s20 = inlined_call_operand.hbm [shape: f32[8,128], index: 20, kind: output, shape index: {}]
  %s21 = sld [smem:[#allocation0]]
  $region142: #{tpu_custom_call.1} parent=0
    _
  %s23 = ssub.s32 1, %s21
  %s24 = scalar_select 0, %s23, %s21
  $region1: #{tpu_custom_call.1} parent=0
    #allocation6 [shape = 'u8[16384]{0}', space=vmem, size = 0x4000, scoped, tag = 'input window, operand 0, single buffered']
    #allocation7 [shape = 's32[1]{0}', space=sflag, size = 0x4, scoped, tag = 'scoped memory for tpu_custom_call.1']
    #allocation8 [shape = 's32[1]{0}', space=sflag, size = 0x4, scoped, tag = 'scoped memory for tpu_custom_call.1']
    #allocation9 [shape = 'u8[32768]{0}', space=vmem, size = 0x8000, scoped, tag = 'input window, operand 1, single buffered']
    #allocation10 [shape = 's32[1]{0}', space=sflag, size = 0x4, scoped, tag = 'scoped memory for tpu_custom_call.1']
    #allocation11 [shape = 'u8[32768]{0}', space=vmem, size = 0x8000, scoped, tag = 'input window, operand 2, single buffered']
    #allocation12 [shape = 'u8[8192]{0}', space=vmem, size = 0x2000, scoped, tag = 'input window, operand 5, single buffered']
    #allocation13 [shape = 's32[1]{0}', space=sflag, size = 0x4, scoped, tag = 'scoped memory for tpu_custom_call.1']
    #allocation14 [shape = 'u8[8192]{0}', space=vmem, size = 0x2000, scoped, tag = 'input window, operand 6, single buffered']
    #allocation15 [shape = 'u8[8192]{0}', space=vmem, size = 0x2000, scoped, tag = 'input window, operand 7, single buffered']
    #allocation16 [shape = 's32[1]{0}', space=sflag, size = 0x4, scoped, tag = 'scoped memory for tpu_custom_call.1']
    #allocation17 [shape = 'u8[8192]{0}', space=vmem, size = 0x2000, scoped, tag = 'input window, operand 8, single buffered']
    #allocation18 [shape = 'u8[8192]{0}', space=vmem, size = 0x2000, scoped, tag = 'input window, operand 9, single buffered']
    #allocation19 [shape = 's32[1]{0}', space=sflag, size = 0x4, scoped, tag = 'scoped memory for tpu_custom_call.1']
    #allocation20 [shape = 'u8[8192]{0}', space=vmem, size = 0x2000, scoped, tag = 'input window, operand 10, single buffered']
    #allocation21 [shape = 'u8[8192]{0}', space=vmem, size = 0x2000, scoped, tag = 'input window, operand 13, single buffered']
    #allocation22 [shape = 's32[1]{0}', space=sflag, size = 0x4, scoped, tag = 'scoped memory for tpu_custom_call.1']
    #allocation23 [shape = 'u8[8192]{0}', space=vmem, size = 0x2000, scoped, tag = 'input window, operand 14, single buffered']
    #allocation24 [shape = 'u8[8192]{0}', space=vmem, size = 0x2000, scoped, tag = 'input window, operand 15, single buffered']
    #allocation25 [shape = 's32[1]{0}', space=sflag, size = 0x4, scoped, tag = 'scoped memory for tpu_custom_call.1']
    #allocation26 [shape = 'u8[8192]{0}', space=vmem, size = 0x2000, scoped, tag = 'input window, operand 16, single buffered']
    #allocation27 [shape = 'u8[4096]{0}', space=vmem, size = 0x1000, scoped, tag = 'output window, operand 0, single buffered']
    %25 = vsyncpa [#allocation7], 0
    %26 = vsyncpa [#allocation10], 0
    %27 = vsyncpa [#allocation13], 0
    %28 = vsyncpa [#allocation16], 0
    %29 = vsyncpa [#allocation19], 0
    %30 = vsyncpa [#allocation22], 0
    %31 = vsyncpa [#allocation25], 0
    %32 = vsyncpa [#allocation8], 0
    // Predicated region
    $region2: #{tpu_custom_call.1} parent=1 // pred_check
      _
    $region3: #{tpu_custom_call.1} parent=1 // pred_check_branch
      %34 = sbr.rel (0) target = $region5
    $region4: #{tpu_custom_call.1} parent=1 // pred_region
      %36 = vsyncadd [#allocation7], 0
      %s37 = sshll.u32 %s0, 4
      %s38 = int_to_ptr.hbm [resolvable:$true] %s37
      %s39 = sshll.u32 [#allocation6], 4
      %s40 = int_to_ptr.vmem [resolvable:$true] %s39
      %45 = dma.hbm_to_vmem [thread:$0]  %s38, 512, %s40, [#allocation7], 64, 64, 4
    $region5: #{tpu_custom_call.1} parent=1 // pred_fallthru
      _
    // Predicated region
    $region6: #{tpu_custom_call.1} parent=1 // pred_check
      _
    $region7: #{tpu_custom_call.1} parent=1 // pred_check_branch
      %47 = sbr.rel (0) target = $region9
    $region8: #{tpu_custom_call.1} parent=1 // pred_region
      %49 = vsyncadd [#allocation10], 0
      %s50 = sshll.u32 %s1, 4
      %s51 = int_to_ptr.hbm [resolvable:$true] %s50
      %s52 = sshll.u32 [#allocation9], 4
      %s53 = int_to_ptr.vmem [resolvable:$true] %s52
      %58 = dma.hbm_to_vmem [thread:$0]  %s51, 1024, %s53, [#allocation10], 64, 64, 4
    $region9: #{tpu_custom_call.1} parent=1 // pred_fallthru
      _
    // Predicated region
    $region10: #{tpu_custom_call.1} parent=1 // pred_check
      _
    $region11: #{tpu_custom_call.1} parent=1 // pred_check_branch
      %60 = sbr.rel (0) target = $region13
    $region12: #{tpu_custom_call.1} parent=1 // pred_region
      %62 = vsyncadd [#allocation10], 0
      %s63 = sshll.u32 %s2, 4
      %s64 = int_to_ptr.hbm [resolvable:$true] %s63
      %s65 = sshll.u32 [#allocation11], 4
      %s66 = int_to_ptr.vmem [resolvable:$true] %s65
      %71 = dma.hbm_to_vmem [thread:$0]  %s64, 1024, %s66, [#allocation10], 64, 64, 4
    $region13: #{tpu_custom_call.1} parent=1 // pred_fallthru
      _
    // Predicated region
    $region14: #{tpu_custom_call.1} parent=1 // pred_check
      _
    $region15: #{tpu_custom_call.1} parent=1 // pred_check_branch
      %73 = sbr.rel (0) target = $region17
    $region16: #{tpu_custom_call.1} parent=1 // pred_region
      _
    $region17: #{tpu_custom_call.1} parent=1 // pred_fallthru
      _
    // Predicated region
    $region18: #{tpu_custom_call.1} parent=1 // pred_check
      _
    $region19: #{tpu_custom_call.1} parent=1 // pred_check_branch
      %75 = sbr.rel (0) target = $region21
    $region20: #{tpu_custom_call.1} parent=1 // pred_region
      _
    $region21: #{tpu_custom_call.1} parent=1 // pred_fallthru
      _
    // Predicated region
    $region22: #{tpu_custom_call.1} parent=1 // pred_check
      _
    $region23: #{tpu_custom_call.1} parent=1 // pred_check_branch
      %77 = sbr.rel (0) target = $region25
    $region24: #{tpu_custom_call.1} parent=1 // pred_region
      %79 = vsyncadd [#allocation13], 0
      %s80 = sshll.u32 %s5, 4
      %s81 = int_to_ptr.hbm [resolvable:$true] %s80
      %s82 = sshll.u32 [#allocation12], 4
      %s83 = int_to_ptr.vmem [resolvable:$true] %s82
      %88 = dma.hbm_to_vmem [thread:$0]  %s81, 256, %s83, [#allocation13], 64, 64, 4
    $region25: #{tpu_custom_call.1} parent=1 // pred_fallthru
      _
    // Predicated region
    $region26: #{tpu_custom_call.1} parent=1 // pred_check
      _
    $region27: #{tpu_custom_call.1} parent=1 // pred_check_branch
      %90 = sbr.rel (0) target = $region29
    $region28: #{tpu_custom_call.1} parent=1 // pred_region
      %92 = vsyncadd [#allocation13], 0
      %s93 = sshll.u32 %s6, 4
      %s94 = int_to_ptr.hbm [resolvable:$true] %s93
      %s95 = sshll.u32 [#allocation14], 4
      %s96 = int_to_ptr.vmem [resolvable:$true] %s95
      %101 = dma.hbm_to_vmem [thread:$0]  %s94, 256, %s96, [#allocation13], 64, 64, 4
    $region29: #{tpu_custom_call.1} parent=1 // pred_fallthru
      _
    // Predicated region
    $region30: #{tpu_custom_call.1} parent=1 // pred_check
      _
    $region31: #{tpu_custom_call.1} parent=1 // pred_check_branch
      %103 = sbr.rel (0) target = $region33
    $region32: #{tpu_custom_call.1} parent=1 // pred_region
      %105 = vsyncadd [#allocation16], 0
      %s106 = sshll.u32 %s7, 4
      %s107 = int_to_ptr.hbm [resolvable:$true] %s106
      %s108 = sshll.u32 [#allocation15], 4
      %s109 = int_to_ptr.vmem [resolvable:$true] %s108
      %114 = dma.hbm_to_vmem [thread:$0]  %s107, 256, %s109, [#allocation16], 64, 64, 4
    $region33: #{tpu_custom_call.1} parent=1 // pred_fallthru
      _
    // Predicated region
    $region34: #{tpu_custom_call.1} parent=1 // pred_check
      _
    $region35: #{tpu_custom_call.1} parent=1 // pred_check_branch
      %116 = sbr.rel (0) target = $region37
    $region36: #{tpu_custom_call.1} parent=1 // pred_region
      %118 = vsyncadd [#allocation16], 0
      %s119 = sshll.u32 %s8, 4
      %s120 = int_to_ptr.hbm [resolvable:$true] %s119
      %s121 = sshll.u32 [#allocation17], 4
      %s122 = int_to_ptr.vmem [resolvable:$true] %s121
      %127 = dma.hbm_to_vmem [thread:$0]  %s120, 256, %s122, [#allocation16], 64, 64, 4
    $region37: #{tpu_custom_call.1} parent=1 // pred_fallthru
      _
    // Predicated region
    $region38: #{tpu_custom_call.1} parent=1 // pred_check
      _
    $region39: #{tpu_custom_call.1} parent=1 // pred_check_branch
      %129 = sbr.rel (0) target = $region41
    $region40: #{tpu_custom_call.1} parent=1 // pred_region
      %131 = vsyncadd [#allocation19], 0
      %s132 = sshll.u32 %s9, 4
      %s133 = int_to_ptr.hbm [resolvable:$true] %s132
      %s134 = sshll.u32 [#allocation18], 4
      %s135 = int_to_ptr.vmem [resolvable:$true] %s134
      %140 = dma.hbm_to_vmem [thread:$0]  %s133, 256, %s135, [#allocation19], 64, 64, 4
    $region41: #{tpu_custom_call.1} parent=1 // pred_fallthru
      _
    // Predicated region
    $region42: #{tpu_custom_call.1} parent=1 // pred_check
      _
    $region43: #{tpu_custom_call.1} parent=1 // pred_check_branch
      %142 = sbr.rel (0) target = $region45
    $region44: #{tpu_custom_call.1} parent=1 // pred_region
      %144 = vsyncadd [#allocation19], 0
      %s145 = sshll.u32 %s10, 4
      %s146 = int_to_ptr.hbm [resolvable:$true] %s145
      %s147 = sshll.u32 [#allocation20], 4
      %s148 = int_to_ptr.vmem [resolvable:$true] %s147
      %153 = dma.hbm_to_vmem [thread:$0]  %s146, 256, %s148, [#allocation19], 64, 64, 4
    $region45: #{tpu_custom_call.1} parent=1 // pred_fallthru
      _
    // Predicated region
    $region46: #{tpu_custom_call.1} parent=1 // pred_check
      _
    $region47: #{tpu_custom_call.1} parent=1 // pred_check_branch
      %155 = sbr.rel (0) target = $region49
    $region48: #{tpu_custom_call.1} parent=1 // pred_region
      _
    $region49: #{tpu_custom_call.1} parent=1 // pred_fallthru
      _
    // Predicated region
    $region50: #{tpu_custom_call.1} parent=1 // pred_check
      _
    $region51: #{tpu_custom_call.1} parent=1 // pred_check_branch
      %157 = sbr.rel (0) target = $region53
    $region52: #{tpu_custom_call.1} parent=1 // pred_region
      _
    $region53: #{tpu_custom_call.1} parent=1 // pred_fallthru
      _
    // Predicated region
    $region54: #{tpu_custom_call.1} parent=1 // pred_check
      _
    $region55: #{tpu_custom_call.1} parent=1 // pred_check_branch
      %159 = sbr.rel (0) target = $region57
    $region56: #{tpu_custom_call.1} parent=1 // pred_region
      %161 = vsyncadd [#allocation22], 0
      %s162 = sshll.u32 %s13, 4
      %s163 = int_to_ptr.hbm [resolvable:$true] %s162
      %s164 = sshll.u32 [#allocation21], 4
      %s165 = int_to_ptr.vmem [resolvable:$true] %s164
      %170 = dma.hbm_to_vmem [thread:$0]  %s163, 256, %s165, [#allocation22], 64, 64, 4
    $region57: #{tpu_custom_call.1} parent=1 // pred_fallthru
      _
    // Predicated region
    $region58: #{tpu_custom_call.1} parent=1 // pred_check
      _
    $region59: #{tpu_custom_call.1} parent=1 // pred_check_branch
      %172 = sbr.rel (0) target = $region61
    $region60: #{tpu_custom_call.1} parent=1 // pred_region
      %174 = vsyncadd [#allocation22], 0
      %s175 = sshll.u32 %s14, 4
      %s176 = int_to_ptr.hbm [resolvable:$true] %s175
      %s177 = sshll.u32 [#allocation23], 4
      %s178 = int_to_ptr.vmem [resolvable:$true] %s177
      %183 = dma.hbm_to_vmem [thread:$0]  %s176, 256, %s178, [#allocation22], 64, 64, 4
    $region61: #{tpu_custom_call.1} parent=1 // pred_fallthru
      _
    // Predicated region
    $region62: #{tpu_custom_call.1} parent=1 // pred_check
      _
    $region63: #{tpu_custom_call.1} parent=1 // pred_check_branch
      %185 = sbr.rel (0) target = $region65
    $region64: #{tpu_custom_call.1} parent=1 // pred_region
      %187 = vsyncadd [#allocation25], 0
      %s188 = sshll.u32 %s15, 4
      %s189 = int_to_ptr.hbm [resolvable:$true] %s188
      %s190 = sshll.u32 [#allocation24], 4
      %s191 = int_to_ptr.vmem [resolvable:$true] %s190
      %196 = dma.hbm_to_vmem [thread:$0]  %s189, 256, %s191, [#allocation25], 64, 64, 4
    $region65: #{tpu_custom_call.1} parent=1 // pred_fallthru
      _
    // Predicated region
    $region66: #{tpu_custom_call.1} parent=1 // pred_check
      _
    $region67: #{tpu_custom_call.1} parent=1 // pred_check_branch
      %198 = sbr.rel (0) target = $region69
    $region68: #{tpu_custom_call.1} parent=1 // pred_region
      %200 = vsyncadd [#allocation25], 0
      %s201 = sshll.u32 %s16, 4
      %s202 = int_to_ptr.hbm [resolvable:$true] %s201
      %s203 = sshll.u32 [#allocation26], 4
      %s204 = int_to_ptr.vmem [resolvable:$true] %s203
      %209 = dma.hbm_to_vmem [thread:$0]  %s202, 256, %s204, [#allocation25], 64, 64, 4
    $region69: #{tpu_custom_call.1} parent=1 // pred_fallthru
      _
    // Predicated region
    $region70: #{tpu_custom_call.1} parent=1 // pred_check
      _
    $region71: #{tpu_custom_call.1} parent=1 // pred_check_branch
      %211 = sbr.rel (0) target = $region73
    $region72: #{tpu_custom_call.1} parent=1 // pred_region
      _
    $region73: #{tpu_custom_call.1} parent=1 // pred_fallthru
      _
    // Predicated region
    $region74: #{tpu_custom_call.1} parent=1 // pred_check
      _
    $region75: #{tpu_custom_call.1} parent=1 // pred_check_branch
      %213 = sbr.rel (0) target = $region77
    $region76: #{tpu_custom_call.1} parent=1 // pred_region
      _
    $region77: #{tpu_custom_call.1} parent=1 // pred_fallthru
      _
    // Predicated region
    $region78: #{tpu_custom_call.1} parent=1 // pred_check
      _
    $region79: #{tpu_custom_call.1} parent=1 // pred_check_branch
      %215 = sbr.rel (0) target = $region81
    $region80: #{tpu_custom_call.1} parent=1 // pred_region
      _
    $region81: #{tpu_custom_call.1} parent=1 // pred_fallthru
      _
    // Predicated region
    $region82: #{tpu_custom_call.1} parent=1 // pred_check
      _
    $region83: #{tpu_custom_call.1} parent=1 // pred_check_branch
      %217 = sbr.rel (0) target = $region85
    $region84: #{tpu_custom_call.1} parent=1 // pred_region
      %219 = dma.done [#allocation7], 512
    $region85: #{tpu_custom_call.1} parent=1 // pred_fallthru
      _
    // Predicated region
    $region86: #{tpu_custom_call.1} parent=1 // pred_check
      _
    $region87: #{tpu_custom_call.1} parent=1 // pred_check_branch
      %221 = sbr.rel (0) target = $region89
    $region88: #{tpu_custom_call.1} parent=1 // pred_region
      %223 = dma.done [#allocation10], 1024
    $region89: #{tpu_custom_call.1} parent=1 // pred_fallthru
      _
    // Predicated region
    $region90: #{tpu_custom_call.1} parent=1 // pred_check
      _
    $region91: #{tpu_custom_call.1} parent=1 // pred_check_branch
      %225 = sbr.rel (0) target = $region93
    $region92: #{tpu_custom_call.1} parent=1 // pred_region
      %227 = dma.done [#allocation10], 1024
    $region93: #{tpu_custom_call.1} parent=1 // pred_fallthru
      _
    // Predicated region
    $region94: #{tpu_custom_call.1} parent=1 // pred_check
      _
    $region95: #{tpu_custom_call.1} parent=1 // pred_check_branch
      %229 = sbr.rel (0) target = $region97
    $region96: #{tpu_custom_call.1} parent=1 // pred_region
      %231 = dma.done [#allocation13], 256
    $region97: #{tpu_custom_call.1} parent=1 // pred_fallthru
      _
    // Predicated region
    $region98: #{tpu_custom_call.1} parent=1 // pred_check
      _
    $region99: #{tpu_custom_call.1} parent=1 // pred_check_branch
      %233 = sbr.rel (0) target = $region101
    $region100: #{tpu_custom_call.1} parent=1 // pred_region
      %235 = dma.done [#allocation13], 256
    $region101: #{tpu_custom_call.1} parent=1 // pred_fallthru
      _
    // Predicated region
    $region102: #{tpu_custom_call.1} parent=1 // pred_check
      _
    $region103: #{tpu_custom_call.1} parent=1 // pred_check_branch
      %237 = sbr.rel (0) target = $region105
    $region104: #{tpu_custom_call.1} parent=1 // pred_region
      %239 = dma.done [#allocation16], 256
    $region105: #{tpu_custom_call.1} parent=1 // pred_fallthru
      _
    // Predicated region
    $region106: #{tpu_custom_call.1} parent=1 // pred_check
      _
    $region107: #{tpu_custom_call.1} parent=1 // pred_check_branch
      %241 = sbr.rel (0) target = $region109
    $region108: #{tpu_custom_call.1} parent=1 // pred_region
      %243 = dma.done [#allocation16], 256
    $region109: #{tpu_custom_call.1} parent=1 // pred_fallthru
      _
    // Predicated region
    $region110: #{tpu_custom_call.1} parent=1 // pred_check
      _
    $region111: #{tpu_custom_call.1} parent=1 // pred_check_branch
      %245 = sbr.rel (0) target = $region113
    $region112: #{tpu_custom_call.1} parent=1 // pred_region
      %247 = dma.done [#allocation19], 256
    $region113: #{tpu_custom_call.1} parent=1 // pred_fallthru
      _
    // Predicated region
    $region114: #{tpu_custom_call.1} parent=1 // pred_check
      _
    $region115: #{tpu_custom_call.1} parent=1 // pred_check_branch
      %249 = sbr.rel (0) target = $region117
    $region116: #{tpu_custom_call.1} parent=1 // pred_region
      %251 = dma.done [#allocation19], 256
    $region117: #{tpu_custom_call.1} parent=1 // pred_fallthru
      _
    // Predicated region
    $region118: #{tpu_custom_call.1} parent=1 // pred_check
      _
    $region119: #{tpu_custom_call.1} parent=1 // pred_check_branch
      %253 = sbr.rel (0) target = $region121
    $region120: #{tpu_custom_call.1} parent=1 // pred_region
      %255 = dma.done [#allocation22], 256
    $region121: #{tpu_custom_call.1} parent=1 // pred_fallthru
      _
    // Predicated region
    $region122: #{tpu_custom_call.1} parent=1 // pred_check
      _
    $region123: #{tpu_custom_call.1} parent=1 // pred_check_branch
      %257 = sbr.rel (0) target = $region125
    $region124: #{tpu_custom_call.1} parent=1 // pred_region
      %259 = dma.done [#allocation22], 256
    $region125: #{tpu_custom_call.1} parent=1 // pred_fallthru
      _
    // Predicated region
    $region126: #{tpu_custom_call.1} parent=1 // pred_check
      _
    $region127: #{tpu_custom_call.1} parent=1 // pred_check_branch
      %261 = sbr.rel (0) target = $region129
    $region128: #{tpu_custom_call.1} parent=1 // pred_region
      %263 = dma.done [#allocation25], 256
    $region129: #{tpu_custom_call.1} parent=1 // pred_fallthru
      _
    // Predicated region
    $region130: #{tpu_custom_call.1} parent=1 // pred_check
      _
    $region131: #{tpu_custom_call.1} parent=1 // pred_check_branch
      %265 = sbr.rel (0) target = $region133
    $region132: #{tpu_custom_call.1} parent=1 // pred_region
      %267 = dma.done [#allocation25], 256
    $region133: #{tpu_custom_call.1} parent=1 // pred_fallthru
      _
    %v269 = vld [vmem:[#allocation12] sm:$0xf]
    %v270 = vld [vmem:[#allocation12 + $0x4] sm:$0xf]
    %v271 = vld [vmem:[#allocation12 + $0x8] sm:$0xf]
    %v272 = vld [vmem:[#allocation12 + $0xc] sm:$0xf]
    %v273 = vld [vmem:[#allocation14] sm:$0xf]
    %v274 = vld [vmem:[#allocation14 + $0x4] sm:$0xf]
    %v275 = vld [vmem:[#allocation14 + $0x8] sm:$0xf]
    %v276 = vld [vmem:[#allocation14 + $0xc] sm:$0xf]
    %v277 = vld [vmem:[#allocation21] sm:$0xf]
    %v278 = vld [vmem:[#allocation21 + $0x4] sm:$0xf]
    %v279 = vld [vmem:[#allocation21 + $0x8] sm:$0xf]
    %v280 = vld [vmem:[#allocation21 + $0xc] sm:$0xf]
    %v281 = vld [vmem:[#allocation23] sm:$0xf]
    %v282 = vld [vmem:[#allocation23 + $0x4] sm:$0xf]
    %v283 = vld [vmem:[#allocation23 + $0x8] sm:$0xf]
    %v284 = vld [vmem:[#allocation23 + $0xc] sm:$0xf]
    %v285 = vld [vmem:[#allocation6] sm:$0xf]
    %v286 = vld [vmem:[#allocation6 + $0x4] sm:$0xf]
    %v287 = vld [vmem:[#allocation6 + $0x8] sm:$0xf]
    %v288 = vld [vmem:[#allocation6 + $0xc] sm:$0xf]
    %v289 = vld [vmem:[#allocation6 + $0x10] sm:$0xf]
    %v290 = vld [vmem:[#allocation6 + $0x14] sm:$0xf]
    %v291 = vld [vmem:[#allocation6 + $0x18] sm:$0xf]
    %v292 = vld [vmem:[#allocation6 + $0x1c] sm:$0xf]
    %v293 = vld [vmem:[#allocation9] sm:$0xf]
    %v294 = vld [vmem:[#allocation9 + $0x4] sm:$0xf]
    %v295 = vld [vmem:[#allocation9 + $0x8] sm:$0xf]
    %v296 = vld [vmem:[#allocation9 + $0xc] sm:$0xf]
    %v297 = vld [vmem:[#allocation9 + $0x10] sm:$0xf]
    %v298 = vld [vmem:[#allocation9 + $0x14] sm:$0xf]
    %v299 = vld [vmem:[#allocation9 + $0x18] sm:$0xf]
    %v300 = vld [vmem:[#allocation9 + $0x1c] sm:$0xf]
    %v301 = vld [vmem:[#allocation9 + $0x20] sm:$0xf]
    %v302 = vld [vmem:[#allocation9 + $0x24] sm:$0xf]
    %v303 = vld [vmem:[#allocation9 + $0x28] sm:$0xf]
    %v304 = vld [vmem:[#allocation9 + $0x2c] sm:$0xf]
    %v305 = vld [vmem:[#allocation9 + $0x30] sm:$0xf]
    %v306 = vld [vmem:[#allocation9 + $0x34] sm:$0xf]
    %v307 = vld [vmem:[#allocation9 + $0x38] sm:$0xf]
    %v308 = vld [vmem:[#allocation9 + $0x3c] sm:$0xf]
    %v309 = vld [vmem:[%s3] sm:$0x1]
    %v311 = vperm.slane %v309, 0
    %v321 = vunpack.c.l.b16 %v285
    %v322 = vunpack.c.l.b16 %v286
    %v323 = vunpack.c.l.b16 %v287
    %v324 = vunpack.c.l.b16 %v288
    %v325 = vunpack.c.l.b16 %v289
    %v326 = vunpack.c.l.b16 %v290
    %v327 = vunpack.c.l.b16 %v291
    %v328 = vunpack.c.l.b16 %v292
    %v329 = vpack.c.b16 %v322, %v321
    %v330 = vpack.c.b16 %v324, %v323
    %v331 = vpack.c.b16 %v326, %v325
    %v332 = vpack.c.b16 %v328, %v327
    %v353 = vunpack.c.l.b16 %v293
    %v354 = vunpack.c.l.b16 %v294
    %v355 = vunpack.c.l.b16 %v295
    %v356 = vunpack.c.l.b16 %v296
    %v357 = vunpack.c.l.b16 %v297
    %v358 = vunpack.c.l.b16 %v298
    %v359 = vunpack.c.l.b16 %v299
    %v360 = vunpack.c.l.b16 %v300
    %v361 = vunpack.c.l.b16 %v301
    %v362 = vunpack.c.l.b16 %v302
    %v363 = vunpack.c.l.b16 %v303
    %v364 = vunpack.c.l.b16 %v304
    %v365 = vunpack.c.l.b16 %v305
    %v366 = vunpack.c.l.b16 %v306
    %v367 = vunpack.c.l.b16 %v307
    %v368 = vunpack.c.l.b16 %v308
    %v369 = vpack.c.b16 %v354, %v353
    %v370 = vpack.c.b16 %v356, %v355
    %v371 = vpack.c.b16 %v358, %v357
    %v372 = vpack.c.b16 %v360, %v359
    %v373 = vpack.c.b16 %v362, %v361
    %v374 = vpack.c.b16 %v364, %v363
    %v375 = vpack.c.b16 %v366, %v365
    %v376 = vpack.c.b16 %v368, %v367
    %385 = vmatpush.bf16.msra.mxu0 %v376
    %386 = vmatpush.bf16.msra.mxu0 %v375
    %387 = vmatpush.bf16.msra.mxu0 %v374
    %388 = vmatpush.bf16.msra.mxu0 %v373
    %389 = vmatpush.bf16.msra.mxu0 %v372
    %390 = vmatpush.bf16.msra.mxu0 %v371
    %391 = vmatpush.bf16.msra.mxu0 %v370
    %392 = vmatpush.bf16.msra.mxu0 %v369
    %393 = vmatmul.bf16.gmra.mxu0 %v329
    %v394 = vpop.f32.mrf.mxu0
    %v395 = vadd.f32 %v311, %v394
    %v396 = vpop.f32.mrf.mxu0
    %v397 = vadd.f32 %v311, %v396
    %398 = vmatmul.bf16.gmra.mxu0 %v330
    %v399 = vpop.f32.mrf.mxu0
    %v400 = vadd.f32 %v311, %v399
    %v401 = vpop.f32.mrf.mxu0
    %v402 = vadd.f32 %v311, %v401
    %403 = vmatmul.bf16.gmra.mxu0 %v331
    %v404 = vpop.f32.mrf.mxu0
    %v405 = vadd.f32 %v311, %v404
    %v406 = vpop.f32.mrf.mxu0
    %v407 = vadd.f32 %v311, %v406
    %408 = vmatmul.bf16.gmra.mxu0 %v332
    %v409 = vpop.f32.mrf.mxu0
    %v410 = vadd.f32 %v311, %v409
    %v411 = vpop.f32.mrf.mxu0
    %v412 = vadd.f32 %v311, %v411
    %413 = vdwg.mxu0
    %414 = vst [vmem:[#allocation4] sm:$0xff] %v395
    %415 = vst [vmem:[#allocation4 + $0x8] sm:$0xff] %v397
    %416 = vst [vmem:[#allocation4 + $0x10] sm:$0xff] %v400
    %417 = vst [vmem:[#allocation4 + $0x18] sm:$0xff] %v402
    %418 = vst [vmem:[#allocation4 + $0x20] sm:$0xff] %v405
    %419 = vst [vmem:[#allocation4 + $0x28] sm:$0xff] %v407
    %420 = vst [vmem:[#allocation4 + $0x30] sm:$0xff] %v410
    %421 = vst [vmem:[#allocation4 + $0x38] sm:$0xff] %v412
    %v422 = vld [vmem:[#allocation11] sm:$0xf]
    %v423 = vld [vmem:[#allocation11 + $0x4] sm:$0xf]
    %v424 = vld [vmem:[#allocation11 + $0x8] sm:$0xf]
    %v425 = vld [vmem:[#allocation11 + $0xc] sm:$0xf]
    %v426 = vld [vmem:[#allocation11 + $0x10] sm:$0xf]
    %v427 = vld [vmem:[#allocation11 + $0x14] sm:$0xf]
    %v428 = vld [vmem:[#allocation11 + $0x18] sm:$0xf]
    %v429 = vld [vmem:[#allocation11 + $0x1c] sm:$0xf]
    %v430 = vld [vmem:[#allocation11 + $0x20] sm:$0xf]
    %v431 = vld [vmem:[#allocation11 + $0x24] sm:$0xf]
    %v432 = vld [vmem:[#allocation11 + $0x28] sm:$0xf]
    %v433 = vld [vmem:[#allocation11 + $0x2c] sm:$0xf]
    %v434 = vld [vmem:[#allocation11 + $0x30] sm:$0xf]
    %v435 = vld [vmem:[#allocation11 + $0x34] sm:$0xf]
    %v436 = vld [vmem:[#allocation11 + $0x38] sm:$0xf]
    %v437 = vld [vmem:[#allocation11 + $0x3c] sm:$0xf]
    %v438 = vld [vmem:[%s4] sm:$0x1]
    %v440 = vperm.slane %v438, 0
    %v458 = vunpack.c.l.b16 %v422
    %v459 = vunpack.c.l.b16 %v423
    %v460 = vunpack.c.l.b16 %v424
    %v461 = vunpack.c.l.b16 %v425
    %v462 = vunpack.c.l.b16 %v426
    %v463 = vunpack.c.l.b16 %v427
    %v464 = vunpack.c.l.b16 %v428
    %v465 = vunpack.c.l.b16 %v429
    %v466 = vunpack.c.l.b16 %v430
    %v467 = vunpack.c.l.b16 %v431
    %v468 = vunpack.c.l.b16 %v432
    %v469 = vunpack.c.l.b16 %v433
    %v470 = vunpack.c.l.b16 %v434
    %v471 = vunpack.c.l.b16 %v435
    %v472 = vunpack.c.l.b16 %v436
    %v473 = vunpack.c.l.b16 %v437
    %v474 = vpack.c.b16 %v459, %v458
    %v475 = vpack.c.b16 %v461, %v460
    %v476 = vpack.c.b16 %v463, %v462
    %v477 = vpack.c.b16 %v465, %v464
    %v478 = vpack.c.b16 %v467, %v466
    %v479 = vpack.c.b16 %v469, %v468
    %v480 = vpack.c.b16 %v471, %v470
    %v481 = vpack.c.b16 %v473, %v472
    %490 = vmatpush.bf16.msra.mxu0 %v481
    %491 = vmatpush.bf16.msra.mxu0 %v480
    %492 = vmatpush.bf16.msra.mxu0 %v479
    %493 = vmatpush.bf16.msra.mxu0 %v478
    %494 = vmatpush.bf16.msra.mxu0 %v477
    %495 = vmatpush.bf16.msra.mxu0 %v476
    %496 = vmatpush.bf16.msra.mxu0 %v475
    %497 = vmatpush.bf16.msra.mxu0 %v474
    %498 = vmatmul.bf16.gmra.mxu0 %v329
    %v499 = vpop.f32.mrf.mxu0
    %v500 = vadd.f32 %v440, %v499
    %v501 = vpop.f32.mrf.mxu0
    %v502 = vadd.f32 %v440, %v501
    %503 = vmatmul.bf16.gmra.mxu0 %v330
    %v504 = vpop.f32.mrf.mxu0
    %v505 = vadd.f32 %v440, %v504
    %v506 = vpop.f32.mrf.mxu0
    %v507 = vadd.f32 %v440, %v506
    %508 = vmatmul.bf16.gmra.mxu0 %v331
    %v509 = vpop.f32.mrf.mxu0
    %v510 = vadd.f32 %v440, %v509
    %v511 = vpop.f32.mrf.mxu0
    %v512 = vadd.f32 %v440, %v511
    %513 = vmatmul.bf16.gmra.mxu0 %v332
    %v514 = vpop.f32.mrf.mxu0
    %v515 = vadd.f32 %v440, %v514
    %v516 = vpop.f32.mrf.mxu0
    %v517 = vadd.f32 %v440, %v516
    %518 = vdwg.mxu0
    %519 = vst [vmem:[#allocation5] sm:$0xff] %v500
    %520 = vst [vmem:[#allocation5 + $0x8] sm:$0xff] %v502
    %521 = vst [vmem:[#allocation5 + $0x10] sm:$0xff] %v505
    %522 = vst [vmem:[#allocation5 + $0x18] sm:$0xff] %v507
    %523 = vst [vmem:[#allocation5 + $0x20] sm:$0xff] %v510
    %524 = vst [vmem:[#allocation5 + $0x28] sm:$0xff] %v512
    %525 = vst [vmem:[#allocation5 + $0x30] sm:$0xff] %v515
    %526 = vst [vmem:[#allocation5 + $0x38] sm:$0xff] %v517
    %v527 = vld [vmem:[#allocation4] sm:$0xff]
    %v532 = vunpack.c.l.b16 %v269
    %v533 = vunpack.c.l.b16 %v270
    %v534 = vunpack.c.l.b16 %v271
    %v535 = vunpack.c.l.b16 %v272
    %v536 = vpack.c.b16 %v533, %v532
    %v537 = vpack.c.b16 %v535, %v534
    %vm540 = vcmask 261120
    %v542 = vsel %vm540, 0, 0
    %544 = vmatpush.bf16.msra.mxu0 0
    %545 = vmatpush.bf16.msra.mxu0 0
    %546 = vmatpush.bf16.msra.mxu0 0
    %547 = vmatpush.bf16.msra.mxu0 0
    %548 = vmatpush.bf16.msra.mxu0 0
    %549 = vmatpush.bf16.msra.mxu0 0
    %550 = vmatpush.bf16.msra.mxu0 %v537
    %551 = vmatpush.bf16.msra.mxu0 %v536
    %552 = vmatmul.bf16.gmra.mxu0 %v542
    %v553 = vpop.f32.mrf.mxu0
    %v554 = vadd.f32 0.0, %v553
    %v555 = vpop.f32.mrf.mxu0
    %556 = vdwg.mxu0
    %v557 = vadd.f32 %v527, %v554
    %s558 = scalar_lea.vmem [#allocation5], 56
    %v559 = vld [vmem:[%s558] sm:$0xff]
    %v564 = vunpack.c.l.b16 %v273
    %v565 = vunpack.c.l.b16 %v274
    %v566 = vunpack.c.l.b16 %v275
    %v567 = vunpack.c.l.b16 %v276
    %v568 = vpack.c.b16 %v565, %v564
    %v569 = vpack.c.b16 %v567, %v566
    %572 = vmatpush.bf16.msra.mxu0 0
    %573 = vmatpush.bf16.msra.mxu0 0
    %574 = vmatpush.bf16.msra.mxu0 0
    %575 = vmatpush.bf16.msra.mxu0 0
    %576 = vmatpush.bf16.msra.mxu0 0
    %577 = vmatpush.bf16.msra.mxu0 0
    %578 = vmatpush.bf16.msra.mxu0 %v569
    %579 = vmatpush.bf16.msra.mxu0 %v568
    %580 = vmatmul.bf16.gmra.mxu0 %v542
    %v581 = vpop.f32.mrf.mxu0
    %v582 = vadd.f32 0.0, %v581
    %v583 = vpop.f32.mrf.mxu0
    %584 = vdwg.mxu0
    %v585 = vadd.f32 %v559, %v582
    %v586 = vmul.f32 %v557, 0.5
    %v587 = vtanh.pop %v586
    %v588 = vmul.f32 %v587, 0.5
    %v589 = vadd.f32 %v588, 0.5
    %v590 = vtanh.pop %v557
    %v591 = vmul.f32 %v589, 0.0
    %593 = vrot.lane.b32.xlu0 %v590, 64
    %v594 = vpop.permute.xlu0 %593
    %v596 = vmul.f32 %v589, %v594
    %598 = vrot.lane.b32.xlu0 %v596, 32
    %v599 = vpop.permute.xlu0 %598
    %v601 = vadd.f32 %v591, %v599
    %v602 = vtanh.pop %v601
    %604 = vrot.lane.b32.xlu0 %v602, 64
    %v605 = vpop.permute.xlu0 %604
    %v607 = vmul.f32 %v589, %v605
    %v608 = vmul.f32 %v585, 0.5
    %v609 = vtanh.pop %v608
    %v610 = vmul.f32 %v609, 0.5
    %v611 = vadd.f32 %v610, 0.5
    %v612 = vtanh.pop %v585
    %v613 = vmul.f32 %v611, 0.0
    %615 = vrot.lane.b32.xlu0 %v612, 64
    %v616 = vpop.permute.xlu0 %615
    %v618 = vmul.f32 %v611, %v616
    %620 = vrot.lane.b32.xlu0 %v618, 32
    %v621 = vpop.permute.xlu0 %620
    %v623 = vadd.f32 %v613, %v621
    %v624 = vtanh.pop %v623
    %626 = vrot.lane.b32.xlu0 %v624, 64
    %v627 = vpop.permute.xlu0 %626
    %v629 = vmul.f32 %v611, %v627
    %631 = vrot.lane.b32.xlu0 %v607, 32
    %v632 = vpop.permute.xlu0 %631
    %634 = vst.msk [vmem:[#allocation2] sm:$0xff] %vm540, %v632
    %636 = vrot.lane.b32.xlu0 %v629, 32
    %v637 = vpop.permute.xlu0 %636
    %s639 = scalar_lea.vmem [#allocation3], 56
    %640 = vst.msk [vmem:[%s639] sm:$0xff] %vm540, %v637
    %s641 = scalar_lea.vmem [#allocation4], 8
    %v642 = vld [vmem:[%s641] sm:$0xff]
    %v643 = vpack.c.bf16 %v607, %v607
    %645 = vrot.lane.b32.xlu0 %v643, 32
    %v646 = vpop.permute.xlu0 %645
    %v648 = vsel %vm540, %v646, 0
    %650 = vmatpush.bf16.msra.mxu0 0
    %651 = vmatpush.bf16.msra.mxu0 0
    %652 = vmatpush.bf16.msra.mxu0 0
    %653 = vmatpush.bf16.msra.mxu0 0
    %654 = vmatpush.bf16.msra.mxu0 0
    %655 = vmatpush.bf16.msra.mxu0 0
    %656 = vmatpush.bf16.msra.mxu0 %v537
    %657 = vmatpush.bf16.msra.mxu0 %v536
    %658 = vmatmul.bf16.gmra.mxu0 %v648
    %v659 = vpop.f32.mrf.mxu0
    %v660 = vadd.f32 0.0, %v659
    %v661 = vpop.f32.mrf.mxu0
    %662 = vdwg.mxu0
    %v663 = vadd.f32 %v642, %v660
    %s664 = scalar_lea.vmem [#allocation5], 48
    %v665 = vld [vmem:[%s664] sm:$0xff]
    %v666 = vpack.c.bf16 %v629, %v629
    %668 = vrot.lane.b32.xlu0 %v666, 32
    %v669 = vpop.permute.xlu0 %668
    %v671 = vsel %vm540, %v669, 0
    %673 = vmatpush.bf16.msra.mxu0 0
    %674 = vmatpush.bf16.msra.mxu0 0
    %675 = vmatpush.bf16.msra.mxu0 0
    %676 = vmatpush.bf16.msra.mxu0 0
    %677 = vmatpush.bf16.msra.mxu0 0
    %678 = vmatpush.bf16.msra.mxu0 0
    %679 = vmatpush.bf16.msra.mxu0 %v569
    %680 = vmatpush.bf16.msra.mxu0 %v568
    %681 = vmatmul.bf16.gmra.mxu0 %v671
    %v682 = vpop.f32.mrf.mxu0
    %v683 = vadd.f32 0.0, %v682
    %v684 = vpop.f32.mrf.mxu0
    %685 = vdwg.mxu0
    %v686 = vadd.f32 %v665, %v683
    %v687 = vmul.f32 %v663, 0.5
    %v688 = vtanh.pop %v687
    %v689 = vmul.f32 %v688, 0.5
    %v690 = vadd.f32 %v689, 0.5
    %v691 = vtanh.pop %v663
    %v692 = vmul.f32 %v690, %v601
    %694 = vrot.lane.b32.xlu0 %v691, 64
    %v695 = vpop.permute.xlu0 %694
    %v697 = vmul.f32 %v690, %v695
    %699 = vrot.lane.b32.xlu0 %v697, 32
    %v700 = vpop.permute.xlu0 %699
    %v702 = vadd.f32 %v692, %v700
    %v703 = vtanh.pop %v702
    %705 = vrot.lane.b32.xlu0 %v703, 64
    %v706 = vpop.permute.xlu0 %705
    %v708 = vmul.f32 %v690, %v706
    %v709 = vmul.f32 %v686, 0.5
    %v710 = vtanh.pop %v709
    %v711 = vmul.f32 %v710, 0.5
    %v712 = vadd.f32 %v711, 0.5
    %v713 = vtanh.pop %v686
    %v714 = vmul.f32 %v712, %v623
    %716 = vrot.lane.b32.xlu0 %v713, 64
    %v717 = vpop.permute.xlu0 %716
    %v719 = vmul.f32 %v712, %v717
    %721 = vrot.lane.b32.xlu0 %v719, 32
    %v722 = vpop.permute.xlu0 %721
    %v724 = vadd.f32 %v714, %v722
    %v725 = vtanh.pop %v724
    %727 = vrot.lane.b32.xlu0 %v725, 64
    %v728 = vpop.permute.xlu0 %727
    %v730 = vmul.f32 %v712, %v728
    %732 = vrot.lane.b32.xlu0 %v708, 32
    %v733 = vpop.permute.xlu0 %732
    %s735 = scalar_lea.vmem [#allocation2], 8
    %736 = vst.msk [vmem:[%s735] sm:$0xff] %vm540, %v733
    %738 = vrot.lane.b32.xlu0 %v730, 32
    %v739 = vpop.permute.xlu0 %738
    %s741 = scalar_lea.vmem [#allocation3], 48
    %742 = vst.msk [vmem:[%s741] sm:$0xff] %vm540, %v739
    %s743 = scalar_lea.vmem [#allocation4], 16
    %v744 = vld [vmem:[%s743] sm:$0xff]
    %v745 = vpack.c.bf16 %v708, %v708
    %747 = vrot.lane.b32.xlu0 %v745, 32
    %v748 = vpop.permute.xlu0 %747
    %v750 = vsel %vm540, %v748, 0
    %752 = vmatpush.bf16.msra.mxu0 0
    %753 = vmatpush.bf16.msra.mxu0 0
    %754 = vmatpush.bf16.msra.mxu0 0
    %755 = vmatpush.bf16.msra.mxu0 0
    %756 = vmatpush.bf16.msra.mxu0 0
    %757 = vmatpush.bf16.msra.mxu0 0
    %758 = vmatpush.bf16.msra.mxu0 %v537
    %759 = vmatpush.bf16.msra.mxu0 %v536
    %760 = vmatmul.bf16.gmra.mxu0 %v750
    %v761 = vpop.f32.mrf.mxu0
    %v762 = vadd.f32 0.0, %v761
    %v763 = vpop.f32.mrf.mxu0
    %764 = vdwg.mxu0
    %v765 = vadd.f32 %v744, %v762
    %s766 = scalar_lea.vmem [#allocation5], 40
    %v767 = vld [vmem:[%s766] sm:$0xff]
    %v768 = vpack.c.bf16 %v730, %v730
    %770 = vrot.lane.b32.xlu0 %v768, 32
    %v771 = vpop.permute.xlu0 %770
    %v773 = vsel %vm540, %v771, 0
    %775 = vmatpush.bf16.msra.mxu0 0
    %776 = vmatpush.bf16.msra.mxu0 0
    %777 = vmatpush.bf16.msra.mxu0 0
    %778 = vmatpush.bf16.msra.mxu0 0
    %779 = vmatpush.bf16.msra.mxu0 0
    %780 = vmatpush.bf16.msra.mxu0 0
    %781 = vmatpush.bf16.msra.mxu0 %v569
    %782 = vmatpush.bf16.msra.mxu0 %v568
    %783 = vmatmul.bf16.gmra.mxu0 %v773
    %v784 = vpop.f32.mrf.mxu0
    %v785 = vadd.f32 0.0, %v784
    %v786 = vpop.f32.mrf.mxu0
    %787 = vdwg.mxu0
    %v788 = vadd.f32 %v767, %v785
    %v789 = vmul.f32 %v765, 0.5
    %v790 = vtanh.pop %v789
    %v791 = vmul.f32 %v790, 0.5
    %v792 = vadd.f32 %v791, 0.5
    %v793 = vtanh.pop %v765
    %v794 = vmul.f32 %v792, %v702
    %796 = vrot.lane.b32.xlu0 %v793, 64
    %v797 = vpop.permute.xlu0 %796
    %v799 = vmul.f32 %v792, %v797
    %801 = vrot.lane.b32.xlu0 %v799, 32
    %v802 = vpop.permute.xlu0 %801
    %v804 = vadd.f32 %v794, %v802
    %v805 = vtanh.pop %v804
    %807 = vrot.lane.b32.xlu0 %v805, 64
    %v808 = vpop.permute.xlu0 %807
    %v810 = vmul.f32 %v792, %v808
    %v811 = vmul.f32 %v788, 0.5
    %v812 = vtanh.pop %v811
    %v813 = vmul.f32 %v812, 0.5
    %v814 = vadd.f32 %v813, 0.5
    %v815 = vtanh.pop %v788
    %v816 = vmul.f32 %v814, %v724
    %818 = vrot.lane.b32.xlu0 %v815, 64
    %v819 = vpop.permute.xlu0 %818
    %v821 = vmul.f32 %v814, %v819
    %823 = vrot.lane.b32.xlu0 %v821, 32
    %v824 = vpop.permute.xlu0 %823
    %v826 = vadd.f32 %v816, %v824
    %v827 = vtanh.pop %v826
    %829 = vrot.lane.b32.xlu0 %v827, 64
    %v830 = vpop.permute.xlu0 %829
    %v832 = vmul.f32 %v814, %v830
    %834 = vrot.lane.b32.xlu0 %v810, 32
    %v835 = vpop.permute.xlu0 %834
    %s837 = scalar_lea.vmem [#allocation2], 16
    %838 = vst.msk [vmem:[%s837] sm:$0xff] %vm540, %v835
    %840 = vrot.lane.b32.xlu0 %v832, 32
    %v841 = vpop.permute.xlu0 %840
    %s843 = scalar_lea.vmem [#allocation3], 40
    %844 = vst.msk [vmem:[%s843] sm:$0xff] %vm540, %v841
    %s845 = scalar_lea.vmem [#allocation4], 24
    %v846 = vld [vmem:[%s845] sm:$0xff]
    %v847 = vpack.c.bf16 %v810, %v810
    %849 = vrot.lane.b32.xlu0 %v847, 32
    %v850 = vpop.permute.xlu0 %849
    %v852 = vsel %vm540, %v850, 0
    %854 = vmatpush.bf16.msra.mxu0 0
    %855 = vmatpush.bf16.msra.mxu0 0
    %856 = vmatpush.bf16.msra.mxu0 0
    %857 = vmatpush.bf16.msra.mxu0 0
    %858 = vmatpush.bf16.msra.mxu0 0
    %859 = vmatpush.bf16.msra.mxu0 0
    %860 = vmatpush.bf16.msra.mxu0 %v537
    %861 = vmatpush.bf16.msra.mxu0 %v536
    %862 = vmatmul.bf16.gmra.mxu0 %v852
    %v863 = vpop.f32.mrf.mxu0
    %v864 = vadd.f32 0.0, %v863
    %v865 = vpop.f32.mrf.mxu0
    %866 = vdwg.mxu0
    %v867 = vadd.f32 %v846, %v864
    %s868 = scalar_lea.vmem [#allocation5], 32
    %v869 = vld [vmem:[%s868] sm:$0xff]
    %v870 = vpack.c.bf16 %v832, %v832
    %872 = vrot.lane.b32.xlu0 %v870, 32
    %v873 = vpop.permute.xlu0 %872
    %v875 = vsel %vm540, %v873, 0
    %877 = vmatpush.bf16.msra.mxu0 0
    %878 = vmatpush.bf16.msra.mxu0 0
    %879 = vmatpush.bf16.msra.mxu0 0
    %880 = vmatpush.bf16.msra.mxu0 0
    %881 = vmatpush.bf16.msra.mxu0 0
    %882 = vmatpush.bf16.msra.mxu0 0
    %883 = vmatpush.bf16.msra.mxu0 %v569
    %884 = vmatpush.bf16.msra.mxu0 %v568
    %885 = vmatmul.bf16.gmra.mxu0 %v875
    %v886 = vpop.f32.mrf.mxu0
    %v887 = vadd.f32 0.0, %v886
    %v888 = vpop.f32.mrf.mxu0
    %889 = vdwg.mxu0
    %v890 = vadd.f32 %v869, %v887
    %v891 = vmul.f32 %v867, 0.5
    %v892 = vtanh.pop %v891
    %v893 = vmul.f32 %v892, 0.5
    %v894 = vadd.f32 %v893, 0.5
    %v895 = vtanh.pop %v867
    %v896 = vmul.f32 %v894, %v804
    %898 = vrot.lane.b32.xlu0 %v895, 64
    %v899 = vpop.permute.xlu0 %898
    %v901 = vmul.f32 %v894, %v899
    %903 = vrot.lane.b32.xlu0 %v901, 32
    %v904 = vpop.permute.xlu0 %903
    %v906 = vadd.f32 %v896, %v904
    %v907 = vtanh.pop %v906
    %909 = vrot.lane.b32.xlu0 %v907, 64
    %v910 = vpop.permute.xlu0 %909
    %v912 = vmul.f32 %v894, %v910
    %v913 = vmul.f32 %v890, 0.5
    %v914 = vtanh.pop %v913
    %v915 = vmul.f32 %v914, 0.5
    %v916 = vadd.f32 %v915, 0.5
    %v917 = vtanh.pop %v890
    %v918 = vmul.f32 %v916, %v826
    %920 = vrot.lane.b32.xlu0 %v917, 64
    %v921 = vpop.permute.xlu0 %920
    %v923 = vmul.f32 %v916, %v921
    %925 = vrot.lane.b32.xlu0 %v923, 32
    %v926 = vpop.permute.xlu0 %925
    %v928 = vadd.f32 %v918, %v926
    %v929 = vtanh.pop %v928
    %931 = vrot.lane.b32.xlu0 %v929, 64
    %v932 = vpop.permute.xlu0 %931
    %v934 = vmul.f32 %v916, %v932
    %936 = vrot.lane.b32.xlu0 %v912, 32
    %v937 = vpop.permute.xlu0 %936
    %s939 = scalar_lea.vmem [#allocation2], 24
    %940 = vst.msk [vmem:[%s939] sm:$0xff] %vm540, %v937
    %942 = vrot.lane.b32.xlu0 %v934, 32
    %v943 = vpop.permute.xlu0 %942
    %s945 = scalar_lea.vmem [#allocation3], 32
    %946 = vst.msk [vmem:[%s945] sm:$0xff] %vm540, %v943
    %s947 = scalar_lea.vmem [#allocation4], 32
    %v948 = vld [vmem:[%s947] sm:$0xff]
    %v949 = vpack.c.bf16 %v912, %v912
    %951 = vrot.lane.b32.xlu0 %v949, 32
    %v952 = vpop.permute.xlu0 %951
    %v954 = vsel %vm540, %v952, 0
    %956 = vmatpush.bf16.msra.mxu0 0
    %957 = vmatpush.bf16.msra.mxu0 0
    %958 = vmatpush.bf16.msra.mxu0 0
    %959 = vmatpush.bf16.msra.mxu0 0
    %960 = vmatpush.bf16.msra.mxu0 0
    %961 = vmatpush.bf16.msra.mxu0 0
    %962 = vmatpush.bf16.msra.mxu0 %v537
    %963 = vmatpush.bf16.msra.mxu0 %v536
    %964 = vmatmul.bf16.gmra.mxu0 %v954
    %v965 = vpop.f32.mrf.mxu0
    %v966 = vadd.f32 0.0, %v965
    %v967 = vpop.f32.mrf.mxu0
    %968 = vdwg.mxu0
    %v969 = vadd.f32 %v948, %v966
    %s970 = scalar_lea.vmem [#allocation5], 24
    %v971 = vld [vmem:[%s970] sm:$0xff]
    %v972 = vpack.c.bf16 %v934, %v934
    %974 = vrot.lane.b32.xlu0 %v972, 32
    %v975 = vpop.permute.xlu0 %974
    %v977 = vsel %vm540, %v975, 0
    %979 = vmatpush.bf16.msra.mxu0 0
    %980 = vmatpush.bf16.msra.mxu0 0
    %981 = vmatpush.bf16.msra.mxu0 0
    %982 = vmatpush.bf16.msra.mxu0 0
    %983 = vmatpush.bf16.msra.mxu0 0
    %984 = vmatpush.bf16.msra.mxu0 0
    %985 = vmatpush.bf16.msra.mxu0 %v569
    %986 = vmatpush.bf16.msra.mxu0 %v568
    %987 = vmatmul.bf16.gmra.mxu0 %v977
    %v988 = vpop.f32.mrf.mxu0
    %v989 = vadd.f32 0.0, %v988
    %v990 = vpop.f32.mrf.mxu0
    %991 = vdwg.mxu0
    %v992 = vadd.f32 %v971, %v989
    %v993 = vmul.f32 %v969, 0.5
    %v994 = vtanh.pop %v993
    %v995 = vmul.f32 %v994, 0.5
    %v996 = vadd.f32 %v995, 0.5
    %v997 = vtanh.pop %v969
    %v998 = vmul.f32 %v996, %v906
    %1000 = vrot.lane.b32.xlu0 %v997, 64
    %v1001 = vpop.permute.xlu0 %1000
    %v1003 = vmul.f32 %v996, %v1001
    %1005 = vrot.lane.b32.xlu0 %v1003, 32
    %v1006 = vpop.permute.xlu0 %1005
    %v1008 = vadd.f32 %v998, %v1006
    %v1009 = vtanh.pop %v1008
    %1011 = vrot.lane.b32.xlu0 %v1009, 64
    %v1012 = vpop.permute.xlu0 %1011
    %v1014 = vmul.f32 %v996, %v1012
    %v1015 = vmul.f32 %v992, 0.5
    %v1016 = vtanh.pop %v1015
    %v1017 = vmul.f32 %v1016, 0.5
    %v1018 = vadd.f32 %v1017, 0.5
    %v1019 = vtanh.pop %v992
    %v1020 = vmul.f32 %v1018, %v928
    %1022 = vrot.lane.b32.xlu0 %v1019, 64
    %v1023 = vpop.permute.xlu0 %1022
    %v1025 = vmul.f32 %v1018, %v1023
    %1027 = vrot.lane.b32.xlu0 %v1025, 32
    %v1028 = vpop.permute.xlu0 %1027
    %v1030 = vadd.f32 %v1020, %v1028
    %v1031 = vtanh.pop %v1030
    %1033 = vrot.lane.b32.xlu0 %v1031, 64
    %v1034 = vpop.permute.xlu0 %1033
    %v1036 = vmul.f32 %v1018, %v1034
    %1038 = vrot.lane.b32.xlu0 %v1014, 32
    %v1039 = vpop.permute.xlu0 %1038
    %s1041 = scalar_lea.vmem [#allocation2], 32
    %1042 = vst.msk [vmem:[%s1041] sm:$0xff] %vm540, %v1039
    %1044 = vrot.lane.b32.xlu0 %v1036, 32
    %v1045 = vpop.permute.xlu0 %1044
    %s1047 = scalar_lea.vmem [#allocation3], 24
    %1048 = vst.msk [vmem:[%s1047] sm:$0xff] %vm540, %v1045
    %s1049 = scalar_lea.vmem [#allocation4], 40
    %v1050 = vld [vmem:[%s1049] sm:$0xff]
    %v1051 = vpack.c.bf16 %v1014, %v1014
    %1053 = vrot.lane.b32.xlu0 %v1051, 32
    %v1054 = vpop.permute.xlu0 %1053
    %v1056 = vsel %vm540, %v1054, 0
    %1058 = vmatpush.bf16.msra.mxu0 0
    %1059 = vmatpush.bf16.msra.mxu0 0
    %1060 = vmatpush.bf16.msra.mxu0 0
    %1061 = vmatpush.bf16.msra.mxu0 0
    %1062 = vmatpush.bf16.msra.mxu0 0
    %1063 = vmatpush.bf16.msra.mxu0 0
    %1064 = vmatpush.bf16.msra.mxu0 %v537
    %1065 = vmatpush.bf16.msra.mxu0 %v536
    %1066 = vmatmul.bf16.gmra.mxu0 %v1056
    %v1067 = vpop.f32.mrf.mxu0
    %v1068 = vadd.f32 0.0, %v1067
    %v1069 = vpop.f32.mrf.mxu0
    %1070 = vdwg.mxu0
    %v1071 = vadd.f32 %v1050, %v1068
    %s1072 = scalar_lea.vmem [#allocation5], 16
    %v1073 = vld [vmem:[%s1072] sm:$0xff]
    %v1074 = vpack.c.bf16 %v1036, %v1036
    %1076 = vrot.lane.b32.xlu0 %v1074, 32
    %v1077 = vpop.permute.xlu0 %1076
    %v1079 = vsel %vm540, %v1077, 0
    %1081 = vmatpush.bf16.msra.mxu0 0
    %1082 = vmatpush.bf16.msra.mxu0 0
    %1083 = vmatpush.bf16.msra.mxu0 0
    %1084 = vmatpush.bf16.msra.mxu0 0
    %1085 = vmatpush.bf16.msra.mxu0 0
    %1086 = vmatpush.bf16.msra.mxu0 0
    %1087 = vmatpush.bf16.msra.mxu0 %v569
    %1088 = vmatpush.bf16.msra.mxu0 %v568
    %1089 = vmatmul.bf16.gmra.mxu0 %v1079
    %v1090 = vpop.f32.mrf.mxu0
    %v1091 = vadd.f32 0.0, %v1090
    %v1092 = vpop.f32.mrf.mxu0
    %1093 = vdwg.mxu0
    %v1094 = vadd.f32 %v1073, %v1091
    %v1095 = vmul.f32 %v1071, 0.5
    %v1096 = vtanh.pop %v1095
    %v1097 = vmul.f32 %v1096, 0.5
    %v1098 = vadd.f32 %v1097, 0.5
    %v1099 = vtanh.pop %v1071
    %v1100 = vmul.f32 %v1098, %v1008
    %1102 = vrot.lane.b32.xlu0 %v1099, 64
    %v1103 = vpop.permute.xlu0 %1102
    %v1105 = vmul.f32 %v1098, %v1103
    %1107 = vrot.lane.b32.xlu0 %v1105, 32
    %v1108 = vpop.permute.xlu0 %1107
    %v1110 = vadd.f32 %v1100, %v1108
    %v1111 = vtanh.pop %v1110
    %1113 = vrot.lane.b32.xlu0 %v1111, 64
    %v1114 = vpop.permute.xlu0 %1113
    %v1116 = vmul.f32 %v1098, %v1114
    %v1117 = vmul.f32 %v1094, 0.5
    %v1118 = vtanh.pop %v1117
    %v1119 = vmul.f32 %v1118, 0.5
    %v1120 = vadd.f32 %v1119, 0.5
    %v1121 = vtanh.pop %v1094
    %v1122 = vmul.f32 %v1120, %v1030
    %1124 = vrot.lane.b32.xlu0 %v1121, 64
    %v1125 = vpop.permute.xlu0 %1124
    %v1127 = vmul.f32 %v1120, %v1125
    %1129 = vrot.lane.b32.xlu0 %v1127, 32
    %v1130 = vpop.permute.xlu0 %1129
    %v1132 = vadd.f32 %v1122, %v1130
    %v1133 = vtanh.pop %v1132
    %1135 = vrot.lane.b32.xlu0 %v1133, 64
    %v1136 = vpop.permute.xlu0 %1135
    %v1138 = vmul.f32 %v1120, %v1136
    %1140 = vrot.lane.b32.xlu0 %v1116, 32
    %v1141 = vpop.permute.xlu0 %1140
    %s1143 = scalar_lea.vmem [#allocation2], 40
    %1144 = vst.msk [vmem:[%s1143] sm:$0xff] %vm540, %v1141
    %1146 = vrot.lane.b32.xlu0 %v1138, 32
    %v1147 = vpop.permute.xlu0 %1146
    %s1149 = scalar_lea.vmem [#allocation3], 16
    %1150 = vst.msk [vmem:[%s1149] sm:$0xff] %vm540, %v1147
    %s1151 = scalar_lea.vmem [#allocation4], 48
    %v1152 = vld [vmem:[%s1151] sm:$0xff]
    %v1153 = vpack.c.bf16 %v1116, %v1116
    %1155 = vrot.lane.b32.xlu0 %v1153, 32
    %v1156 = vpop.permute.xlu0 %1155
    %v1158 = vsel %vm540, %v1156, 0
    %1160 = vmatpush.bf16.msra.mxu0 0
    %1161 = vmatpush.bf16.msra.mxu0 0
    %1162 = vmatpush.bf16.msra.mxu0 0
    %1163 = vmatpush.bf16.msra.mxu0 0
    %1164 = vmatpush.bf16.msra.mxu0 0
    %1165 = vmatpush.bf16.msra.mxu0 0
    %1166 = vmatpush.bf16.msra.mxu0 %v537
    %1167 = vmatpush.bf16.msra.mxu0 %v536
    %1168 = vmatmul.bf16.gmra.mxu0 %v1158
    %v1169 = vpop.f32.mrf.mxu0
    %v1170 = vadd.f32 0.0, %v1169
    %v1171 = vpop.f32.mrf.mxu0
    %1172 = vdwg.mxu0
    %v1173 = vadd.f32 %v1152, %v1170
    %s1174 = scalar_lea.vmem [#allocation5], 8
    %v1175 = vld [vmem:[%s1174] sm:$0xff]
    %v1176 = vpack.c.bf16 %v1138, %v1138
    %1178 = vrot.lane.b32.xlu0 %v1176, 32
    %v1179 = vpop.permute.xlu0 %1178
    %v1181 = vsel %vm540, %v1179, 0
    %1183 = vmatpush.bf16.msra.mxu0 0
    %1184 = vmatpush.bf16.msra.mxu0 0
    %1185 = vmatpush.bf16.msra.mxu0 0
    %1186 = vmatpush.bf16.msra.mxu0 0
    %1187 = vmatpush.bf16.msra.mxu0 0
    %1188 = vmatpush.bf16.msra.mxu0 0
    %1189 = vmatpush.bf16.msra.mxu0 %v569
    %1190 = vmatpush.bf16.msra.mxu0 %v568
    %1191 = vmatmul.bf16.gmra.mxu0 %v1181
    %v1192 = vpop.f32.mrf.mxu0
    %v1193 = vadd.f32 0.0, %v1192
    %v1194 = vpop.f32.mrf.mxu0
    %1195 = vdwg.mxu0
    %v1196 = vadd.f32 %v1175, %v1193
    %v1197 = vmul.f32 %v1173, 0.5
    %v1198 = vtanh.pop %v1197
    %v1199 = vmul.f32 %v1198, 0.5
    %v1200 = vadd.f32 %v1199, 0.5
    %v1201 = vtanh.pop %v1173
    %v1202 = vmul.f32 %v1200, %v1110
    %1204 = vrot.lane.b32.xlu0 %v1201, 64
    %v1205 = vpop.permute.xlu0 %1204
    %v1207 = vmul.f32 %v1200, %v1205
    %1209 = vrot.lane.b32.xlu0 %v1207, 32
    %v1210 = vpop.permute.xlu0 %1209
    %v1212 = vadd.f32 %v1202, %v1210
    %v1213 = vtanh.pop %v1212
    %1215 = vrot.lane.b32.xlu0 %v1213, 64
    %v1216 = vpop.permute.xlu0 %1215
    %v1218 = vmul.f32 %v1200, %v1216
    %v1219 = vmul.f32 %v1196, 0.5
    %v1220 = vtanh.pop %v1219
    %v1221 = vmul.f32 %v1220, 0.5
    %v1222 = vadd.f32 %v1221, 0.5
    %v1223 = vtanh.pop %v1196
    %v1224 = vmul.f32 %v1222, %v1132
    %1226 = vrot.lane.b32.xlu0 %v1223, 64
    %v1227 = vpop.permute.xlu0 %1226
    %v1229 = vmul.f32 %v1222, %v1227
    %1231 = vrot.lane.b32.xlu0 %v1229, 32
    %v1232 = vpop.permute.xlu0 %1231
    %v1234 = vadd.f32 %v1224, %v1232
    %v1235 = vtanh.pop %v1234
    %1237 = vrot.lane.b32.xlu0 %v1235, 64
    %v1238 = vpop.permute.xlu0 %1237
    %v1240 = vmul.f32 %v1222, %v1238
    %1242 = vrot.lane.b32.xlu0 %v1218, 32
    %v1243 = vpop.permute.xlu0 %1242
    %s1245 = scalar_lea.vmem [#allocation2], 48
    %1246 = vst.msk [vmem:[%s1245] sm:$0xff] %vm540, %v1243
    %1248 = vrot.lane.b32.xlu0 %v1240, 32
    %v1249 = vpop.permute.xlu0 %1248
    %s1251 = scalar_lea.vmem [#allocation3], 8
    %1252 = vst.msk [vmem:[%s1251] sm:$0xff] %vm540, %v1249
    %s1253 = scalar_lea.vmem [#allocation4], 56
    %v1254 = vld [vmem:[%s1253] sm:$0xff]
    %v1255 = vpack.c.bf16 %v1218, %v1218
    %1257 = vrot.lane.b32.xlu0 %v1255, 32
    %v1258 = vpop.permute.xlu0 %1257
    %v1260 = vsel %vm540, %v1258, 0
    %1262 = vmatpush.bf16.msra.mxu0 0
    %1263 = vmatpush.bf16.msra.mxu0 0
    %1264 = vmatpush.bf16.msra.mxu0 0
    %1265 = vmatpush.bf16.msra.mxu0 0
    %1266 = vmatpush.bf16.msra.mxu0 0
    %1267 = vmatpush.bf16.msra.mxu0 0
    %1268 = vmatpush.bf16.msra.mxu0 %v537
    %1269 = vmatpush.bf16.msra.mxu0 %v536
    %1270 = vmatmul.bf16.gmra.mxu0 %v1260
    %v1271 = vpop.f32.mrf.mxu0
    %v1272 = vadd.f32 0.0, %v1271
    %v1273 = vpop.f32.mrf.mxu0
    %1274 = vdwg.mxu0
    %v1275 = vadd.f32 %v1254, %v1272
    %v1276 = vld [vmem:[#allocation5] sm:$0xff]
    %v1277 = vpack.c.bf16 %v1240, %v1240
    %1279 = vrot.lane.b32.xlu0 %v1277, 32
    %v1280 = vpop.permute.xlu0 %1279
    %v1282 = vsel %vm540, %v1280, 0
    %1284 = vmatpush.bf16.msra.mxu0 0
    %1285 = vmatpush.bf16.msra.mxu0 0
    %1286 = vmatpush.bf16.msra.mxu0 0
    %1287 = vmatpush.bf16.msra.mxu0 0
    %1288 = vmatpush.bf16.msra.mxu0 0
    %1289 = vmatpush.bf16.msra.mxu0 0
    %1290 = vmatpush.bf16.msra.mxu0 %v569
    %1291 = vmatpush.bf16.msra.mxu0 %v568
    %1292 = vmatmul.bf16.gmra.mxu0 %v1282
    %v1293 = vpop.f32.mrf.mxu0
    %v1294 = vadd.f32 0.0, %v1293
    %v1295 = vpop.f32.mrf.mxu0
    %1296 = vdwg.mxu0
    %v1297 = vadd.f32 %v1276, %v1294
    %v1298 = vmul.f32 %v1275, 0.5
    %v1299 = vtanh.pop %v1298
    %v1300 = vmul.f32 %v1299, 0.5
    %v1301 = vadd.f32 %v1300, 0.5
    %v1302 = vtanh.pop %v1275
    %v1303 = vmul.f32 %v1301, %v1212
    %1305 = vrot.lane.b32.xlu0 %v1302, 64
    %v1306 = vpop.permute.xlu0 %1305
    %v1308 = vmul.f32 %v1301, %v1306
    %1310 = vrot.lane.b32.xlu0 %v1308, 32
    %v1311 = vpop.permute.xlu0 %1310
    %v1313 = vadd.f32 %v1303, %v1311
    %v1314 = vtanh.pop %v1313
    %1316 = vrot.lane.b32.xlu0 %v1314, 64
    %v1317 = vpop.permute.xlu0 %1316
    %v1319 = vmul.f32 %v1301, %v1317
    %v1320 = vmul.f32 %v1297, 0.5
    %v1321 = vtanh.pop %v1320
    %v1322 = vmul.f32 %v1321, 0.5
    %v1323 = vadd.f32 %v1322, 0.5
    %v1324 = vtanh.pop %v1297
    %v1325 = vmul.f32 %v1323, %v1234
    %1327 = vrot.lane.b32.xlu0 %v1324, 64
    %v1328 = vpop.permute.xlu0 %1327
    %v1330 = vmul.f32 %v1323, %v1328
    %1332 = vrot.lane.b32.xlu0 %v1330, 32
    %v1333 = vpop.permute.xlu0 %1332
    %v1335 = vadd.f32 %v1325, %v1333
    %v1336 = vtanh.pop %v1335
    %1338 = vrot.lane.b32.xlu0 %v1336, 64
    %v1339 = vpop.permute.xlu0 %1338
    %v1341 = vmul.f32 %v1323, %v1339
    %1343 = vrot.lane.b32.xlu0 %v1319, 32
    %v1344 = vpop.permute.xlu0 %1343
    %s1346 = scalar_lea.vmem [#allocation2], 56
    %1347 = vst.msk [vmem:[%s1346] sm:$0xff] %vm540, %v1344
    %1349 = vrot.lane.b32.xlu0 %v1341, 32
    %v1350 = vpop.permute.xlu0 %1349
    %1352 = vst.msk [vmem:[#allocation3] sm:$0xff] %vm540, %v1350
    %v1353 = vld [vmem:[#allocation2] sm:$0xff]
    %v1354 = vld [vmem:[#allocation2 + $0x8] sm:$0xff]
    %v1355 = vld [vmem:[#allocation2 + $0x10] sm:$0xff]
    %v1356 = vld [vmem:[#allocation2 + $0x18] sm:$0xff]
    %v1357 = vld [vmem:[#allocation2 + $0x20] sm:$0xff]
    %v1358 = vld [vmem:[#allocation2 + $0x28] sm:$0xff]
    %v1359 = vld [vmem:[#allocation2 + $0x30] sm:$0xff]
    %v1360 = vld [vmem:[#allocation2 + $0x38] sm:$0xff]
    %v1361 = vld [vmem:[#allocation3] sm:$0xff]
    %v1362 = vld [vmem:[#allocation3 + $0x8] sm:$0xff]
    %v1363 = vld [vmem:[#allocation3 + $0x10] sm:$0xff]
    %v1364 = vld [vmem:[#allocation3 + $0x18] sm:$0xff]
    %v1365 = vld [vmem:[#allocation3 + $0x20] sm:$0xff]
    %v1366 = vld [vmem:[#allocation3 + $0x28] sm:$0xff]
    %v1367 = vld [vmem:[#allocation3 + $0x30] sm:$0xff]
    %v1368 = vld [vmem:[#allocation3 + $0x38] sm:$0xff]
    %v1369 = vld [vmem:[#allocation15] sm:$0xf]
    %v1370 = vld [vmem:[#allocation15 + $0x4] sm:$0xf]
    %v1371 = vld [vmem:[#allocation15 + $0x8] sm:$0xf]
    %v1372 = vld [vmem:[#allocation15 + $0xc] sm:$0xf]
    %v1373 = vld [vmem:[#allocation17] sm:$0xf]
    %v1374 = vld [vmem:[#allocation17 + $0x4] sm:$0xf]
    %v1375 = vld [vmem:[#allocation17 + $0x8] sm:$0xf]
    %v1376 = vld [vmem:[#allocation17 + $0xc] sm:$0xf]
    %v1381 = vunpack.c.l.b16 %v1373
    %v1382 = vunpack.c.l.b16 %v1374
    %v1383 = vunpack.c.l.b16 %v1375
    %v1384 = vunpack.c.l.b16 %v1376
    %v1385 = vpack.c.b16 %v1382, %v1381
    %v1386 = vpack.c.b16 %v1384, %v1383
    %v1390 = vsel %vm540, %v1361, 0
    %v1393 = vsel %vm540, %v1362, 0
    %v1396 = vsel %vm540, %v1363, 0
    %v1399 = vsel %vm540, %v1364, 0
    %v1402 = vsel %vm540, %v1365, 0
    %v1405 = vsel %vm540, %v1366, 0
    %v1408 = vsel %vm540, %v1367, 0
    %v1411 = vsel %vm540, %v1368, 0
    %1413 = vmatpush.bf16.msra.mxu0 0
    %1414 = vmatpush.bf16.msra.mxu0 0
    %1415 = vmatpush.bf16.msra.mxu0 0
    %1416 = vmatpush.bf16.msra.mxu0 0
    %1417 = vmatpush.bf16.msra.mxu0 0
    %1418 = vmatpush.bf16.msra.mxu0 0
    %1419 = vmatpush.bf16.msra.mxu0 %v1386
    %1420 = vmatpush.bf16.msra.mxu0 %v1385
    %1421 = vmatmul.f32.gmra.mxu0 %v1390
    %v1422 = vpop.f32.mrf.mxu0
    %v1423 = vadd.f32 0.0, %v1422
    %1424 = vmatmul.f32.gmra.mxu0 %v1393
    %v1425 = vpop.f32.mrf.mxu0
    %v1426 = vadd.f32 0.0, %v1425
    %1427 = vmatmul.f32.gmra.mxu0 %v1396
    %v1428 = vpop.f32.mrf.mxu0
    %v1429 = vadd.f32 0.0, %v1428
    %1430 = vmatmul.f32.gmra.mxu0 %v1399
    %v1431 = vpop.f32.mrf.mxu0
    %v1432 = vadd.f32 0.0, %v1431
    %1433 = vmatmul.f32.gmra.mxu0 %v1402
    %v1434 = vpop.f32.mrf.mxu0
    %v1435 = vadd.f32 0.0, %v1434
    %1436 = vmatmul.f32.gmra.mxu0 %v1405
    %v1437 = vpop.f32.mrf.mxu0
    %v1438 = vadd.f32 0.0, %v1437
    %1439 = vmatmul.f32.gmra.mxu0 %v1408
    %v1440 = vpop.f32.mrf.mxu0
    %v1441 = vadd.f32 0.0, %v1440
    %1442 = vmatmul.f32.gmra.mxu0 %v1411
    %v1443 = vpop.f32.mrf.mxu0
    %v1444 = vadd.f32 0.0, %v1443
    %1445 = vdwg.mxu0
    %v1450 = vunpack.c.l.b16 %v1369
    %v1451 = vunpack.c.l.b16 %v1370
    %v1452 = vunpack.c.l.b16 %v1371
    %v1453 = vunpack.c.l.b16 %v1372
    %v1454 = vpack.c.b16 %v1451, %v1450
    %v1455 = vpack.c.b16 %v1453, %v1452
    %v1459 = vsel %vm540, %v1353, 0
    %v1462 = vsel %vm540, %v1354, 0
    %v1465 = vsel %vm540, %v1355, 0
    %v1468 = vsel %vm540, %v1356, 0
    %v1471 = vsel %vm540, %v1357, 0
    %v1474 = vsel %vm540, %v1358, 0
    %v1477 = vsel %vm540, %v1359, 0
    %v1480 = vsel %vm540, %v1360, 0
    %1482 = vmatpush.bf16.msra.mxu0 0
    %1483 = vmatpush.bf16.msra.mxu0 0
    %1484 = vmatpush.bf16.msra.mxu0 0
    %1485 = vmatpush.bf16.msra.mxu0 0
    %1486 = vmatpush.bf16.msra.mxu0 0
    %1487 = vmatpush.bf16.msra.mxu0 0
    %1488 = vmatpush.bf16.msra.mxu0 %v1455
    %1489 = vmatpush.bf16.msra.mxu0 %v1454
    %1490 = vmatmul.f32.gmra.mxu0 %v1459
    %v1491 = vpop.f32.mrf.mxu0
    %v1492 = vadd.f32 %v1423, %v1491
    %1493 = vmatmul.f32.gmra.mxu0 %v1462
    %v1494 = vpop.f32.mrf.mxu0
    %v1495 = vadd.f32 %v1426, %v1494
    %1496 = vmatmul.f32.gmra.mxu0 %v1465
    %v1497 = vpop.f32.mrf.mxu0
    %v1498 = vadd.f32 %v1429, %v1497
    %1499 = vmatmul.f32.gmra.mxu0 %v1468
    %v1500 = vpop.f32.mrf.mxu0
    %v1501 = vadd.f32 %v1432, %v1500
    %1502 = vmatmul.f32.gmra.mxu0 %v1471
    %v1503 = vpop.f32.mrf.mxu0
    %v1504 = vadd.f32 %v1435, %v1503
    %1505 = vmatmul.f32.gmra.mxu0 %v1474
    %v1506 = vpop.f32.mrf.mxu0
    %v1507 = vadd.f32 %v1438, %v1506
    %1508 = vmatmul.f32.gmra.mxu0 %v1477
    %v1509 = vpop.f32.mrf.mxu0
    %v1510 = vadd.f32 %v1441, %v1509
    %1511 = vmatmul.f32.gmra.mxu0 %v1480
    %v1512 = vpop.f32.mrf.mxu0
    %v1513 = vadd.f32 %v1444, %v1512
    %1514 = vdwg.mxu0
    %v1515 = vld [vmem:[%s11] sm:$0x1]
    %v1517 = vperm.slane %v1515, 0
    %v1519 = vadd.f32 %v1492, %v1517
    %v1520 = vadd.f32 %v1495, %v1517
    %v1521 = vadd.f32 %v1498, %v1517
    %v1522 = vadd.f32 %v1501, %v1517
    %v1523 = vadd.f32 %v1504, %v1517
    %v1524 = vadd.f32 %v1507, %v1517
    %v1525 = vadd.f32 %v1510, %v1517
    %v1526 = vadd.f32 %v1513, %v1517
    %1527 = vst [vmem:[#allocation4] sm:$0xff] %v1519
    %1528 = vst [vmem:[#allocation4 + $0x8] sm:$0xff] %v1520
    %1529 = vst [vmem:[#allocation4 + $0x10] sm:$0xff] %v1521
    %1530 = vst [vmem:[#allocation4 + $0x18] sm:$0xff] %v1522
    %1531 = vst [vmem:[#allocation4 + $0x20] sm:$0xff] %v1523
    %1532 = vst [vmem:[#allocation4 + $0x28] sm:$0xff] %v1524
    %1533 = vst [vmem:[#allocation4 + $0x30] sm:$0xff] %v1525
    %1534 = vst [vmem:[#allocation4 + $0x38] sm:$0xff] %v1526
    %v1535 = vld [vmem:[#allocation18] sm:$0xf]
    %v1536 = vld [vmem:[#allocation18 + $0x4] sm:$0xf]
    %v1537 = vld [vmem:[#allocation18 + $0x8] sm:$0xf]
    %v1538 = vld [vmem:[#allocation18 + $0xc] sm:$0xf]
    %v1539 = vld [vmem:[#allocation20] sm:$0xf]
    %v1540 = vld [vmem:[#allocation20 + $0x4] sm:$0xf]
    %v1541 = vld [vmem:[#allocation20 + $0x8] sm:$0xf]
    %v1542 = vld [vmem:[#allocation20 + $0xc] sm:$0xf]
    %v1547 = vunpack.c.l.b16 %v1539
    %v1548 = vunpack.c.l.b16 %v1540
    %v1549 = vunpack.c.l.b16 %v1541
    %v1550 = vunpack.c.l.b16 %v1542
    %v1551 = vpack.c.b16 %v1548, %v1547
    %v1552 = vpack.c.b16 %v1550, %v1549
    %1555 = vmatpush.bf16.msra.mxu0 0
    %1556 = vmatpush.bf16.msra.mxu0 0
    %1557 = vmatpush.bf16.msra.mxu0 0
    %1558 = vmatpush.bf16.msra.mxu0 0
    %1559 = vmatpush.bf16.msra.mxu0 0
    %1560 = vmatpush.bf16.msra.mxu0 0
    %1561 = vmatpush.bf16.msra.mxu0 %v1552
    %1562 = vmatpush.bf16.msra.mxu0 %v1551
    %1563 = vmatmul.f32.gmra.mxu0 %v1390
    %v1564 = vpop.f32.mrf.mxu0
    %v1565 = vadd.f32 0.0, %v1564
    %1566 = vmatmul.f32.gmra.mxu0 %v1393
    %v1567 = vpop.f32.mrf.mxu0
    %v1568 = vadd.f32 0.0, %v1567
    %1569 = vmatmul.f32.gmra.mxu0 %v1396
    %v1570 = vpop.f32.mrf.mxu0
    %v1571 = vadd.f32 0.0, %v1570
    %1572 = vmatmul.f32.gmra.mxu0 %v1399
    %v1573 = vpop.f32.mrf.mxu0
    %v1574 = vadd.f32 0.0, %v1573
    %1575 = vmatmul.f32.gmra.mxu0 %v1402
    %v1576 = vpop.f32.mrf.mxu0
    %v1577 = vadd.f32 0.0, %v1576
    %1578 = vmatmul.f32.gmra.mxu0 %v1405
    %v1579 = vpop.f32.mrf.mxu0
    %v1580 = vadd.f32 0.0, %v1579
    %1581 = vmatmul.f32.gmra.mxu0 %v1408
    %v1582 = vpop.f32.mrf.mxu0
    %v1583 = vadd.f32 0.0, %v1582
    %1584 = vmatmul.f32.gmra.mxu0 %v1411
    %v1585 = vpop.f32.mrf.mxu0
    %v1586 = vadd.f32 0.0, %v1585
    %1587 = vdwg.mxu0
    %v1592 = vunpack.c.l.b16 %v1535
    %v1593 = vunpack.c.l.b16 %v1536
    %v1594 = vunpack.c.l.b16 %v1537
    %v1595 = vunpack.c.l.b16 %v1538
    %v1596 = vpack.c.b16 %v1593, %v1592
    %v1597 = vpack.c.b16 %v1595, %v1594
    %1600 = vmatpush.bf16.msra.mxu0 0
    %1601 = vmatpush.bf16.msra.mxu0 0
    %1602 = vmatpush.bf16.msra.mxu0 0
    %1603 = vmatpush.bf16.msra.mxu0 0
    %1604 = vmatpush.bf16.msra.mxu0 0
    %1605 = vmatpush.bf16.msra.mxu0 0
    %1606 = vmatpush.bf16.msra.mxu0 %v1597
    %1607 = vmatpush.bf16.msra.mxu0 %v1596
    %1608 = vmatmul.f32.gmra.mxu0 %v1459
    %v1609 = vpop.f32.mrf.mxu0
    %v1610 = vadd.f32 %v1565, %v1609
    %1611 = vmatmul.f32.gmra.mxu0 %v1462
    %v1612 = vpop.f32.mrf.mxu0
    %v1613 = vadd.f32 %v1568, %v1612
    %1614 = vmatmul.f32.gmra.mxu0 %v1465
    %v1615 = vpop.f32.mrf.mxu0
    %v1616 = vadd.f32 %v1571, %v1615
    %1617 = vmatmul.f32.gmra.mxu0 %v1468
    %v1618 = vpop.f32.mrf.mxu0
    %v1619 = vadd.f32 %v1574, %v1618
    %1620 = vmatmul.f32.gmra.mxu0 %v1471
    %v1621 = vpop.f32.mrf.mxu0
    %v1622 = vadd.f32 %v1577, %v1621
    %1623 = vmatmul.f32.gmra.mxu0 %v1474
    %v1624 = vpop.f32.mrf.mxu0
    %v1625 = vadd.f32 %v1580, %v1624
    %1626 = vmatmul.f32.gmra.mxu0 %v1477
    %v1627 = vpop.f32.mrf.mxu0
    %v1628 = vadd.f32 %v1583, %v1627
    %1629 = vmatmul.f32.gmra.mxu0 %v1480
    %v1630 = vpop.f32.mrf.mxu0
    %v1631 = vadd.f32 %v1586, %v1630
    %1632 = vdwg.mxu0
    %v1633 = vld [vmem:[%s12] sm:$0x1]
    %v1635 = vperm.slane %v1633, 0
    %v1637 = vadd.f32 %v1610, %v1635
    %v1638 = vadd.f32 %v1613, %v1635
    %v1639 = vadd.f32 %v1616, %v1635
    %v1640 = vadd.f32 %v1619, %v1635
    %v1641 = vadd.f32 %v1622, %v1635
    %v1642 = vadd.f32 %v1625, %v1635
    %v1643 = vadd.f32 %v1628, %v1635
    %v1644 = vadd.f32 %v1631, %v1635
    %1645 = vst [vmem:[#allocation5] sm:$0xff] %v1637
    %1646 = vst [vmem:[#allocation5 + $0x8] sm:$0xff] %v1638
    %1647 = vst [vmem:[#allocation5 + $0x10] sm:$0xff] %v1639
    %1648 = vst [vmem:[#allocation5 + $0x18] sm:$0xff] %v1640
    %1649 = vst [vmem:[#allocation5 + $0x20] sm:$0xff] %v1641
    %1650 = vst [vmem:[#allocation5 + $0x28] sm:$0xff] %v1642
    %1651 = vst [vmem:[#allocation5 + $0x30] sm:$0xff] %v1643
    %1652 = vst [vmem:[#allocation5 + $0x38] sm:$0xff] %v1644
    %v1653 = vld [vmem:[#allocation4] sm:$0xff]
    %v1658 = vunpack.c.l.b16 %v277
    %v1659 = vunpack.c.l.b16 %v278
    %v1660 = vunpack.c.l.b16 %v279
    %v1661 = vunpack.c.l.b16 %v280
    %v1662 = vpack.c.b16 %v1659, %v1658
    %v1663 = vpack.c.b16 %v1661, %v1660
    %1666 = vmatpush.bf16.msra.mxu0 0
    %1667 = vmatpush.bf16.msra.mxu0 0
    %1668 = vmatpush.bf16.msra.mxu0 0
    %1669 = vmatpush.bf16.msra.mxu0 0
    %1670 = vmatpush.bf16.msra.mxu0 0
    %1671 = vmatpush.bf16.msra.mxu0 0
    %1672 = vmatpush.bf16.msra.mxu0 %v1663
    %1673 = vmatpush.bf16.msra.mxu0 %v1662
    %1674 = vmatmul.bf16.gmra.mxu0 %v542
    %v1675 = vpop.f32.mrf.mxu0
    %v1676 = vadd.f32 0.0, %v1675
    %v1677 = vpop.f32.mrf.mxu0
    %1678 = vdwg.mxu0
    %v1679 = vadd.f32 %v1653, %v1676
    %v1680 = vld [vmem:[%s558] sm:$0xff]
    %v1685 = vunpack.c.l.b16 %v281
    %v1686 = vunpack.c.l.b16 %v282
    %v1687 = vunpack.c.l.b16 %v283
    %v1688 = vunpack.c.l.b16 %v284
    %v1689 = vpack.c.b16 %v1686, %v1685
    %v1690 = vpack.c.b16 %v1688, %v1687
    %1693 = vmatpush.bf16.msra.mxu0 0
    %1694 = vmatpush.bf16.msra.mxu0 0
    %1695 = vmatpush.bf16.msra.mxu0 0
    %1696 = vmatpush.bf16.msra.mxu0 0
    %1697 = vmatpush.bf16.msra.mxu0 0
    %1698 = vmatpush.bf16.msra.mxu0 0
    %1699 = vmatpush.bf16.msra.mxu0 %v1690
    %1700 = vmatpush.bf16.msra.mxu0 %v1689
    %1701 = vmatmul.bf16.gmra.mxu0 %v542
    %v1702 = vpop.f32.mrf.mxu0
    %v1703 = vadd.f32 0.0, %v1702
    %v1704 = vpop.f32.mrf.mxu0
    %1705 = vdwg.mxu0
    %v1706 = vadd.f32 %v1680, %v1703
    %v1707 = vmul.f32 %v1679, 0.5
    %v1708 = vtanh.pop %v1707
    %v1709 = vmul.f32 %v1708, 0.5
    %v1710 = vadd.f32 %v1709, 0.5
    %v1711 = vtanh.pop %v1679
    %v1712 = vmul.f32 %v1710, 0.0
    %1714 = vrot.lane.b32.xlu0 %v1711, 64
    %v1715 = vpop.permute.xlu0 %1714
    %v1717 = vmul.f32 %v1710, %v1715
    %1719 = vrot.lane.b32.xlu0 %v1717, 32
    %v1720 = vpop.permute.xlu0 %1719
    %v1722 = vadd.f32 %v1712, %v1720
    %v1723 = vtanh.pop %v1722
    %1725 = vrot.lane.b32.xlu0 %v1723, 64
    %v1726 = vpop.permute.xlu0 %1725
    %v1728 = vmul.f32 %v1710, %v1726
    %v1729 = vmul.f32 %v1706, 0.5
    %v1730 = vtanh.pop %v1729
    %v1731 = vmul.f32 %v1730, 0.5
    %v1732 = vadd.f32 %v1731, 0.5
    %v1733 = vtanh.pop %v1706
    %v1734 = vmul.f32 %v1732, 0.0
    %1736 = vrot.lane.b32.xlu0 %v1733, 64
    %v1737 = vpop.permute.xlu0 %1736
    %v1739 = vmul.f32 %v1732, %v1737
    %1741 = vrot.lane.b32.xlu0 %v1739, 32
    %v1742 = vpop.permute.xlu0 %1741
    %v1744 = vadd.f32 %v1734, %v1742
    %v1745 = vtanh.pop %v1744
    %1747 = vrot.lane.b32.xlu0 %v1745, 64
    %v1748 = vpop.permute.xlu0 %1747
    %v1750 = vmul.f32 %v1732, %v1748
    %v1751 = vld [vmem:[%s641] sm:$0xff]
    %v1752 = vpack.c.bf16 %v1728, %v1728
    %1754 = vrot.lane.b32.xlu0 %v1752, 32
    %v1755 = vpop.permute.xlu0 %1754
    %v1757 = vsel %vm540, %v1755, 0
    %1759 = vmatpush.bf16.msra.mxu0 0
    %1760 = vmatpush.bf16.msra.mxu0 0
    %1761 = vmatpush.bf16.msra.mxu0 0
    %1762 = vmatpush.bf16.msra.mxu0 0
    %1763 = vmatpush.bf16.msra.mxu0 0
    %1764 = vmatpush.bf16.msra.mxu0 0
    %1765 = vmatpush.bf16.msra.mxu0 %v1663
    %1766 = vmatpush.bf16.msra.mxu0 %v1662
    %1767 = vmatmul.bf16.gmra.mxu0 %v1757
    %v1768 = vpop.f32.mrf.mxu0
    %v1769 = vadd.f32 0.0, %v1768
    %v1770 = vpop.f32.mrf.mxu0
    %1771 = vdwg.mxu0
    %v1772 = vadd.f32 %v1751, %v1769
    %v1773 = vld [vmem:[%s664] sm:$0xff]
    %v1774 = vpack.c.bf16 %v1750, %v1750
    %1776 = vrot.lane.b32.xlu0 %v1774, 32
    %v1777 = vpop.permute.xlu0 %1776
    %v1779 = vsel %vm540, %v1777, 0
    %1781 = vmatpush.bf16.msra.mxu0 0
    %1782 = vmatpush.bf16.msra.mxu0 0
    %1783 = vmatpush.bf16.msra.mxu0 0
    %1784 = vmatpush.bf16.msra.mxu0 0
    %1785 = vmatpush.bf16.msra.mxu0 0
    %1786 = vmatpush.bf16.msra.mxu0 0
    %1787 = vmatpush.bf16.msra.mxu0 %v1690
    %1788 = vmatpush.bf16.msra.mxu0 %v1689
    %1789 = vmatmul.bf16.gmra.mxu0 %v1779
    %v1790 = vpop.f32.mrf.mxu0
    %v1791 = vadd.f32 0.0, %v1790
    %v1792 = vpop.f32.mrf.mxu0
    %1793 = vdwg.mxu0
    %v1794 = vadd.f32 %v1773, %v1791
    %v1795 = vmul.f32 %v1772, 0.5
    %v1796 = vtanh.pop %v1795
    %v1797 = vmul.f32 %v1796, 0.5
    %v1798 = vadd.f32 %v1797, 0.5
    %v1799 = vtanh.pop %v1772
    %v1800 = vmul.f32 %v1798, %v1722
    %1802 = vrot.lane.b32.xlu0 %v1799, 64
    %v1803 = vpop.permute.xlu0 %1802
    %v1805 = vmul.f32 %v1798, %v1803
    %1807 = vrot.lane.b32.xlu0 %v1805, 32
    %v1808 = vpop.permute.xlu0 %1807
    %v1810 = vadd.f32 %v1800, %v1808
    %v1811 = vtanh.pop %v1810
    %1813 = vrot.lane.b32.xlu0 %v1811, 64
    %v1814 = vpop.permute.xlu0 %1813
    %v1816 = vmul.f32 %v1798, %v1814
    %v1817 = vmul.f32 %v1794, 0.5
    %v1818 = vtanh.pop %v1817
    %v1819 = vmul.f32 %v1818, 0.5
    %v1820 = vadd.f32 %v1819, 0.5
    %v1821 = vtanh.pop %v1794
    %v1822 = vmul.f32 %v1820, %v1744
    %1824 = vrot.lane.b32.xlu0 %v1821, 64
    %v1825 = vpop.permute.xlu0 %1824
    %v1827 = vmul.f32 %v1820, %v1825
    %1829 = vrot.lane.b32.xlu0 %v1827, 32
    %v1830 = vpop.permute.xlu0 %1829
    %v1832 = vadd.f32 %v1822, %v1830
    %v1833 = vtanh.pop %v1832
    %1835 = vrot.lane.b32.xlu0 %v1833, 64
    %v1836 = vpop.permute.xlu0 %1835
    %v1838 = vmul.f32 %v1820, %v1836
    %v1839 = vld [vmem:[%s743] sm:$0xff]
    %v1840 = vpack.c.bf16 %v1816, %v1816
    %1842 = vrot.lane.b32.xlu0 %v1840, 32
    %v1843 = vpop.permute.xlu0 %1842
    %v1845 = vsel %vm540, %v1843, 0
    %1847 = vmatpush.bf16.msra.mxu0 0
    %1848 = vmatpush.bf16.msra.mxu0 0
    %1849 = vmatpush.bf16.msra.mxu0 0
    %1850 = vmatpush.bf16.msra.mxu0 0
    %1851 = vmatpush.bf16.msra.mxu0 0
    %1852 = vmatpush.bf16.msra.mxu0 0
    %1853 = vmatpush.bf16.msra.mxu0 %v1663
    %1854 = vmatpush.bf16.msra.mxu0 %v1662
    %1855 = vmatmul.bf16.gmra.mxu0 %v1845
    %v1856 = vpop.f32.mrf.mxu0
    %v1857 = vadd.f32 0.0, %v1856
    %v1858 = vpop.f32.mrf.mxu0
    %1859 = vdwg.mxu0
    %v1860 = vadd.f32 %v1839, %v1857
    %v1861 = vld [vmem:[%s766] sm:$0xff]
    %v1862 = vpack.c.bf16 %v1838, %v1838
    %1864 = vrot.lane.b32.xlu0 %v1862, 32
    %v1865 = vpop.permute.xlu0 %1864
    %v1867 = vsel %vm540, %v1865, 0
    %1869 = vmatpush.bf16.msra.mxu0 0
    %1870 = vmatpush.bf16.msra.mxu0 0
    %1871 = vmatpush.bf16.msra.mxu0 0
    %1872 = vmatpush.bf16.msra.mxu0 0
    %1873 = vmatpush.bf16.msra.mxu0 0
    %1874 = vmatpush.bf16.msra.mxu0 0
    %1875 = vmatpush.bf16.msra.mxu0 %v1690
    %1876 = vmatpush.bf16.msra.mxu0 %v1689
    %1877 = vmatmul.bf16.gmra.mxu0 %v1867
    %v1878 = vpop.f32.mrf.mxu0
    %v1879 = vadd.f32 0.0, %v1878
    %v1880 = vpop.f32.mrf.mxu0
    %1881 = vdwg.mxu0
    %v1882 = vadd.f32 %v1861, %v1879
    %v1883 = vmul.f32 %v1860, 0.5
    %v1884 = vtanh.pop %v1883
    %v1885 = vmul.f32 %v1884, 0.5
    %v1886 = vadd.f32 %v1885, 0.5
    %v1887 = vtanh.pop %v1860
    %v1888 = vmul.f32 %v1886, %v1810
    %1890 = vrot.lane.b32.xlu0 %v1887, 64
    %v1891 = vpop.permute.xlu0 %1890
    %v1893 = vmul.f32 %v1886, %v1891
    %1895 = vrot.lane.b32.xlu0 %v1893, 32
    %v1896 = vpop.permute.xlu0 %1895
    %v1898 = vadd.f32 %v1888, %v1896
    %v1899 = vtanh.pop %v1898
    %1901 = vrot.lane.b32.xlu0 %v1899, 64
    %v1902 = vpop.permute.xlu0 %1901
    %v1904 = vmul.f32 %v1886, %v1902
    %v1905 = vmul.f32 %v1882, 0.5
    %v1906 = vtanh.pop %v1905
    %v1907 = vmul.f32 %v1906, 0.5
    %v1908 = vadd.f32 %v1907, 0.5
    %v1909 = vtanh.pop %v1882
    %v1910 = vmul.f32 %v1908, %v1832
    %1912 = vrot.lane.b32.xlu0 %v1909, 64
    %v1913 = vpop.permute.xlu0 %1912
    %v1915 = vmul.f32 %v1908, %v1913
    %1917 = vrot.lane.b32.xlu0 %v1915, 32
    %v1918 = vpop.permute.xlu0 %1917
    %v1920 = vadd.f32 %v1910, %v1918
    %v1921 = vtanh.pop %v1920
    %1923 = vrot.lane.b32.xlu0 %v1921, 64
    %v1924 = vpop.permute.xlu0 %1923
    %v1926 = vmul.f32 %v1908, %v1924
    %v1927 = vld [vmem:[%s845] sm:$0xff]
    %v1928 = vpack.c.bf16 %v1904, %v1904
    %1930 = vrot.lane.b32.xlu0 %v1928, 32
    %v1931 = vpop.permute.xlu0 %1930
    %v1933 = vsel %vm540, %v1931, 0
    %1935 = vmatpush.bf16.msra.mxu0 0
    %1936 = vmatpush.bf16.msra.mxu0 0
    %1937 = vmatpush.bf16.msra.mxu0 0
    %1938 = vmatpush.bf16.msra.mxu0 0
    %1939 = vmatpush.bf16.msra.mxu0 0
    %1940 = vmatpush.bf16.msra.mxu0 0
    %1941 = vmatpush.bf16.msra.mxu0 %v1663
    %1942 = vmatpush.bf16.msra.mxu0 %v1662
    %1943 = vmatmul.bf16.gmra.mxu0 %v1933
    %v1944 = vpop.f32.mrf.mxu0
    %v1945 = vadd.f32 0.0, %v1944
    %v1946 = vpop.f32.mrf.mxu0
    %1947 = vdwg.mxu0
    %v1948 = vadd.f32 %v1927, %v1945
    %v1949 = vld [vmem:[%s868] sm:$0xff]
    %v1950 = vpack.c.bf16 %v1926, %v1926
    %1952 = vrot.lane.b32.xlu0 %v1950, 32
    %v1953 = vpop.permute.xlu0 %1952
    %v1955 = vsel %vm540, %v1953, 0
    %1957 = vmatpush.bf16.msra.mxu0 0
    %1958 = vmatpush.bf16.msra.mxu0 0
    %1959 = vmatpush.bf16.msra.mxu0 0
    %1960 = vmatpush.bf16.msra.mxu0 0
    %1961 = vmatpush.bf16.msra.mxu0 0
    %1962 = vmatpush.bf16.msra.mxu0 0
    %1963 = vmatpush.bf16.msra.mxu0 %v1690
    %1964 = vmatpush.bf16.msra.mxu0 %v1689
    %1965 = vmatmul.bf16.gmra.mxu0 %v1955
    %v1966 = vpop.f32.mrf.mxu0
    %v1967 = vadd.f32 0.0, %v1966
    %v1968 = vpop.f32.mrf.mxu0
    %1969 = vdwg.mxu0
    %v1970 = vadd.f32 %v1949, %v1967
    %v1971 = vmul.f32 %v1948, 0.5
    %v1972 = vtanh.pop %v1971
    %v1973 = vmul.f32 %v1972, 0.5
    %v1974 = vadd.f32 %v1973, 0.5
    %v1975 = vtanh.pop %v1948
    %v1976 = vmul.f32 %v1974, %v1898
    %1978 = vrot.lane.b32.xlu0 %v1975, 64
    %v1979 = vpop.permute.xlu0 %1978
    %v1981 = vmul.f32 %v1974, %v1979
    %1983 = vrot.lane.b32.xlu0 %v1981, 32
    %v1984 = vpop.permute.xlu0 %1983
    %v1986 = vadd.f32 %v1976, %v1984
    %v1987 = vtanh.pop %v1986
    %1989 = vrot.lane.b32.xlu0 %v1987, 64
    %v1990 = vpop.permute.xlu0 %1989
    %v1992 = vmul.f32 %v1974, %v1990
    %v1993 = vmul.f32 %v1970, 0.5
    %v1994 = vtanh.pop %v1993
    %v1995 = vmul.f32 %v1994, 0.5
    %v1996 = vadd.f32 %v1995, 0.5
    %v1997 = vtanh.pop %v1970
    %v1998 = vmul.f32 %v1996, %v1920
    %2000 = vrot.lane.b32.xlu0 %v1997, 64
    %v2001 = vpop.permute.xlu0 %2000
    %v2003 = vmul.f32 %v1996, %v2001
    %2005 = vrot.lane.b32.xlu0 %v2003, 32
    %v2006 = vpop.permute.xlu0 %2005
    %v2008 = vadd.f32 %v1998, %v2006
    %v2009 = vtanh.pop %v2008
    %2011 = vrot.lane.b32.xlu0 %v2009, 64
    %v2012 = vpop.permute.xlu0 %2011
    %v2014 = vmul.f32 %v1996, %v2012
    %v2015 = vld [vmem:[%s947] sm:$0xff]
    %v2016 = vpack.c.bf16 %v1992, %v1992
    %2018 = vrot.lane.b32.xlu0 %v2016, 32
    %v2019 = vpop.permute.xlu0 %2018
    %v2021 = vsel %vm540, %v2019, 0
    %2023 = vmatpush.bf16.msra.mxu0 0
    %2024 = vmatpush.bf16.msra.mxu0 0
    %2025 = vmatpush.bf16.msra.mxu0 0
    %2026 = vmatpush.bf16.msra.mxu0 0
    %2027 = vmatpush.bf16.msra.mxu0 0
    %2028 = vmatpush.bf16.msra.mxu0 0
    %2029 = vmatpush.bf16.msra.mxu0 %v1663
    %2030 = vmatpush.bf16.msra.mxu0 %v1662
    %2031 = vmatmul.bf16.gmra.mxu0 %v2021
    %v2032 = vpop.f32.mrf.mxu0
    %v2033 = vadd.f32 0.0, %v2032
    %v2034 = vpop.f32.mrf.mxu0
    %2035 = vdwg.mxu0
    %v2036 = vadd.f32 %v2015, %v2033
    %v2037 = vld [vmem:[%s970] sm:$0xff]
    %v2038 = vpack.c.bf16 %v2014, %v2014
    %2040 = vrot.lane.b32.xlu0 %v2038, 32
    %v2041 = vpop.permute.xlu0 %2040
    %v2043 = vsel %vm540, %v2041, 0
    %2045 = vmatpush.bf16.msra.mxu0 0
    %2046 = vmatpush.bf16.msra.mxu0 0
    %2047 = vmatpush.bf16.msra.mxu0 0
    %2048 = vmatpush.bf16.msra.mxu0 0
    %2049 = vmatpush.bf16.msra.mxu0 0
    %2050 = vmatpush.bf16.msra.mxu0 0
    %2051 = vmatpush.bf16.msra.mxu0 %v1690
    %2052 = vmatpush.bf16.msra.mxu0 %v1689
    %2053 = vmatmul.bf16.gmra.mxu0 %v2043
    %v2054 = vpop.f32.mrf.mxu0
    %v2055 = vadd.f32 0.0, %v2054
    %v2056 = vpop.f32.mrf.mxu0
    %2057 = vdwg.mxu0
    %v2058 = vadd.f32 %v2037, %v2055
    %v2059 = vmul.f32 %v2036, 0.5
    %v2060 = vtanh.pop %v2059
    %v2061 = vmul.f32 %v2060, 0.5
    %v2062 = vadd.f32 %v2061, 0.5
    %v2063 = vtanh.pop %v2036
    %v2064 = vmul.f32 %v2062, %v1986
    %2066 = vrot.lane.b32.xlu0 %v2063, 64
    %v2067 = vpop.permute.xlu0 %2066
    %v2069 = vmul.f32 %v2062, %v2067
    %2071 = vrot.lane.b32.xlu0 %v2069, 32
    %v2072 = vpop.permute.xlu0 %2071
    %v2074 = vadd.f32 %v2064, %v2072
    %v2075 = vtanh.pop %v2074
    %2077 = vrot.lane.b32.xlu0 %v2075, 64
    %v2078 = vpop.permute.xlu0 %2077
    %v2080 = vmul.f32 %v2062, %v2078
    %v2081 = vmul.f32 %v2058, 0.5
    %v2082 = vtanh.pop %v2081
    %v2083 = vmul.f32 %v2082, 0.5
    %v2084 = vadd.f32 %v2083, 0.5
    %v2085 = vtanh.pop %v2058
    %v2086 = vmul.f32 %v2084, %v2008
    %2088 = vrot.lane.b32.xlu0 %v2085, 64
    %v2089 = vpop.permute.xlu0 %2088
    %v2091 = vmul.f32 %v2084, %v2089
    %2093 = vrot.lane.b32.xlu0 %v2091, 32
    %v2094 = vpop.permute.xlu0 %2093
    %v2096 = vadd.f32 %v2086, %v2094
    %v2097 = vtanh.pop %v2096
    %2099 = vrot.lane.b32.xlu0 %v2097, 64
    %v2100 = vpop.permute.xlu0 %2099
    %v2102 = vmul.f32 %v2084, %v2100
    %v2103 = vld [vmem:[%s1049] sm:$0xff]
    %v2104 = vpack.c.bf16 %v2080, %v2080
    %2106 = vrot.lane.b32.xlu0 %v2104, 32
    %v2107 = vpop.permute.xlu0 %2106
    %v2109 = vsel %vm540, %v2107, 0
    %2111 = vmatpush.bf16.msra.mxu0 0
    %2112 = vmatpush.bf16.msra.mxu0 0
    %2113 = vmatpush.bf16.msra.mxu0 0
    %2114 = vmatpush.bf16.msra.mxu0 0
    %2115 = vmatpush.bf16.msra.mxu0 0
    %2116 = vmatpush.bf16.msra.mxu0 0
    %2117 = vmatpush.bf16.msra.mxu0 %v1663
    %2118 = vmatpush.bf16.msra.mxu0 %v1662
    %2119 = vmatmul.bf16.gmra.mxu0 %v2109
    %v2120 = vpop.f32.mrf.mxu0
    %v2121 = vadd.f32 0.0, %v2120
    %v2122 = vpop.f32.mrf.mxu0
    %2123 = vdwg.mxu0
    %v2124 = vadd.f32 %v2103, %v2121
    %v2125 = vld [vmem:[%s1072] sm:$0xff]
    %v2126 = vpack.c.bf16 %v2102, %v2102
    %2128 = vrot.lane.b32.xlu0 %v2126, 32
    %v2129 = vpop.permute.xlu0 %2128
    %v2131 = vsel %vm540, %v2129, 0
    %2133 = vmatpush.bf16.msra.mxu0 0
    %2134 = vmatpush.bf16.msra.mxu0 0
    %2135 = vmatpush.bf16.msra.mxu0 0
    %2136 = vmatpush.bf16.msra.mxu0 0
    %2137 = vmatpush.bf16.msra.mxu0 0
    %2138 = vmatpush.bf16.msra.mxu0 0
    %2139 = vmatpush.bf16.msra.mxu0 %v1690
    %2140 = vmatpush.bf16.msra.mxu0 %v1689
    %2141 = vmatmul.bf16.gmra.mxu0 %v2131
    %v2142 = vpop.f32.mrf.mxu0
    %v2143 = vadd.f32 0.0, %v2142
    %v2144 = vpop.f32.mrf.mxu0
    %2145 = vdwg.mxu0
    %v2146 = vadd.f32 %v2125, %v2143
    %v2147 = vmul.f32 %v2124, 0.5
    %v2148 = vtanh.pop %v2147
    %v2149 = vmul.f32 %v2148, 0.5
    %v2150 = vadd.f32 %v2149, 0.5
    %v2151 = vtanh.pop %v2124
    %v2152 = vmul.f32 %v2150, %v2074
    %2154 = vrot.lane.b32.xlu0 %v2151, 64
    %v2155 = vpop.permute.xlu0 %2154
    %v2157 = vmul.f32 %v2150, %v2155
    %2159 = vrot.lane.b32.xlu0 %v2157, 32
    %v2160 = vpop.permute.xlu0 %2159
    %v2162 = vadd.f32 %v2152, %v2160
    %v2163 = vtanh.pop %v2162
    %2165 = vrot.lane.b32.xlu0 %v2163, 64
    %v2166 = vpop.permute.xlu0 %2165
    %v2168 = vmul.f32 %v2150, %v2166
    %v2169 = vmul.f32 %v2146, 0.5
    %v2170 = vtanh.pop %v2169
    %v2171 = vmul.f32 %v2170, 0.5
    %v2172 = vadd.f32 %v2171, 0.5
    %v2173 = vtanh.pop %v2146
    %v2174 = vmul.f32 %v2172, %v2096
    %2176 = vrot.lane.b32.xlu0 %v2173, 64
    %v2177 = vpop.permute.xlu0 %2176
    %v2179 = vmul.f32 %v2172, %v2177
    %2181 = vrot.lane.b32.xlu0 %v2179, 32
    %v2182 = vpop.permute.xlu0 %2181
    %v2184 = vadd.f32 %v2174, %v2182
    %v2185 = vtanh.pop %v2184
    %2187 = vrot.lane.b32.xlu0 %v2185, 64
    %v2188 = vpop.permute.xlu0 %2187
    %v2190 = vmul.f32 %v2172, %v2188
    %v2191 = vld [vmem:[%s1151] sm:$0xff]
    %v2192 = vpack.c.bf16 %v2168, %v2168
    %2194 = vrot.lane.b32.xlu0 %v2192, 32
    %v2195 = vpop.permute.xlu0 %2194
    %v2197 = vsel %vm540, %v2195, 0
    %2199 = vmatpush.bf16.msra.mxu0 0
    %2200 = vmatpush.bf16.msra.mxu0 0
    %2201 = vmatpush.bf16.msra.mxu0 0
    %2202 = vmatpush.bf16.msra.mxu0 0
    %2203 = vmatpush.bf16.msra.mxu0 0
    %2204 = vmatpush.bf16.msra.mxu0 0
    %2205 = vmatpush.bf16.msra.mxu0 %v1663
    %2206 = vmatpush.bf16.msra.mxu0 %v1662
    %2207 = vmatmul.bf16.gmra.mxu0 %v2197
    %v2208 = vpop.f32.mrf.mxu0
    %v2209 = vadd.f32 0.0, %v2208
    %v2210 = vpop.f32.mrf.mxu0
    %2211 = vdwg.mxu0
    %v2212 = vadd.f32 %v2191, %v2209
    %v2213 = vld [vmem:[%s1174] sm:$0xff]
    %v2214 = vpack.c.bf16 %v2190, %v2190
    %2216 = vrot.lane.b32.xlu0 %v2214, 32
    %v2217 = vpop.permute.xlu0 %2216
    %v2219 = vsel %vm540, %v2217, 0
    %2221 = vmatpush.bf16.msra.mxu0 0
    %2222 = vmatpush.bf16.msra.mxu0 0
    %2223 = vmatpush.bf16.msra.mxu0 0
    %2224 = vmatpush.bf16.msra.mxu0 0
    %2225 = vmatpush.bf16.msra.mxu0 0
    %2226 = vmatpush.bf16.msra.mxu0 0
    %2227 = vmatpush.bf16.msra.mxu0 %v1690
    %2228 = vmatpush.bf16.msra.mxu0 %v1689
    %2229 = vmatmul.bf16.gmra.mxu0 %v2219
    %v2230 = vpop.f32.mrf.mxu0
    %v2231 = vadd.f32 0.0, %v2230
    %v2232 = vpop.f32.mrf.mxu0
    %2233 = vdwg.mxu0
    %v2234 = vadd.f32 %v2213, %v2231
    %v2235 = vmul.f32 %v2212, 0.5
    %v2236 = vtanh.pop %v2235
    %v2237 = vmul.f32 %v2236, 0.5
    %v2238 = vadd.f32 %v2237, 0.5
    %v2239 = vtanh.pop %v2212
    %v2240 = vmul.f32 %v2238, %v2162
    %2242 = vrot.lane.b32.xlu0 %v2239, 64
    %v2243 = vpop.permute.xlu0 %2242
    %v2245 = vmul.f32 %v2238, %v2243
    %2247 = vrot.lane.b32.xlu0 %v2245, 32
    %v2248 = vpop.permute.xlu0 %2247
    %v2250 = vadd.f32 %v2240, %v2248
    %v2251 = vtanh.pop %v2250
    %2253 = vrot.lane.b32.xlu0 %v2251, 64
    %v2254 = vpop.permute.xlu0 %2253
    %v2256 = vmul.f32 %v2238, %v2254
    %v2257 = vmul.f32 %v2234, 0.5
    %v2258 = vtanh.pop %v2257
    %v2259 = vmul.f32 %v2258, 0.5
    %v2260 = vadd.f32 %v2259, 0.5
    %v2261 = vtanh.pop %v2234
    %v2262 = vmul.f32 %v2260, %v2184
    %2264 = vrot.lane.b32.xlu0 %v2261, 64
    %v2265 = vpop.permute.xlu0 %2264
    %v2267 = vmul.f32 %v2260, %v2265
    %2269 = vrot.lane.b32.xlu0 %v2267, 32
    %v2270 = vpop.permute.xlu0 %2269
    %v2272 = vadd.f32 %v2262, %v2270
    %v2273 = vtanh.pop %v2272
    %2275 = vrot.lane.b32.xlu0 %v2273, 64
    %v2276 = vpop.permute.xlu0 %2275
    %v2278 = vmul.f32 %v2260, %v2276
    %v2279 = vld [vmem:[%s1253] sm:$0xff]
    %v2280 = vpack.c.bf16 %v2256, %v2256
    %2282 = vrot.lane.b32.xlu0 %v2280, 32
    %v2283 = vpop.permute.xlu0 %2282
    %v2285 = vsel %vm540, %v2283, 0
    %2287 = vmatpush.bf16.msra.mxu0 0
    %2288 = vmatpush.bf16.msra.mxu0 0
    %2289 = vmatpush.bf16.msra.mxu0 0
    %2290 = vmatpush.bf16.msra.mxu0 0
    %2291 = vmatpush.bf16.msra.mxu0 0
    %2292 = vmatpush.bf16.msra.mxu0 0
    %2293 = vmatpush.bf16.msra.mxu0 %v1663
    %2294 = vmatpush.bf16.msra.mxu0 %v1662
    %2295 = vmatmul.bf16.gmra.mxu0 %v2285
    %v2296 = vpop.f32.mrf.mxu0
    %v2297 = vadd.f32 0.0, %v2296
    %v2298 = vpop.f32.mrf.mxu0
    %2299 = vdwg.mxu0
    %v2300 = vadd.f32 %v2279, %v2297
    %v2301 = vld [vmem:[#allocation5] sm:$0xff]
    %v2302 = vpack.c.bf16 %v2278, %v2278
    %2304 = vrot.lane.b32.xlu0 %v2302, 32
    %v2305 = vpop.permute.xlu0 %2304
    %v2307 = vsel %vm540, %v2305, 0
    %2309 = vmatpush.bf16.msra.mxu0 0
    %2310 = vmatpush.bf16.msra.mxu0 0
    %2311 = vmatpush.bf16.msra.mxu0 0
    %2312 = vmatpush.bf16.msra.mxu0 0
    %2313 = vmatpush.bf16.msra.mxu0 0
    %2314 = vmatpush.bf16.msra.mxu0 0
    %2315 = vmatpush.bf16.msra.mxu0 %v1690
    %2316 = vmatpush.bf16.msra.mxu0 %v1689
    %2317 = vmatmul.bf16.gmra.mxu0 %v2307
    %v2318 = vpop.f32.mrf.mxu0
    %v2319 = vadd.f32 0.0, %v2318
    %v2320 = vpop.f32.mrf.mxu0
    %2321 = vdwg.mxu0
    %v2322 = vadd.f32 %v2301, %v2319
    %v2323 = vmul.f32 %v2300, 0.5
    %v2324 = vtanh.pop %v2323
    %v2325 = vmul.f32 %v2324, 0.5
    %v2326 = vadd.f32 %v2325, 0.5
    %v2327 = vtanh.pop %v2300
    %v2328 = vmul.f32 %v2326, %v2250
    %2330 = vrot.lane.b32.xlu0 %v2327, 64
    %v2331 = vpop.permute.xlu0 %2330
    %v2333 = vmul.f32 %v2326, %v2331
    %2335 = vrot.lane.b32.xlu0 %v2333, 32
    %v2336 = vpop.permute.xlu0 %2335
    %v2338 = vadd.f32 %v2328, %v2336
    %v2339 = vtanh.pop %v2338
    %2341 = vrot.lane.b32.xlu0 %v2339, 64
    %v2342 = vpop.permute.xlu0 %2341
    %v2344 = vmul.f32 %v2326, %v2342
    %v2345 = vmul.f32 %v2322, 0.5
    %v2346 = vtanh.pop %v2345
    %v2347 = vmul.f32 %v2346, 0.5
    %v2348 = vadd.f32 %v2347, 0.5
    %v2349 = vtanh.pop %v2322
    %v2350 = vmul.f32 %v2348, %v2272
    %2352 = vrot.lane.b32.xlu0 %v2349, 64
    %v2353 = vpop.permute.xlu0 %2352
    %v2355 = vmul.f32 %v2348, %v2353
    %2357 = vrot.lane.b32.xlu0 %v2355, 32
    %v2358 = vpop.permute.xlu0 %2357
    %v2360 = vadd.f32 %v2350, %v2358
    %v2361 = vtanh.pop %v2360
    %2363 = vrot.lane.b32.xlu0 %v2361, 64
    %v2364 = vpop.permute.xlu0 %2363
    %v2366 = vmul.f32 %v2348, %v2364
    %v2367 = vpack.c.bf16 %v2344, %v2344
    %v2368 = vld [vmem:[#allocation24] sm:$0xf]
    %v2369 = vld [vmem:[#allocation24 + $0x4] sm:$0xf]
    %v2370 = vld [vmem:[#allocation24 + $0x8] sm:$0xf]
    %v2371 = vld [vmem:[#allocation24 + $0xc] sm:$0xf]
    %v2372 = vpack.c.bf16 %v2366, %v2366
    %v2373 = vld [vmem:[#allocation26] sm:$0xf]
    %v2374 = vld [vmem:[#allocation26 + $0x4] sm:$0xf]
    %v2375 = vld [vmem:[#allocation26 + $0x8] sm:$0xf]
    %v2376 = vld [vmem:[#allocation26 + $0xc] sm:$0xf]
    %2378 = vrot.lane.b32.xlu0 %v2372, 32
    %v2379 = vpop.permute.xlu0 %2378
    %v2384 = vunpack.c.l.b16 %v2373
    %v2385 = vunpack.c.l.b16 %v2374
    %v2386 = vunpack.c.l.b16 %v2375
    %v2387 = vunpack.c.l.b16 %v2376
    %v2388 = vpack.c.b16 %v2385, %v2384
    %v2389 = vpack.c.b16 %v2387, %v2386
    %v2393 = vsel %vm540, %v2379, 0
    %2395 = vmatpush.bf16.msra.mxu0 0
    %2396 = vmatpush.bf16.msra.mxu0 0
    %2397 = vmatpush.bf16.msra.mxu0 0
    %2398 = vmatpush.bf16.msra.mxu0 0
    %2399 = vmatpush.bf16.msra.mxu0 0
    %2400 = vmatpush.bf16.msra.mxu0 0
    %2401 = vmatpush.bf16.msra.mxu0 %v2389
    %2402 = vmatpush.bf16.msra.mxu0 %v2388
    %2403 = vmatmul.bf16.gmra.mxu0 %v2393
    %v2404 = vpop.f32.mrf.mxu0
    %v2405 = vadd.f32 0.0, %v2404
    %v2406 = vpop.f32.mrf.mxu0
    %2407 = vdwg.mxu0
    %2409 = vrot.lane.b32.xlu0 %v2367, 32
    %v2410 = vpop.permute.xlu0 %2409
    %v2415 = vunpack.c.l.b16 %v2368
    %v2416 = vunpack.c.l.b16 %v2369
    %v2417 = vunpack.c.l.b16 %v2370
    %v2418 = vunpack.c.l.b16 %v2371
    %v2419 = vpack.c.b16 %v2416, %v2415
    %v2420 = vpack.c.b16 %v2418, %v2417
    %v2424 = vsel %vm540, %v2410, 0
    %2426 = vmatpush.bf16.msra.mxu0 0
    %2427 = vmatpush.bf16.msra.mxu0 0
    %2428 = vmatpush.bf16.msra.mxu0 0
    %2429 = vmatpush.bf16.msra.mxu0 0
    %2430 = vmatpush.bf16.msra.mxu0 0
    %2431 = vmatpush.bf16.msra.mxu0 0
    %2432 = vmatpush.bf16.msra.mxu0 %v2420
    %2433 = vmatpush.bf16.msra.mxu0 %v2419
    %2434 = vmatmul.bf16.gmra.mxu0 %v2424
    %v2435 = vpop.f32.mrf.mxu0
    %v2436 = vadd.f32 %v2405, %v2435
    %v2437 = vpop.f32.mrf.mxu0
    %2438 = vdwg.mxu0
    %v2439 = vld [vmem:[%s17] sm:$0x1]
    %v2441 = vperm.slane %v2439, 0
    %v2443 = vadd.f32 %v2436, %v2441
    %v2444 = vtanh.pop %v2443
    %v2445 = vlaneseq
    %v2446 = vand.u32 %v2445, 127
    %vm2447 = vcmp.lt.s32.totalorder %v2446, 32
    %v2448 = vsel %vm2447, 1, 0
    %v2449 = vcvt.s32.f32 %v2448
    %v2450 = vmul.f32 %v2444, %v2449
    %2451 = vadd.xlane.f32.xlu0 %v2450
    %v2452 = vpop.xlane.xlu0 %2451
    %v2453 = vmul.f32 %v2452, 0.03125
    %v2454 = vsub.f32 %v2444, %v2453
    %v2455 = vmul.f32 %v2454, %v2449
    %v2456 = vmul.f32 %v2455, %v2455
    %2457 = vadd.xlane.f32.xlu0 %v2456
    %v2458 = vpop.xlane.xlu0 %2457
    %v2459 = vmul.f32 %v2458, 0.03125
    %v2460 = vadd.f32 %v2459, 1e-05
    %v2461 = vrsqrt.pop %v2460
    %v2462 = vmul.f32 %v2461, %v2460
    %v2463 = vmul.f32 %v2462, %v2461
    %v2464 = vmul.f32 0.5, %v2463
    %v2465 = vsub.f32 1.5, %v2464
    %v2466 = vmul.f32 %v2461, %v2465
    %vm2467 = vweird.f32 %v2460
    %vm2468 = vweird.f32 %v2461
    %vm2469 = vmor %vm2467, %vm2468
    %v2470 = vsel %vm2469, %v2461, %v2466
    %v2471 = vmul.f32 %v2455, %v2470
    %v2472 = vld [vmem:[%s18] sm:$0x1]
    %v2474 = vperm.slane %v2472, 0
    %v2476 = vmul.f32 %v2471, %v2474
    %v2477 = vld [vmem:[%s19] sm:$0x1]
    %v2479 = vperm.slane %v2477, 0
    %v2481 = vadd.f32 %v2476, %v2479
    %2482 = vst [vmem:[#allocation27] sm:$0xff] %v2481
    // Predicated region
    $region134: #{tpu_custom_call.1} parent=1 // pred_check
      _
    $region135: #{tpu_custom_call.1} parent=1 // pred_check_branch
      %2484 = sbr.rel (0) target = $region137
    $region136: #{tpu_custom_call.1} parent=1 // pred_region
      %2486 = vsyncadd [#allocation8], 0
      %s2488 = sshll.u32 [#allocation27], 4
      %s2489 = int_to_ptr.vmem [resolvable:$true] %s2488
      %s2490 = sshll.u32 %s20, 4
      %s2491 = int_to_ptr.hbm [resolvable:$true] %s2490
      %2493 = dma.vmem_to_hbm [thread:$0]  %s2489, 128, %s2491, [#allocation8]
    $region137: #{tpu_custom_call.1} parent=1 // pred_fallthru
      _
    // Predicated region
    $region138: #{tpu_custom_call.1} parent=1 // pred_check
      _
    $region139: #{tpu_custom_call.1} parent=1 // pred_check_branch
      %2495 = sbr.rel (0) target = $region141
    $region140: #{tpu_custom_call.1} parent=1 // pred_region
      %2497 = dma.done [#allocation8], 128
    $region141: #{tpu_custom_call.1} parent=1 // pred_fallthru
      _
    %2498 = vsyncpa [#allocation7], 1
    %2499 = vsyncpa [#allocation10], 1
    %2500 = vsyncpa [#allocation13], 1
    %2501 = vsyncpa [#allocation16], 1
    %2502 = vsyncpa [#allocation19], 1
    %2503 = vsyncpa [#allocation22], 1
    %2504 = vsyncpa [#allocation25], 1
    %2505 = vsyncpa [#allocation8], 1

</llo_original>
